<compile_context>
chip_gen: v7x
topology: tpu7x:2x2x1
jax: 0.10.0
libtpu: 0.0.40
codegen_flags: <defaults>
</compile_context>

<pallas_src>
import functools
import math

import jax
import jax.numpy as jnp
from jax.experimental import pallas as pl
from jax.experimental.pallas import tpu as pltpu

_LANES = 128


def _round_up(v, m):
    return (v + m - 1) // m * m


def _vmem_limit_bytes():
    """Generation-aware VMEM limit (75% of physical, leaves scratch headroom).

    ~96 MiB on v5e/v6e (128 MiB/TC), ~48 MiB on v7x (64 MiB/TC).  Falls back to
    the compiler default if the hardware query is unavailable.
    """
    try:
        return int(pltpu.get_tpu_info().vmem_capacity_bytes) * 3 // 4
    except Exception:  # defensive: never let the perf hint break the kernel
        return None


def _cheb_layer(h, L, w_ref, K):
    """One Chebyshev GCN layer: sum_k T_k(L) h @ W_k, f32 accumulate.

    K separate dot+accumulate MXU passes (no lane-axis concatenate).  The weight
    slab is 2-D (K * f_in_pad, f_out_pad), K-major and 128-lane aligned, so each
    slice below is a static, aligned (f_in_pad, f_out_pad) tile.  MXU operands
    are cast to the slab / L dtype (bf16 on the fast path); the Chebyshev
    recursion combine (2*L@T1 - T0) and the accumulation stay in f32.
    """
    mxu_dtype = w_ref.dtype
    f_in = w_ref.shape[0] // K

    def w_k(k):
        return w_ref[pl.ds(k * f_in, f_in), :]          # static, lane-aligned

    tx0 = h
    out = jnp.dot(tx0.astype(mxu_dtype), w_k(0), preferred_element_type=jnp.float32)
    if K > 1:
        tx1 = jnp.dot(L, tx0.astype(L.dtype), preferred_element_type=jnp.float32)
        out = out + jnp.dot(tx1.astype(mxu_dtype), w_k(1),
                            preferred_element_type=jnp.float32)
        for k in range(2, K):
            tx2 = 2.0 * jnp.dot(L, tx1.astype(L.dtype),
                                preferred_element_type=jnp.float32) - tx0
            out = out + jnp.dot(tx2.astype(mxu_dtype), w_k(k),
                                preferred_element_type=jnp.float32)
            tx0, tx1 = tx1, tx2
    return out


def predictor_kernel(x_ref, adj_ref, w1_ref, w2_ref, w3_ref, w4_ref, mask_ref,
                     out_ref, *, K):
    """Fused forward: GCN1..GCN4 + ReLU + log_softmax(dim=1), whole-resident."""
    L = adj_ref[...]     # (n_pad, n_pad), f32 or bf16 (MXU operand dtype)
    h = x_ref[...]       # (n_pad, in_pad), f32

    h = jnp.maximum(_cheb_layer(h, L, w1_ref, K), 0.0)   # relu(GCN1)
    h = jnp.maximum(_cheb_layer(h, L, w2_ref, K), 0.0)   # dropout(relu(GCN2)) -> eval identity
    h = jnp.maximum(_cheb_layer(h, L, w3_ref, K), 0.0)   # dropout(relu(GCN3)) -> eval identity
    logits = _cheb_layer(h, L, w4_ref, K)                # GCN4 (lane-padded logits)

    # log_softmax along features; precomputed additive mask (0 for real columns,
    # -1e30 for lane padding) keeps padded lanes out of the max/sum with a
    # single VPU add (replaces iota + cmp + select).
    masked = logits + mask_ref[...]
    m = jnp.max(masked, axis=1, keepdims=True)
    s = masked - m
    lse = jnp.log(jnp.sum(jnp.exp(s), axis=1, keepdims=True))
    out_ref[...] = s - lse


def _pad_weight(w, f_in_pad, f_out_pad, mxu_dtype):
    """(K, F_in, F_out) -> lane-dense 2-D (K * f_in_pad, f_out_pad) slab, K-major."""
    K, F_in, F_out = w.shape
    w = jnp.pad(w, ((0, 0), (0, f_in_pad - F_in), (0, f_out_pad - F_out)))
    return w.reshape(K * f_in_pad, f_out_pad).astype(mxu_dtype)


@functools.partial(jax.jit, static_argnames=("mxu_dtype",))
def predictor_forward(x, adj, w1, w2, w3, w4, *, mxu_dtype=jnp.float32):
    N, F_in = x.shape
    K = w1.shape[0]
    out_dim = w4.shape[-1]

    # Lane-align every geometry dim: the node dim (L's last dim + L@Tx
    # contraction dim) and all feature dims (lane dims of h / weight slabs).
    n_pad = _round_up(N, _LANES)
    in_pad = _round_up(F_in, _LANES)
    h1_pad = _round_up(w1.shape[-1], _LANES)
    h2_pad = _round_up(w2.shape[-1], _LANES)
    h3_pad = _round_up(w3.shape[-1], _LANES)
    out_pad = _round_up(out_dim, _LANES)

    # Zero padding keeps padded rows/cols inert (zero L rows/cols, zero weight
    # rows/cols, relu(0)=0), so the final [:N, :out_dim] slice is exact.
    x_p = jnp.pad(x.astype(jnp.float32), ((0, n_pad - N), (0, in_pad - F_in)))
    adj_p = jnp.pad(adj.astype(jnp.float32),
                    ((0, n_pad - N), (0, n_pad - N))).astype(mxu_dtype)

    w1f = _pad_weight(w1, in_pad, h1_pad, mxu_dtype)
    w2f = _pad_weight(w2, h1_pad, h2_pad, mxu_dtype)
    w3f = _pad_weight(w3, h2_pad, h3_pad, mxu_dtype)
    w4f = _pad_weight(w4, h3_pad, out_pad, mxu_dtype)

    # Additive lane mask for log_softmax over the padded logits.
    mask = jnp.where(jnp.arange(out_pad) < out_dim, 0.0, -1e30)
    mask = mask.astype(jnp.float32)[None, :]

    kern = functools.partial(predictor_kernel, K=K)
    vmem_spec = pl.BlockSpec(memory_space=pltpu.MemorySpace.VMEM)
    limit = _vmem_limit_bytes()
    call_kwargs = {}
    if limit is not None:
        call_kwargs["compiler_params"] = pltpu.CompilerParams(vmem_limit_bytes=limit)

    out = pl.pallas_call(
        kern,
        out_shape=jax.ShapeDtypeStruct((n_pad, out_pad), jnp.float32),
        in_specs=[vmem_spec] * 7,
        out_specs=vmem_spec,
        **call_kwargs,
    )(x_p, adj_p, w1f, w2f, w3f, w4f, mask)
    return out[:N, :out_dim]


def init_cheb_weight(key, K, F_in, F_out):
    """Matches GraphConvolutionChebychev.reset_parameters: U(-stdv, stdv)."""
    stdv = 1.0 / math.sqrt(F_in)
    return jax.random.uniform(
        key, (K, F_in, F_out), dtype=jnp.float32, minval=-stdv, maxval=stdv
    )


def reference_forward(x, adj, w1, w2, w3, w4):
    """Pure-JAX reference mirroring the PyTorch forward (eval mode)."""
    def cheb(x, L, w):
        K = w.shape[0]
        Tx0 = x
        out = Tx0 @ w[0]
        if K > 1:
            Tx1 = L @ x
            out = out + Tx1 @ w[1]
        for k in range(2, K):
            Tx2 = 2.0 * (L @ Tx1) - Tx0
            out = out + Tx2 @ w[k]
            Tx0, Tx1 = Tx1, Tx2
        return out

    h = jax.nn.relu(cheb(x, adj, w1))
    h = jax.nn.relu(cheb(h, adj, w2))
    h = jax.nn.relu(cheb(h, adj, w3))
    h = cheb(h, adj, w4)
    return jax.nn.log_softmax(h, axis=1)


if __name__ == "__main__":
    # Small, module-consistent shapes.
    N = 16          # number of graph nodes
    input_dim = 8
    hidden = 32
    output_dim = 4
    K = 3           # Chebyshev order

    key = jax.random.PRNGKey(0)
    kx, kadj, k1, k2, k3, k4 = jax.random.split(key, 6)

    x = jax.random.normal(kx, (N, input_dim), dtype=jnp.float32)
    # Symmetric "rescaled Laplacian"-like matrix for the example input.
    a = jax.random.normal(kadj, (N, N), dtype=jnp.float32)
    adj = 0.5 * (a + a.T) / float(N)

    w1 = init_cheb_weight(k1, K, input_dim, hidden)
    w2 = init_cheb_weight(k2, K, hidden, hidden)
    w3 = init_cheb_weight(k3, K, hidden, hidden)
    w4 = init_cheb_weight(k4, K, hidden, output_dim)

    ref = reference_forward(x, adj, w1, w2, w3, w4)

    # f32 MXU operands: bit-faithful path, tight check vs. the reference.
    out = predictor_forward(x, adj, w1, w2, w3, w4, mxu_dtype=jnp.float32)
    jax.block_until_ready(out)
    assert out.shape == (N, output_dim)
    assert jnp.allclose(out, ref, atol=1e-4, rtol=1e-4), "f32 mismatch vs reference"

    # bf16 MXU operands (v6e/v7x fast path); f32 accumulate keeps it close.
    out_bf16 = predictor_forward(x, adj, w1, w2, w3, w4, mxu_dtype=jnp.bfloat16)
    jax.block_until_ready(out_bf16)
    assert out_bf16.shape == (N, output_dim)
    assert jnp.allclose(out_bf16, ref, atol=5e-2, rtol=5e-2), "bf16 mismatch vs reference"

    print("KERNEL_OK")
</pallas_src>

<mosaic_0001>
module attributes {stable_mosaic.version = 11 : i64} {
  func.func @predictor_kernel(%arg0: memref<128x128xf32, #tpu.memory_space<vmem>>, %arg1: memref<128x128xf32, #tpu.memory_space<vmem>>, %arg2: memref<384x128xf32, #tpu.memory_space<vmem>>, %arg3: memref<384x128xf32, #tpu.memory_space<vmem>>, %arg4: memref<384x128xf32, #tpu.memory_space<vmem>>, %arg5: memref<384x128xf32, #tpu.memory_space<vmem>>, %arg6: memref<1x128xf32, #tpu.memory_space<vmem>>, %arg7: memref<128x128xf32, #tpu.memory_space<vmem>>) attributes {dimension_semantics = [], scalar_prefetch = 0 : i64, scratch_operands = 0 : i64, tpu.core_type = #tpu.core_type<tc>} {
    %c0 = arith.constant 0 : index
    %c0_0 = arith.constant 0 : index
    %0 = vector.load %arg1[%c0, %c0_0] : memref<128x128xf32, #tpu.memory_space<vmem>>, vector<128x128xf32>
    %c0_1 = arith.constant 0 : index
    %c0_2 = arith.constant 0 : index
    %1 = vector.load %arg0[%c0_1, %c0_2] : memref<128x128xf32, #tpu.memory_space<vmem>>, vector<128x128xf32>
    %c0_3 = arith.constant 0 : index
    %c0_4 = arith.constant 0 : index
    %2 = vector.load %arg2[%c0_3, %c0_4] : memref<384x128xf32, #tpu.memory_space<vmem>>, vector<128x128xf32>
    %cst = arith.constant dense<0.000000e+00> : vector<128x128xf32>
    %3 = tpu.matmul %1, %2, %cst {dimension_numbers = #tpu.dot_dimension_numbers<[1], [0], [0], [1], [0, 0, 1, 1], [], []>} : vector<128x128xf32>, vector<128x128xf32>, vector<128x128xf32> -> vector<128x128xf32>
    %cst_5 = arith.constant dense<0.000000e+00> : vector<128x128xf32>
    %4 = tpu.matmul %0, %1, %cst_5 {dimension_numbers = #tpu.dot_dimension_numbers<[1], [0], [0], [1], [0, 0, 1, 1], [], []>} : vector<128x128xf32>, vector<128x128xf32>, vector<128x128xf32> -> vector<128x128xf32>
    %c128 = arith.constant 128 : index
    %c0_6 = arith.constant 0 : index
    %5 = vector.load %arg2[%c128, %c0_6] : memref<384x128xf32, #tpu.memory_space<vmem>>, vector<128x128xf32>
    %cst_7 = arith.constant dense<0.000000e+00> : vector<128x128xf32>
    %6 = tpu.matmul %4, %5, %cst_7 {dimension_numbers = #tpu.dot_dimension_numbers<[1], [0], [0], [1], [0, 0, 1, 1], [], []>} : vector<128x128xf32>, vector<128x128xf32>, vector<128x128xf32> -> vector<128x128xf32>
    %7 = arith.addf %3, %6 : vector<128x128xf32>
    %cst_8 = arith.constant dense<0.000000e+00> : vector<128x128xf32>
    %8 = tpu.matmul %0, %4, %cst_8 {dimension_numbers = #tpu.dot_dimension_numbers<[1], [0], [0], [1], [0, 0, 1, 1], [], []>} : vector<128x128xf32>, vector<128x128xf32>, vector<128x128xf32> -> vector<128x128xf32>
    %cst_9 = arith.constant 2.000000e+00 : f32
    %9 = vector.broadcast %cst_9 : f32 to vector<128x128xf32>
    %10 = arith.mulf %9, %8 : vector<128x128xf32>
    %11 = arith.subf %10, %1 : vector<128x128xf32>
    %c256 = arith.constant 256 : index
    %c0_10 = arith.constant 0 : index
    %12 = vector.load %arg2[%c256, %c0_10] : memref<384x128xf32, #tpu.memory_space<vmem>>, vector<128x128xf32>
    %cst_11 = arith.constant dense<0.000000e+00> : vector<128x128xf32>
    %13 = tpu.matmul %11, %12, %cst_11 {dimension_numbers = #tpu.dot_dimension_numbers<[1], [0], [0], [1], [0, 0, 1, 1], [], []>} : vector<128x128xf32>, vector<128x128xf32>, vector<128x128xf32> -> vector<128x128xf32>
    %14 = arith.addf %7, %13 : vector<128x128xf32>
    %cst_12 = arith.constant 0.000000e+00 : f32
    %15 = vector.broadcast %cst_12 : f32 to vector<128x128xf32>
    %16 = arith.maximumf %14, %15 : vector<128x128xf32>
    %c0_13 = arith.constant 0 : index
    %c0_14 = arith.constant 0 : index
    %17 = vector.load %arg3[%c0_13, %c0_14] : memref<384x128xf32, #tpu.memory_space<vmem>>, vector<128x128xf32>
    %cst_15 = arith.constant dense<0.000000e+00> : vector<128x128xf32>
    %18 = tpu.matmul %16, %17, %cst_15 {dimension_numbers = #tpu.dot_dimension_numbers<[1], [0], [0], [1], [0, 0, 1, 1], [], []>} : vector<128x128xf32>, vector<128x128xf32>, vector<128x128xf32> -> vector<128x128xf32>
    %cst_16 = arith.constant dense<0.000000e+00> : vector<128x128xf32>
    %19 = tpu.matmul %0, %16, %cst_16 {dimension_numbers = #tpu.dot_dimension_numbers<[1], [0], [0], [1], [0, 0, 1, 1], [], []>} : vector<128x128xf32>, vector<128x128xf32>, vector<128x128xf32> -> vector<128x128xf32>
    %c128_17 = arith.constant 128 : index
    %c0_18 = arith.constant 0 : index
    %20 = vector.load %arg3[%c128_17, %c0_18] : memref<384x128xf32, #tpu.memory_space<vmem>>, vector<128x128xf32>
    %cst_19 = arith.constant dense<0.000000e+00> : vector<128x128xf32>
    %21 = tpu.matmul %19, %20, %cst_19 {dimension_numbers = #tpu.dot_dimension_numbers<[1], [0], [0], [1], [0, 0, 1, 1], [], []>} : vector<128x128xf32>, vector<128x128xf32>, vector<128x128xf32> -> vector<128x128xf32>
    %22 = arith.addf %18, %21 : vector<128x128xf32>
    %cst_20 = arith.constant dense<0.000000e+00> : vector<128x128xf32>
    %23 = tpu.matmul %0, %19, %cst_20 {dimension_numbers = #tpu.dot_dimension_numbers<[1], [0], [0], [1], [0, 0, 1, 1], [], []>} : vector<128x128xf32>, vector<128x128xf32>, vector<128x128xf32> -> vector<128x128xf32>
    %cst_21 = arith.constant 2.000000e+00 : f32
    %24 = vector.broadcast %cst_21 : f32 to vector<128x128xf32>
    %25 = arith.mulf %24, %23 : vector<128x128xf32>
    %26 = arith.subf %25, %16 : vector<128x128xf32>
    %c256_22 = arith.constant 256 : index
    %c0_23 = arith.constant 0 : index
    %27 = vector.load %arg3[%c256_22, %c0_23] : memref<384x128xf32, #tpu.memory_space<vmem>>, vector<128x128xf32>
    %cst_24 = arith.constant dense<0.000000e+00> : vector<128x128xf32>
    %28 = tpu.matmul %26, %27, %cst_24 {dimension_numbers = #tpu.dot_dimension_numbers<[1], [0], [0], [1], [0, 0, 1, 1], [], []>} : vector<128x128xf32>, vector<128x128xf32>, vector<128x128xf32> -> vector<128x128xf32>
    %29 = arith.addf %22, %28 : vector<128x128xf32>
    %cst_25 = arith.constant 0.000000e+00 : f32
    %30 = vector.broadcast %cst_25 : f32 to vector<128x128xf32>
    %31 = arith.maximumf %29, %30 : vector<128x128xf32>
    %c0_26 = arith.constant 0 : index
    %c0_27 = arith.constant 0 : index
    %32 = vector.load %arg4[%c0_26, %c0_27] : memref<384x128xf32, #tpu.memory_space<vmem>>, vector<128x128xf32>
    %cst_28 = arith.constant dense<0.000000e+00> : vector<128x128xf32>
    %33 = tpu.matmul %31, %32, %cst_28 {dimension_numbers = #tpu.dot_dimension_numbers<[1], [0], [0], [1], [0, 0, 1, 1], [], []>} : vector<128x128xf32>, vector<128x128xf32>, vector<128x128xf32> -> vector<128x128xf32>
    %cst_29 = arith.constant dense<0.000000e+00> : vector<128x128xf32>
    %34 = tpu.matmul %0, %31, %cst_29 {dimension_numbers = #tpu.dot_dimension_numbers<[1], [0], [0], [1], [0, 0, 1, 1], [], []>} : vector<128x128xf32>, vector<128x128xf32>, vector<128x128xf32> -> vector<128x128xf32>
    %c128_30 = arith.constant 128 : index
    %c0_31 = arith.constant 0 : index
    %35 = vector.load %arg4[%c128_30, %c0_31] : memref<384x128xf32, #tpu.memory_space<vmem>>, vector<128x128xf32>
    %cst_32 = arith.constant dense<0.000000e+00> : vector<128x128xf32>
    %36 = tpu.matmul %34, %35, %cst_32 {dimension_numbers = #tpu.dot_dimension_numbers<[1], [0], [0], [1], [0, 0, 1, 1], [], []>} : vector<128x128xf32>, vector<128x128xf32>, vector<128x128xf32> -> vector<128x128xf32>
    %37 = arith.addf %33, %36 : vector<128x128xf32>
    %cst_33 = arith.constant dense<0.000000e+00> : vector<128x128xf32>
    %38 = tpu.matmul %0, %34, %cst_33 {dimension_numbers = #tpu.dot_dimension_numbers<[1], [0], [0], [1], [0, 0, 1, 1], [], []>} : vector<128x128xf32>, vector<128x128xf32>, vector<128x128xf32> -> vector<128x128xf32>
    %cst_34 = arith.constant 2.000000e+00 : f32
    %39 = vector.broadcast %cst_34 : f32 to vector<128x128xf32>
    %40 = arith.mulf %39, %38 : vector<128x128xf32>
    %41 = arith.subf %40, %31 : vector<128x128xf32>
    %c256_35 = arith.constant 256 : index
    %c0_36 = arith.constant 0 : index
    %42 = vector.load %arg4[%c256_35, %c0_36] : memref<384x128xf32, #tpu.memory_space<vmem>>, vector<128x128xf32>
    %cst_37 = arith.constant dense<0.000000e+00> : vector<128x128xf32>
    %43 = tpu.matmul %41, %42, %cst_37 {dimension_numbers = #tpu.dot_dimension_numbers<[1], [0], [0], [1], [0, 0, 1, 1], [], []>} : vector<128x128xf32>, vector<128x128xf32>, vector<128x128xf32> -> vector<128x128xf32>
    %44 = arith.addf %37, %43 : vector<128x128xf32>
    %cst_38 = arith.constant 0.000000e+00 : f32
    %45 = vector.broadcast %cst_38 : f32 to vector<128x128xf32>
    %46 = arith.maximumf %44, %45 : vector<128x128xf32>
    %c0_39 = arith.constant 0 : index
    %c0_40 = arith.constant 0 : index
    %47 = vector.load %arg5[%c0_39, %c0_40] : memref<384x128xf32, #tpu.memory_space<vmem>>, vector<128x128xf32>
    %cst_41 = arith.constant dense<0.000000e+00> : vector<128x128xf32>
    %48 = tpu.matmul %46, %47, %cst_41 {dimension_numbers = #tpu.dot_dimension_numbers<[1], [0], [0], [1], [0, 0, 1, 1], [], []>} : vector<128x128xf32>, vector<128x128xf32>, vector<128x128xf32> -> vector<128x128xf32>
    %cst_42 = arith.constant dense<0.000000e+00> : vector<128x128xf32>
    %49 = tpu.matmul %0, %46, %cst_42 {dimension_numbers = #tpu.dot_dimension_numbers<[1], [0], [0], [1], [0, 0, 1, 1], [], []>} : vector<128x128xf32>, vector<128x128xf32>, vector<128x128xf32> -> vector<128x128xf32>
    %c128_43 = arith.constant 128 : index
    %c0_44 = arith.constant 0 : index
    %50 = vector.load %arg5[%c128_43, %c0_44] : memref<384x128xf32, #tpu.memory_space<vmem>>, vector<128x128xf32>
    %cst_45 = arith.constant dense<0.000000e+00> : vector<128x128xf32>
    %51 = tpu.matmul %49, %50, %cst_45 {dimension_numbers = #tpu.dot_dimension_numbers<[1], [0], [0], [1], [0, 0, 1, 1], [], []>} : vector<128x128xf32>, vector<128x128xf32>, vector<128x128xf32> -> vector<128x128xf32>
    %52 = arith.addf %48, %51 : vector<128x128xf32>
    %cst_46 = arith.constant dense<0.000000e+00> : vector<128x128xf32>
    %53 = tpu.matmul %0, %49, %cst_46 {dimension_numbers = #tpu.dot_dimension_numbers<[1], [0], [0], [1], [0, 0, 1, 1], [], []>} : vector<128x128xf32>, vector<128x128xf32>, vector<128x128xf32> -> vector<128x128xf32>
    %cst_47 = arith.constant 2.000000e+00 : f32
    %54 = vector.broadcast %cst_47 : f32 to vector<128x128xf32>
    %55 = arith.mulf %54, %53 : vector<128x128xf32>
    %56 = arith.subf %55, %46 : vector<128x128xf32>
    %c256_48 = arith.constant 256 : index
    %c0_49 = arith.constant 0 : index
    %57 = vector.load %arg5[%c256_48, %c0_49] : memref<384x128xf32, #tpu.memory_space<vmem>>, vector<128x128xf32>
    %cst_50 = arith.constant dense<0.000000e+00> : vector<128x128xf32>
    %58 = tpu.matmul %56, %57, %cst_50 {dimension_numbers = #tpu.dot_dimension_numbers<[1], [0], [0], [1], [0, 0, 1, 1], [], []>} : vector<128x128xf32>, vector<128x128xf32>, vector<128x128xf32> -> vector<128x128xf32>
    %59 = arith.addf %52, %58 : vector<128x128xf32>
    %c0_51 = arith.constant 0 : index
    %c0_52 = arith.constant 0 : index
    %60 = vector.load %arg6[%c0_51, %c0_52] : memref<1x128xf32, #tpu.memory_space<vmem>>, vector<1x128xf32>
    %61 = vector.broadcast %60 : vector<1x128xf32> to vector<128x128xf32>
    %62 = arith.addf %59, %61 : vector<128x128xf32>
    %cst_53 = arith.constant dense<0xFF800000> : vector<128xf32>
    %63 = vector.multi_reduction <maximumf>, %62, %cst_53 [1] : vector<128x128xf32> to vector<128xf32>
    %64 = vector.shape_cast %63 : vector<128xf32> to vector<128x1xf32>
    %65 = vector.broadcast %64 : vector<128x1xf32> to vector<128x128xf32>
    %66 = arith.subf %62, %65 : vector<128x128xf32>
    %67 = math.exp %66 : vector<128x128xf32>
    %cst_54 = arith.constant dense<0.000000e+00> : vector<128xf32>
    %68 = vector.multi_reduction <add>, %67, %cst_54 [1] : vector<128x128xf32> to vector<128xf32>
    %69 = vector.shape_cast %68 : vector<128xf32> to vector<128x1xf32>
    %70 = math.log %69 : vector<128x1xf32>
    %71 = vector.broadcast %70 : vector<128x1xf32> to vector<128x128xf32>
    %72 = arith.subf %66, %71 : vector<128x128xf32>
    %c0_55 = arith.constant 0 : index
    %c0_56 = arith.constant 0 : index
    %73 = vector.load %arg7[%c0_55, %c0_56] : memref<128x128xf32, #tpu.memory_space<vmem>>, vector<128x128xf32>
    tpu.vector_store %arg7[%c0_55, %c0_56], %72 {strides = array<i32>} : memref<128x128xf32, #tpu.memory_space<vmem>>, vector<128x128xf32>,
    return
  }
}

</mosaic_0001>

<llo_original>
// kernel: predictor_forward.1
$region0: #{predictor_forward.1}
  #allocation0 [shape = 'u32[]', space=smem, size = 0x4, offset = 0x4, fixed_abs, tag = 'smem constant byte address 0x4 - core index']
  #allocation1 [shape = 'u32[144,128]{1,0:T(1,128)}', space=vmem, size = 0x12000, scoped, tag = 'internal scratch']
  %s0 = inlined_call_operand.vmem [shape: f32[128,128], index: 0, kind: input, shape index: {}]
  %s1 = inlined_call_operand.vmem [shape: f32[128,128], index: 1, kind: input, shape index: {}]
  %s2 = inlined_call_operand.vmem [shape: f32[384,128], index: 2, kind: input, shape index: {}]
  %s3 = inlined_call_operand.vmem [shape: f32[384,128], index: 3, kind: input, shape index: {}]
  %s4 = inlined_call_operand.vmem [shape: f32[384,128], index: 4, kind: input, shape index: {}]
  %s5 = inlined_call_operand.vmem [shape: f32[384,128], index: 5, kind: input, shape index: {}]
  %s6 = inlined_call_operand.vmem [shape: f32[1,128], index: 6, kind: input, shape index: {}]
  %s7 = inlined_call_operand.vmem [shape: f32[128,128], index: 7, kind: output, shape index: {}]
  %s8 = sld [smem:[#allocation0]]
  $region38: #{predictor_forward.1} parent=0
    _
  %s10 = ssub.s32 1, %s8
  %s11 = scalar_select 0, %s10, %s8
  // Predicated region
  $region2: #{predictor_forward.1} parent=0 // pred_check
    _
  $region3: #{predictor_forward.1} parent=0 // pred_check_branch
    %13 = sbr.rel (0) target = $region5
  $region4: #{predictor_forward.1} parent=0 // pred_region
    _
  $region5: #{predictor_forward.1} parent=0 // pred_fallthru
    _
  // Predicated region
  $region6: #{predictor_forward.1} parent=0 // pred_check
    _
  $region7: #{predictor_forward.1} parent=0 // pred_check_branch
    %15 = sbr.rel (0) target = $region9
  $region8: #{predictor_forward.1} parent=0 // pred_region
    _
  $region9: #{predictor_forward.1} parent=0 // pred_fallthru
    _
  // Predicated region
  $region10: #{predictor_forward.1} parent=0 // pred_check
    _
  $region11: #{predictor_forward.1} parent=0 // pred_check_branch
    %17 = sbr.rel (0) target = $region13
  $region12: #{predictor_forward.1} parent=0 // pred_region
    _
  $region13: #{predictor_forward.1} parent=0 // pred_fallthru
    _
  // Predicated region
  $region14: #{predictor_forward.1} parent=0 // pred_check
    _
  $region15: #{predictor_forward.1} parent=0 // pred_check_branch
    %19 = sbr.rel (0) target = $region17
  $region16: #{predictor_forward.1} parent=0 // pred_region
    _
  $region17: #{predictor_forward.1} parent=0 // pred_fallthru
    _
  // Predicated region
  $region18: #{predictor_forward.1} parent=0 // pred_check
    _
  $region19: #{predictor_forward.1} parent=0 // pred_check_branch
    %21 = sbr.rel (0) target = $region21
  $region20: #{predictor_forward.1} parent=0 // pred_region
    _
  $region21: #{predictor_forward.1} parent=0 // pred_fallthru
    _
  // Predicated region
  $region22: #{predictor_forward.1} parent=0 // pred_check
    _
  $region23: #{predictor_forward.1} parent=0 // pred_check_branch
    %23 = sbr.rel (0) target = $region25
  $region24: #{predictor_forward.1} parent=0 // pred_region
    _
  $region25: #{predictor_forward.1} parent=0 // pred_fallthru
    _
  // Predicated region
  $region26: #{predictor_forward.1} parent=0 // pred_check
    _
  $region27: #{predictor_forward.1} parent=0 // pred_check_branch
    %25 = sbr.rel (0) target = $region29
  $region28: #{predictor_forward.1} parent=0 // pred_region
    _
  $region29: #{predictor_forward.1} parent=0 // pred_fallthru
    _
  %v26 = vld [vmem:[%s1] sm:$0xff]
  %v27 = vld [vmem:[%s1 + $0x8] sm:$0xff]
  %v28 = vld [vmem:[%s1 + $0x10] sm:$0xff]
  %v29 = vld [vmem:[%s1 + $0x18] sm:$0xff]
  %v30 = vld [vmem:[%s1 + $0x20] sm:$0xff]
  %v31 = vld [vmem:[%s1 + $0x28] sm:$0xff]
  %v32 = vld [vmem:[%s1 + $0x30] sm:$0xff]
  %v33 = vld [vmem:[%s1 + $0x38] sm:$0xff]
  %v34 = vld [vmem:[%s1 + $0x40] sm:$0xff]
  %v35 = vld [vmem:[%s1 + $0x48] sm:$0xff]
  %v36 = vld [vmem:[%s1 + $0x50] sm:$0xff]
  %v37 = vld [vmem:[%s1 + $0x58] sm:$0xff]
  %v38 = vld [vmem:[%s1 + $0x60] sm:$0xff]
  %v39 = vld [vmem:[%s1 + $0x68] sm:$0xff]
  %v40 = vld [vmem:[%s1 + $0x70] sm:$0xff]
  %v41 = vld [vmem:[%s1 + $0x78] sm:$0xff]
  %v42 = vld [vmem:[%s0] sm:$0xff]
  %v43 = vld [vmem:[%s0 + $0x8] sm:$0xff]
  %v44 = vld [vmem:[%s0 + $0x10] sm:$0xff]
  %v45 = vld [vmem:[%s0 + $0x18] sm:$0xff]
  %v46 = vld [vmem:[%s0 + $0x20] sm:$0xff]
  %v47 = vld [vmem:[%s0 + $0x28] sm:$0xff]
  %v48 = vld [vmem:[%s0 + $0x30] sm:$0xff]
  %v49 = vld [vmem:[%s0 + $0x38] sm:$0xff]
  %v50 = vld [vmem:[%s0 + $0x40] sm:$0xff]
  %v51 = vld [vmem:[%s0 + $0x48] sm:$0xff]
  %v52 = vld [vmem:[%s0 + $0x50] sm:$0xff]
  %v53 = vld [vmem:[%s0 + $0x58] sm:$0xff]
  %v54 = vld [vmem:[%s0 + $0x60] sm:$0xff]
  %v55 = vld [vmem:[%s0 + $0x68] sm:$0xff]
  %v56 = vld [vmem:[%s0 + $0x70] sm:$0xff]
  %v57 = vld [vmem:[%s0 + $0x78] sm:$0xff]
  %v58 = vld [vmem:[%s2] sm:$0xff]
  %v59 = vld [vmem:[%s2 + $0x8] sm:$0xff]
  %v60 = vld [vmem:[%s2 + $0x10] sm:$0xff]
  %v61 = vld [vmem:[%s2 + $0x18] sm:$0xff]
  %v62 = vld [vmem:[%s2 + $0x20] sm:$0xff]
  %v63 = vld [vmem:[%s2 + $0x28] sm:$0xff]
  %v64 = vld [vmem:[%s2 + $0x30] sm:$0xff]
  %v65 = vld [vmem:[%s2 + $0x38] sm:$0xff]
  %v66 = vld [vmem:[%s2 + $0x40] sm:$0xff]
  %v67 = vld [vmem:[%s2 + $0x48] sm:$0xff]
  %v68 = vld [vmem:[%s2 + $0x50] sm:$0xff]
  %v69 = vld [vmem:[%s2 + $0x58] sm:$0xff]
  %v70 = vld [vmem:[%s2 + $0x60] sm:$0xff]
  %v71 = vld [vmem:[%s2 + $0x68] sm:$0xff]
  %v72 = vld [vmem:[%s2 + $0x70] sm:$0xff]
  %v73 = vld [vmem:[%s2 + $0x78] sm:$0xff]
  %74 = vmatprep.subr.mxu0 0.0
  %75 = vmatpush1.msra.mxu0 %v42
  %76 = vmatprep.subr.mxu0 0.0
  %77 = vmatpush1.msra.mxu0 %v43
  %78 = vmatprep.subr.mxu0 0.0
  %79 = vmatpush1.msra.mxu0 %v44
  %80 = vmatprep.subr.mxu0 0.0
  %81 = vmatpush1.msra.mxu0 %v45
  %82 = vmatprep.subr.mxu0 0.0
  %83 = vmatpush1.msra.mxu0 %v46
  %84 = vmatprep.subr.mxu0 0.0
  %85 = vmatpush1.msra.mxu0 %v47
  %86 = vmatprep.subr.mxu0 0.0
  %87 = vmatpush1.msra.mxu0 %v48
  %88 = vmatprep.subr.mxu0 0.0
  %89 = vmatpush1.msra.mxu0 %v49
  %90 = vmatprep.subr.mxu0 0.0
  %91 = vmatpush1.msra.mxu0 %v50
  %92 = vmatprep.subr.mxu0 0.0
  %93 = vmatpush1.msra.mxu0 %v51
  %94 = vmatprep.subr.mxu0 0.0
  %95 = vmatpush1.msra.mxu0 %v52
  %96 = vmatprep.subr.mxu0 0.0
  %97 = vmatpush1.msra.mxu0 %v53
  %98 = vmatprep.subr.mxu0 0.0
  %99 = vmatpush1.msra.mxu0 %v54
  %100 = vmatprep.subr.mxu0 0.0
  %101 = vmatpush1.msra.mxu0 %v55
  %102 = vmatprep.subr.mxu0 0.0
  %103 = vmatpush1.msra.mxu0 %v56
  %104 = vmatprep.subr.mxu0 0.0
  %105 = vmatpush1.msra.mxu0 %v57
  %106 = vmatprep.subr.mxu0 0.0
  %107 = vmatpush1.msra.mxu0 0.0
  %108 = vmatprep.subr.mxu0 0.0
  %109 = vmatpush1.msra.mxu0 0.0
  %110 = vmatprep.subr.mxu0 0.0
  %111 = vmatpush1.msra.mxu0 0.0
  %112 = vmatprep.subr.mxu0 0.0
  %113 = vmatpush1.msra.mxu0 0.0
  %114 = vmatprep.subr.mxu0 0.0
  %115 = vmatpush1.msra.mxu0 0.0
  %116 = vmatprep.subr.mxu0 0.0
  %117 = vmatpush1.msra.mxu0 0.0
  %118 = vmatprep.subr.mxu0 0.0
  %119 = vmatpush1.msra.mxu0 0.0
  %120 = vmatprep.subr.mxu0 0.0
  %121 = vmatpush1.msra.mxu0 0.0
  %122 = vmatprep.subr.mxu0 0.0
  %123 = vmatpush1.msra.mxu0 0.0
  %124 = vmatprep.subr.mxu0 0.0
  %125 = vmatpush1.msra.mxu0 0.0
  %126 = vmatprep.subr.mxu0 0.0
  %127 = vmatpush1.msra.mxu0 0.0
  %128 = vmatprep.subr.mxu0 0.0
  %129 = vmatpush1.msra.mxu0 0.0
  %130 = vmatprep.subr.mxu0 0.0
  %131 = vmatpush1.msra.mxu0 0.0
  %132 = vmatprep.subr.mxu0 0.0
  %133 = vmatpush1.msra.mxu0 0.0
  %134 = vmatprep.subr.mxu0 0.0
  %135 = vmatpush1.msra.mxu0 0.0
  %136 = vmatprep.subr.mxu0 0.0
  %137 = vmatpush1.msra.mxu0 0.0
  %138 = vmatprep.mubr.f32.mxu0 0.0
  %139 = vmatmul.mubr.f32.gmra.mrb[0].mxu0 %v26
  %v140 = vpop.f32.mrb[0].mxu0
  %v141 = vadd.f32 0.0, %v140
  %v142 = vpop.f32.mrb[0].mxu0
  %143 = vmatprep.mubr.f32.mxu0 0.0
  %144 = vmatmul.mubr.f32.gmra.mrb[0].mxu0 %v27
  %v145 = vpop.f32.mrb[0].mxu0
  %v146 = vadd.f32 0.0, %v145
  %v147 = vpop.f32.mrb[0].mxu0
  %148 = vmatprep.mubr.f32.mxu0 0.0
  %149 = vmatmul.mubr.f32.gmra.mrb[0].mxu0 %v28
  %v150 = vpop.f32.mrb[0].mxu0
  %v151 = vadd.f32 0.0, %v150
  %v152 = vpop.f32.mrb[0].mxu0
  %153 = vmatprep.mubr.f32.mxu0 0.0
  %154 = vmatmul.mubr.f32.gmra.mrb[0].mxu0 %v29
  %v155 = vpop.f32.mrb[0].mxu0
  %v156 = vadd.f32 0.0, %v155
  %v157 = vpop.f32.mrb[0].mxu0
  %158 = vmatprep.mubr.f32.mxu0 0.0
  %159 = vmatmul.mubr.f32.gmra.mrb[0].mxu0 %v30
  %v160 = vpop.f32.mrb[0].mxu0
  %v161 = vadd.f32 0.0, %v160
  %v162 = vpop.f32.mrb[0].mxu0
  %163 = vmatprep.mubr.f32.mxu0 0.0
  %164 = vmatmul.mubr.f32.gmra.mrb[0].mxu0 %v31
  %v165 = vpop.f32.mrb[0].mxu0
  %v166 = vadd.f32 0.0, %v165
  %v167 = vpop.f32.mrb[0].mxu0
  %168 = vmatprep.mubr.f32.mxu0 0.0
  %169 = vmatmul.mubr.f32.gmra.mrb[0].mxu0 %v32
  %v170 = vpop.f32.mrb[0].mxu0
  %v171 = vadd.f32 0.0, %v170
  %v172 = vpop.f32.mrb[0].mxu0
  %173 = vmatprep.mubr.f32.mxu0 0.0
  %174 = vmatmul.mubr.f32.gmra.mrb[0].mxu0 %v33
  %v175 = vpop.f32.mrb[0].mxu0
  %v176 = vadd.f32 0.0, %v175
  %v177 = vpop.f32.mrb[0].mxu0
  %178 = vmatprep.mubr.f32.mxu0 0.0
  %179 = vmatmul.mubr.f32.gmra.mrb[0].mxu0 %v34
  %v180 = vpop.f32.mrb[0].mxu0
  %v181 = vadd.f32 0.0, %v180
  %v182 = vpop.f32.mrb[0].mxu0
  %183 = vmatprep.mubr.f32.mxu0 0.0
  %184 = vmatmul.mubr.f32.gmra.mrb[0].mxu0 %v35
  %v185 = vpop.f32.mrb[0].mxu0
  %v186 = vadd.f32 0.0, %v185
  %v187 = vpop.f32.mrb[0].mxu0
  %188 = vmatprep.mubr.f32.mxu0 0.0
  %189 = vmatmul.mubr.f32.gmra.mrb[0].mxu0 %v36
  %v190 = vpop.f32.mrb[0].mxu0
  %v191 = vadd.f32 0.0, %v190
  %v192 = vpop.f32.mrb[0].mxu0
  %193 = vmatprep.mubr.f32.mxu0 0.0
  %194 = vmatmul.mubr.f32.gmra.mrb[0].mxu0 %v37
  %v195 = vpop.f32.mrb[0].mxu0
  %v196 = vadd.f32 0.0, %v195
  %v197 = vpop.f32.mrb[0].mxu0
  %198 = vmatprep.mubr.f32.mxu0 0.0
  %199 = vmatmul.mubr.f32.gmra.mrb[0].mxu0 %v38
  %v200 = vpop.f32.mrb[0].mxu0
  %v201 = vadd.f32 0.0, %v200
  %v202 = vpop.f32.mrb[0].mxu0
  %203 = vmatprep.mubr.f32.mxu0 0.0
  %204 = vmatmul.mubr.f32.gmra.mrb[0].mxu0 %v39
  %v205 = vpop.f32.mrb[0].mxu0
  %v206 = vadd.f32 0.0, %v205
  %v207 = vpop.f32.mrb[0].mxu0
  %208 = vmatprep.mubr.f32.mxu0 0.0
  %209 = vmatmul.mubr.f32.gmra.mrb[0].mxu0 %v40
  %v210 = vpop.f32.mrb[0].mxu0
  %v211 = vadd.f32 0.0, %v210
  %v212 = vpop.f32.mrb[0].mxu0
  %213 = vmatprep.mubr.f32.mxu0 0.0
  %214 = vmatmul.mubr.f32.gmra.mrb[0].mxu0 %v41
  %v215 = vpop.f32.mrb[0].mxu0
  %v216 = vadd.f32 0.0, %v215
  %v217 = vpop.f32.mrb[0].mxu0
  %218 = vdwg.mxu0
  %v219 = vld [vmem:[%s2 + $0x80] sm:$0xff]
  %v220 = vld [vmem:[%s2 + $0x88] sm:$0xff]
  %v221 = vld [vmem:[%s2 + $0x90] sm:$0xff]
  %v222 = vld [vmem:[%s2 + $0x98] sm:$0xff]
  %v223 = vld [vmem:[%s2 + $0xa0] sm:$0xff]
  %v224 = vld [vmem:[%s2 + $0xa8] sm:$0xff]
  %v225 = vld [vmem:[%s2 + $0xb0] sm:$0xff]
  %v226 = vld [vmem:[%s2 + $0xb8] sm:$0xff]
  %v227 = vld [vmem:[%s2 + $0xc0] sm:$0xff]
  %v228 = vld [vmem:[%s2 + $0xc8] sm:$0xff]
  %v229 = vld [vmem:[%s2 + $0xd0] sm:$0xff]
  %v230 = vld [vmem:[%s2 + $0xd8] sm:$0xff]
  %v231 = vld [vmem:[%s2 + $0xe0] sm:$0xff]
  %v232 = vld [vmem:[%s2 + $0xe8] sm:$0xff]
  %v233 = vld [vmem:[%s2 + $0xf0] sm:$0xff]
  %v234 = vld [vmem:[%s2 + $0xf8] sm:$0xff]
  %235 = vmatprep.subr.mxu0 0.0
  %236 = vmatpush1.msra.mxu0 %v219
  %237 = vmatprep.subr.mxu0 0.0
  %238 = vmatpush1.msra.mxu0 %v220
  %239 = vmatprep.subr.mxu0 0.0
  %240 = vmatpush1.msra.mxu0 %v221
  %241 = vmatprep.subr.mxu0 0.0
  %242 = vmatpush1.msra.mxu0 %v222
  %243 = vmatprep.subr.mxu0 0.0
  %244 = vmatpush1.msra.mxu0 %v223
  %245 = vmatprep.subr.mxu0 0.0
  %246 = vmatpush1.msra.mxu0 %v224
  %247 = vmatprep.subr.mxu0 0.0
  %248 = vmatpush1.msra.mxu0 %v225
  %249 = vmatprep.subr.mxu0 0.0
  %250 = vmatpush1.msra.mxu0 %v226
  %251 = vmatprep.subr.mxu0 0.0
  %252 = vmatpush1.msra.mxu0 %v227
  %253 = vmatprep.subr.mxu0 0.0
  %254 = vmatpush1.msra.mxu0 %v228
  %255 = vmatprep.subr.mxu0 0.0
  %256 = vmatpush1.msra.mxu0 %v229
  %257 = vmatprep.subr.mxu0 0.0
  %258 = vmatpush1.msra.mxu0 %v230
  %259 = vmatprep.subr.mxu0 0.0
  %260 = vmatpush1.msra.mxu0 %v231
  %261 = vmatprep.subr.mxu0 0.0
  %262 = vmatpush1.msra.mxu0 %v232
  %263 = vmatprep.subr.mxu0 0.0
  %264 = vmatpush1.msra.mxu0 %v233
  %265 = vmatprep.subr.mxu0 0.0
  %266 = vmatpush1.msra.mxu0 %v234
  %267 = vmatprep.subr.mxu0 0.0
  %268 = vmatpush1.msra.mxu0 0.0
  %269 = vmatprep.subr.mxu0 0.0
  %270 = vmatpush1.msra.mxu0 0.0
  %271 = vmatprep.subr.mxu0 0.0
  %272 = vmatpush1.msra.mxu0 0.0
  %273 = vmatprep.subr.mxu0 0.0
  %274 = vmatpush1.msra.mxu0 0.0
  %275 = vmatprep.subr.mxu0 0.0
  %276 = vmatpush1.msra.mxu0 0.0
  %277 = vmatprep.subr.mxu0 0.0
  %278 = vmatpush1.msra.mxu0 0.0
  %279 = vmatprep.subr.mxu0 0.0
  %280 = vmatpush1.msra.mxu0 0.0
  %281 = vmatprep.subr.mxu0 0.0
  %282 = vmatpush1.msra.mxu0 0.0
  %283 = vmatprep.subr.mxu0 0.0
  %284 = vmatpush1.msra.mxu0 0.0
  %285 = vmatprep.subr.mxu0 0.0
  %286 = vmatpush1.msra.mxu0 0.0
  %287 = vmatprep.subr.mxu0 0.0
  %288 = vmatpush1.msra.mxu0 0.0
  %289 = vmatprep.subr.mxu0 0.0
  %290 = vmatpush1.msra.mxu0 0.0
  %291 = vmatprep.subr.mxu0 0.0
  %292 = vmatpush1.msra.mxu0 0.0
  %293 = vmatprep.subr.mxu0 0.0
  %294 = vmatpush1.msra.mxu0 0.0
  %295 = vmatprep.subr.mxu0 0.0
  %296 = vmatpush1.msra.mxu0 0.0
  %297 = vmatprep.subr.mxu0 0.0
  %298 = vmatpush1.msra.mxu0 0.0
  %299 = vmatprep.mubr.f32.mxu0 0.0
  %300 = vmatmul.mubr.f32.gmra.mrb[0].mxu0 %v141
  %v301 = vpop.f32.mrb[0].mxu0
  %v302 = vadd.f32 0.0, %v301
  %v303 = vpop.f32.mrb[0].mxu0
  %304 = vmatprep.mubr.f32.mxu0 0.0
  %305 = vmatmul.mubr.f32.gmra.mrb[0].mxu0 %v146
  %v306 = vpop.f32.mrb[0].mxu0
  %v307 = vadd.f32 0.0, %v306
  %v308 = vpop.f32.mrb[0].mxu0
  %309 = vmatprep.mubr.f32.mxu0 0.0
  %310 = vmatmul.mubr.f32.gmra.mrb[0].mxu0 %v151
  %v311 = vpop.f32.mrb[0].mxu0
  %v312 = vadd.f32 0.0, %v311
  %v313 = vpop.f32.mrb[0].mxu0
  %314 = vmatprep.mubr.f32.mxu0 0.0
  %315 = vmatmul.mubr.f32.gmra.mrb[0].mxu0 %v156
  %v316 = vpop.f32.mrb[0].mxu0
  %v317 = vadd.f32 0.0, %v316
  %v318 = vpop.f32.mrb[0].mxu0
  %319 = vmatprep.mubr.f32.mxu0 0.0
  %320 = vmatmul.mubr.f32.gmra.mrb[0].mxu0 %v161
  %v321 = vpop.f32.mrb[0].mxu0
  %v322 = vadd.f32 0.0, %v321
  %v323 = vpop.f32.mrb[0].mxu0
  %324 = vmatprep.mubr.f32.mxu0 0.0
  %325 = vmatmul.mubr.f32.gmra.mrb[0].mxu0 %v166
  %v326 = vpop.f32.mrb[0].mxu0
  %v327 = vadd.f32 0.0, %v326
  %v328 = vpop.f32.mrb[0].mxu0
  %329 = vmatprep.mubr.f32.mxu0 0.0
  %330 = vmatmul.mubr.f32.gmra.mrb[0].mxu0 %v171
  %v331 = vpop.f32.mrb[0].mxu0
  %v332 = vadd.f32 0.0, %v331
  %v333 = vpop.f32.mrb[0].mxu0
  %334 = vmatprep.mubr.f32.mxu0 0.0
  %335 = vmatmul.mubr.f32.gmra.mrb[0].mxu0 %v176
  %v336 = vpop.f32.mrb[0].mxu0
  %v337 = vadd.f32 0.0, %v336
  %v338 = vpop.f32.mrb[0].mxu0
  %339 = vmatprep.mubr.f32.mxu0 0.0
  %340 = vmatmul.mubr.f32.gmra.mrb[0].mxu0 %v181
  %v341 = vpop.f32.mrb[0].mxu0
  %v342 = vadd.f32 0.0, %v341
  %v343 = vpop.f32.mrb[0].mxu0
  %344 = vmatprep.mubr.f32.mxu0 0.0
  %345 = vmatmul.mubr.f32.gmra.mrb[0].mxu0 %v186
  %v346 = vpop.f32.mrb[0].mxu0
  %v347 = vadd.f32 0.0, %v346
  %v348 = vpop.f32.mrb[0].mxu0
  %349 = vmatprep.mubr.f32.mxu0 0.0
  %350 = vmatmul.mubr.f32.gmra.mrb[0].mxu0 %v191
  %v351 = vpop.f32.mrb[0].mxu0
  %v352 = vadd.f32 0.0, %v351
  %v353 = vpop.f32.mrb[0].mxu0
  %354 = vmatprep.mubr.f32.mxu0 0.0
  %355 = vmatmul.mubr.f32.gmra.mrb[0].mxu0 %v196
  %v356 = vpop.f32.mrb[0].mxu0
  %v357 = vadd.f32 0.0, %v356
  %v358 = vpop.f32.mrb[0].mxu0
  %359 = vmatprep.mubr.f32.mxu0 0.0
  %360 = vmatmul.mubr.f32.gmra.mrb[0].mxu0 %v201
  %v361 = vpop.f32.mrb[0].mxu0
  %v362 = vadd.f32 0.0, %v361
  %v363 = vpop.f32.mrb[0].mxu0
  %364 = vmatprep.mubr.f32.mxu0 0.0
  %365 = vmatmul.mubr.f32.gmra.mrb[0].mxu0 %v206
  %v366 = vpop.f32.mrb[0].mxu0
  %v367 = vadd.f32 0.0, %v366
  %v368 = vpop.f32.mrb[0].mxu0
  %369 = vmatprep.mubr.f32.mxu0 0.0
  %370 = vmatmul.mubr.f32.gmra.mrb[0].mxu0 %v211
  %v371 = vpop.f32.mrb[0].mxu0
  %v372 = vadd.f32 0.0, %v371
  %v373 = vpop.f32.mrb[0].mxu0
  %374 = vmatprep.mubr.f32.mxu0 0.0
  %375 = vmatmul.mubr.f32.gmra.mrb[0].mxu0 %v216
  %v376 = vpop.f32.mrb[0].mxu0
  %v377 = vadd.f32 0.0, %v376
  %v378 = vpop.f32.mrb[0].mxu0
  %379 = vdwg.mxu0
  %380 = vmatprep.subr.mxu0 0.0
  %381 = vmatpush1.msra.mxu0 %v58
  %382 = vmatprep.subr.mxu0 0.0
  %383 = vmatpush1.msra.mxu0 %v59
  %384 = vmatprep.subr.mxu0 0.0
  %385 = vmatpush1.msra.mxu0 %v60
  %386 = vmatprep.subr.mxu0 0.0
  %387 = vmatpush1.msra.mxu0 %v61
  %388 = vmatprep.subr.mxu0 0.0
  %389 = vmatpush1.msra.mxu0 %v62
  %390 = vmatprep.subr.mxu0 0.0
  %391 = vmatpush1.msra.mxu0 %v63
  %392 = vmatprep.subr.mxu0 0.0
  %393 = vmatpush1.msra.mxu0 %v64
  %394 = vmatprep.subr.mxu0 0.0
  %395 = vmatpush1.msra.mxu0 %v65
  %396 = vmatprep.subr.mxu0 0.0
  %397 = vmatpush1.msra.mxu0 %v66
  %398 = vmatprep.subr.mxu0 0.0
  %399 = vmatpush1.msra.mxu0 %v67
  %400 = vmatprep.subr.mxu0 0.0
  %401 = vmatpush1.msra.mxu0 %v68
  %402 = vmatprep.subr.mxu0 0.0
  %403 = vmatpush1.msra.mxu0 %v69
  %404 = vmatprep.subr.mxu0 0.0
  %405 = vmatpush1.msra.mxu0 %v70
  %406 = vmatprep.subr.mxu0 0.0
  %407 = vmatpush1.msra.mxu0 %v71
  %408 = vmatprep.subr.mxu0 0.0
  %409 = vmatpush1.msra.mxu0 %v72
  %410 = vmatprep.subr.mxu0 0.0
  %411 = vmatpush1.msra.mxu0 %v73
  %412 = vmatprep.subr.mxu0 0.0
  %413 = vmatpush1.msra.mxu0 0.0
  %414 = vmatprep.subr.mxu0 0.0
  %415 = vmatpush1.msra.mxu0 0.0
  %416 = vmatprep.subr.mxu0 0.0
  %417 = vmatpush1.msra.mxu0 0.0
  %418 = vmatprep.subr.mxu0 0.0
  %419 = vmatpush1.msra.mxu0 0.0
  %420 = vmatprep.subr.mxu0 0.0
  %421 = vmatpush1.msra.mxu0 0.0
  %422 = vmatprep.subr.mxu0 0.0
  %423 = vmatpush1.msra.mxu0 0.0
  %424 = vmatprep.subr.mxu0 0.0
  %425 = vmatpush1.msra.mxu0 0.0
  %426 = vmatprep.subr.mxu0 0.0
  %427 = vmatpush1.msra.mxu0 0.0
  %428 = vmatprep.subr.mxu0 0.0
  %429 = vmatpush1.msra.mxu0 0.0
  %430 = vmatprep.subr.mxu0 0.0
  %431 = vmatpush1.msra.mxu0 0.0
  %432 = vmatprep.subr.mxu0 0.0
  %433 = vmatpush1.msra.mxu0 0.0
  %434 = vmatprep.subr.mxu0 0.0
  %435 = vmatpush1.msra.mxu0 0.0
  %436 = vmatprep.subr.mxu0 0.0
  %437 = vmatpush1.msra.mxu0 0.0
  %438 = vmatprep.subr.mxu0 0.0
  %439 = vmatpush1.msra.mxu0 0.0
  %440 = vmatprep.subr.mxu0 0.0
  %441 = vmatpush1.msra.mxu0 0.0
  %442 = vmatprep.subr.mxu0 0.0
  %443 = vmatpush1.msra.mxu0 0.0
  %444 = vmatprep.mubr.f32.mxu0 0.0
  %445 = vmatmul.mubr.f32.gmra.mrb[0].mxu0 %v42
  %v446 = vpop.f32.mrb[0].mxu0
  %v447 = vadd.f32 %v302, %v446
  %v448 = vpop.f32.mrb[0].mxu0
  %449 = vmatprep.mubr.f32.mxu0 0.0
  %450 = vmatmul.mubr.f32.gmra.mrb[0].mxu0 %v43
  %v451 = vpop.f32.mrb[0].mxu0
  %v452 = vadd.f32 %v307, %v451
  %v453 = vpop.f32.mrb[0].mxu0
  %454 = vmatprep.mubr.f32.mxu0 0.0
  %455 = vmatmul.mubr.f32.gmra.mrb[0].mxu0 %v44
  %v456 = vpop.f32.mrb[0].mxu0
  %v457 = vadd.f32 %v312, %v456
  %v458 = vpop.f32.mrb[0].mxu0
  %459 = vmatprep.mubr.f32.mxu0 0.0
  %460 = vmatmul.mubr.f32.gmra.mrb[0].mxu0 %v45
  %v461 = vpop.f32.mrb[0].mxu0
  %v462 = vadd.f32 %v317, %v461
  %v463 = vpop.f32.mrb[0].mxu0
  %464 = vmatprep.mubr.f32.mxu0 0.0
  %465 = vmatmul.mubr.f32.gmra.mrb[0].mxu0 %v46
  %v466 = vpop.f32.mrb[0].mxu0
  %v467 = vadd.f32 %v322, %v466
  %v468 = vpop.f32.mrb[0].mxu0
  %469 = vmatprep.mubr.f32.mxu0 0.0
  %470 = vmatmul.mubr.f32.gmra.mrb[0].mxu0 %v47
  %v471 = vpop.f32.mrb[0].mxu0
  %v472 = vadd.f32 %v327, %v471
  %v473 = vpop.f32.mrb[0].mxu0
  %474 = vmatprep.mubr.f32.mxu0 0.0
  %475 = vmatmul.mubr.f32.gmra.mrb[0].mxu0 %v48
  %v476 = vpop.f32.mrb[0].mxu0
  %v477 = vadd.f32 %v332, %v476
  %v478 = vpop.f32.mrb[0].mxu0
  %479 = vmatprep.mubr.f32.mxu0 0.0
  %480 = vmatmul.mubr.f32.gmra.mrb[0].mxu0 %v49
  %v481 = vpop.f32.mrb[0].mxu0
  %v482 = vadd.f32 %v337, %v481
  %v483 = vpop.f32.mrb[0].mxu0
  %484 = vmatprep.mubr.f32.mxu0 0.0
  %485 = vmatmul.mubr.f32.gmra.mrb[0].mxu0 %v50
  %v486 = vpop.f32.mrb[0].mxu0
  %v487 = vadd.f32 %v342, %v486
  %v488 = vpop.f32.mrb[0].mxu0
  %489 = vmatprep.mubr.f32.mxu0 0.0
  %490 = vmatmul.mubr.f32.gmra.mrb[0].mxu0 %v51
  %v491 = vpop.f32.mrb[0].mxu0
  %v492 = vadd.f32 %v347, %v491
  %v493 = vpop.f32.mrb[0].mxu0
  %494 = vmatprep.mubr.f32.mxu0 0.0
  %495 = vmatmul.mubr.f32.gmra.mrb[0].mxu0 %v52
  %v496 = vpop.f32.mrb[0].mxu0
  %v497 = vadd.f32 %v352, %v496
  %v498 = vpop.f32.mrb[0].mxu0
  %499 = vmatprep.mubr.f32.mxu0 0.0
  %500 = vmatmul.mubr.f32.gmra.mrb[0].mxu0 %v53
  %v501 = vpop.f32.mrb[0].mxu0
  %v502 = vadd.f32 %v357, %v501
  %v503 = vpop.f32.mrb[0].mxu0
  %504 = vmatprep.mubr.f32.mxu0 0.0
  %505 = vmatmul.mubr.f32.gmra.mrb[0].mxu0 %v54
  %v506 = vpop.f32.mrb[0].mxu0
  %v507 = vadd.f32 %v362, %v506
  %v508 = vpop.f32.mrb[0].mxu0
  %509 = vmatprep.mubr.f32.mxu0 0.0
  %510 = vmatmul.mubr.f32.gmra.mrb[0].mxu0 %v55
  %v511 = vpop.f32.mrb[0].mxu0
  %v512 = vadd.f32 %v367, %v511
  %v513 = vpop.f32.mrb[0].mxu0
  %514 = vmatprep.mubr.f32.mxu0 0.0
  %515 = vmatmul.mubr.f32.gmra.mrb[0].mxu0 %v56
  %v516 = vpop.f32.mrb[0].mxu0
  %v517 = vadd.f32 %v372, %v516
  %v518 = vpop.f32.mrb[0].mxu0
  %519 = vmatprep.mubr.f32.mxu0 0.0
  %520 = vmatmul.mubr.f32.gmra.mrb[0].mxu0 %v57
  %v521 = vpop.f32.mrb[0].mxu0
  %v522 = vadd.f32 %v377, %v521
  %v523 = vpop.f32.mrb[0].mxu0
  %524 = vdwg.mxu0
  %525 = vmatprep.subr.mxu0 0.0
  %526 = vmatpush1.msra.mxu0 %v141
  %527 = vmatprep.subr.mxu0 0.0
  %528 = vmatpush1.msra.mxu0 %v146
  %529 = vmatprep.subr.mxu0 0.0
  %530 = vmatpush1.msra.mxu0 %v151
  %531 = vmatprep.subr.mxu0 0.0
  %532 = vmatpush1.msra.mxu0 %v156
  %533 = vmatprep.subr.mxu0 0.0
  %534 = vmatpush1.msra.mxu0 %v161
  %535 = vmatprep.subr.mxu0 0.0
  %536 = vmatpush1.msra.mxu0 %v166
  %537 = vmatprep.subr.mxu0 0.0
  %538 = vmatpush1.msra.mxu0 %v171
  %539 = vmatprep.subr.mxu0 0.0
  %540 = vmatpush1.msra.mxu0 %v176
  %541 = vmatprep.subr.mxu0 0.0
  %542 = vmatpush1.msra.mxu0 %v181
  %543 = vmatprep.subr.mxu0 0.0
  %544 = vmatpush1.msra.mxu0 %v186
  %545 = vmatprep.subr.mxu0 0.0
  %546 = vmatpush1.msra.mxu0 %v191
  %547 = vmatprep.subr.mxu0 0.0
  %548 = vmatpush1.msra.mxu0 %v196
  %549 = vmatprep.subr.mxu0 0.0
  %550 = vmatpush1.msra.mxu0 %v201
  %551 = vmatprep.subr.mxu0 0.0
  %552 = vmatpush1.msra.mxu0 %v206
  %553 = vmatprep.subr.mxu0 0.0
  %554 = vmatpush1.msra.mxu0 %v211
  %555 = vmatprep.subr.mxu0 0.0
  %556 = vmatpush1.msra.mxu0 %v216
  %557 = vmatprep.subr.mxu0 0.0
  %558 = vmatpush1.msra.mxu0 0.0
  %559 = vmatprep.subr.mxu0 0.0
  %560 = vmatpush1.msra.mxu0 0.0
  %561 = vmatprep.subr.mxu0 0.0
  %562 = vmatpush1.msra.mxu0 0.0
  %563 = vmatprep.subr.mxu0 0.0
  %564 = vmatpush1.msra.mxu0 0.0
  %565 = vmatprep.subr.mxu0 0.0
  %566 = vmatpush1.msra.mxu0 0.0
  %567 = vmatprep.subr.mxu0 0.0
  %568 = vmatpush1.msra.mxu0 0.0
  %569 = vmatprep.subr.mxu0 0.0
  %570 = vmatpush1.msra.mxu0 0.0
  %571 = vmatprep.subr.mxu0 0.0
  %572 = vmatpush1.msra.mxu0 0.0
  %573 = vmatprep.subr.mxu0 0.0
  %574 = vmatpush1.msra.mxu0 0.0
  %575 = vmatprep.subr.mxu0 0.0
  %576 = vmatpush1.msra.mxu0 0.0
  %577 = vmatprep.subr.mxu0 0.0
  %578 = vmatpush1.msra.mxu0 0.0
  %579 = vmatprep.subr.mxu0 0.0
  %580 = vmatpush1.msra.mxu0 0.0
  %581 = vmatprep.subr.mxu0 0.0
  %582 = vmatpush1.msra.mxu0 0.0
  %583 = vmatprep.subr.mxu0 0.0
  %584 = vmatpush1.msra.mxu0 0.0
  %585 = vmatprep.subr.mxu0 0.0
  %586 = vmatpush1.msra.mxu0 0.0
  %587 = vmatprep.subr.mxu0 0.0
  %588 = vmatpush1.msra.mxu0 0.0
  %589 = vmatprep.mubr.f32.mxu0 0.0
  %590 = vmatmul.mubr.f32.gmra.mrb[0].mxu0 %v26
  %v591 = vpop.f32.mrb[0].mxu0
  %v592 = vadd.f32 0.0, %v591
  %v593 = vpop.f32.mrb[0].mxu0
  %594 = vmatprep.mubr.f32.mxu0 0.0
  %595 = vmatmul.mubr.f32.gmra.mrb[0].mxu0 %v27
  %v596 = vpop.f32.mrb[0].mxu0
  %v597 = vadd.f32 0.0, %v596
  %v598 = vpop.f32.mrb[0].mxu0
  %599 = vmatprep.mubr.f32.mxu0 0.0
  %600 = vmatmul.mubr.f32.gmra.mrb[0].mxu0 %v28
  %v601 = vpop.f32.mrb[0].mxu0
  %v602 = vadd.f32 0.0, %v601
  %v603 = vpop.f32.mrb[0].mxu0
  %604 = vmatprep.mubr.f32.mxu0 0.0
  %605 = vmatmul.mubr.f32.gmra.mrb[0].mxu0 %v29
  %v606 = vpop.f32.mrb[0].mxu0
  %v607 = vadd.f32 0.0, %v606
  %v608 = vpop.f32.mrb[0].mxu0
  %609 = vmatprep.mubr.f32.mxu0 0.0
  %610 = vmatmul.mubr.f32.gmra.mrb[0].mxu0 %v30
  %v611 = vpop.f32.mrb[0].mxu0
  %v612 = vadd.f32 0.0, %v611
  %v613 = vpop.f32.mrb[0].mxu0
  %614 = vmatprep.mubr.f32.mxu0 0.0
  %615 = vmatmul.mubr.f32.gmra.mrb[0].mxu0 %v31
  %v616 = vpop.f32.mrb[0].mxu0
  %v617 = vadd.f32 0.0, %v616
  %v618 = vpop.f32.mrb[0].mxu0
  %619 = vmatprep.mubr.f32.mxu0 0.0
  %620 = vmatmul.mubr.f32.gmra.mrb[0].mxu0 %v32
  %v621 = vpop.f32.mrb[0].mxu0
  %v622 = vadd.f32 0.0, %v621
  %v623 = vpop.f32.mrb[0].mxu0
  %624 = vmatprep.mubr.f32.mxu0 0.0
  %625 = vmatmul.mubr.f32.gmra.mrb[0].mxu0 %v33
  %v626 = vpop.f32.mrb[0].mxu0
  %v627 = vadd.f32 0.0, %v626
  %v628 = vpop.f32.mrb[0].mxu0
  %629 = vmatprep.mubr.f32.mxu0 0.0
  %630 = vmatmul.mubr.f32.gmra.mrb[0].mxu0 %v34
  %v631 = vpop.f32.mrb[0].mxu0
  %v632 = vadd.f32 0.0, %v631
  %v633 = vpop.f32.mrb[0].mxu0
  %634 = vmatprep.mubr.f32.mxu0 0.0
  %635 = vmatmul.mubr.f32.gmra.mrb[0].mxu0 %v35
  %v636 = vpop.f32.mrb[0].mxu0
  %v637 = vadd.f32 0.0, %v636
  %v638 = vpop.f32.mrb[0].mxu0
  %639 = vmatprep.mubr.f32.mxu0 0.0
  %640 = vmatmul.mubr.f32.gmra.mrb[0].mxu0 %v36
  %v641 = vpop.f32.mrb[0].mxu0
  %v642 = vadd.f32 0.0, %v641
  %v643 = vpop.f32.mrb[0].mxu0
  %644 = vmatprep.mubr.f32.mxu0 0.0
  %645 = vmatmul.mubr.f32.gmra.mrb[0].mxu0 %v37
  %v646 = vpop.f32.mrb[0].mxu0
  %v647 = vadd.f32 0.0, %v646
  %v648 = vpop.f32.mrb[0].mxu0
  %649 = vmatprep.mubr.f32.mxu0 0.0
  %650 = vmatmul.mubr.f32.gmra.mrb[0].mxu0 %v38
  %v651 = vpop.f32.mrb[0].mxu0
  %v652 = vadd.f32 0.0, %v651
  %v653 = vpop.f32.mrb[0].mxu0
  %654 = vmatprep.mubr.f32.mxu0 0.0
  %655 = vmatmul.mubr.f32.gmra.mrb[0].mxu0 %v39
  %v656 = vpop.f32.mrb[0].mxu0
  %v657 = vadd.f32 0.0, %v656
  %v658 = vpop.f32.mrb[0].mxu0
  %659 = vmatprep.mubr.f32.mxu0 0.0
  %660 = vmatmul.mubr.f32.gmra.mrb[0].mxu0 %v40
  %v661 = vpop.f32.mrb[0].mxu0
  %v662 = vadd.f32 0.0, %v661
  %v663 = vpop.f32.mrb[0].mxu0
  %664 = vmatprep.mubr.f32.mxu0 0.0
  %665 = vmatmul.mubr.f32.gmra.mrb[0].mxu0 %v41
  %v666 = vpop.f32.mrb[0].mxu0
  %v667 = vadd.f32 0.0, %v666
  %v668 = vpop.f32.mrb[0].mxu0
  %669 = vdwg.mxu0
  %v670 = vmul.f32 %v592, 2.0
  %v671 = vmul.f32 %v597, 2.0
  %v672 = vmul.f32 %v602, 2.0
  %v673 = vmul.f32 %v607, 2.0
  %v674 = vmul.f32 %v612, 2.0
  %v675 = vmul.f32 %v617, 2.0
  %v676 = vmul.f32 %v622, 2.0
  %v677 = vmul.f32 %v627, 2.0
  %v678 = vmul.f32 %v632, 2.0
  %v679 = vmul.f32 %v637, 2.0
  %v680 = vmul.f32 %v642, 2.0
  %v681 = vmul.f32 %v647, 2.0
  %v682 = vmul.f32 %v652, 2.0
  %v683 = vmul.f32 %v657, 2.0
  %v684 = vmul.f32 %v662, 2.0
  %v685 = vmul.f32 %v667, 2.0
  %v686 = vsub.f32 %v670, %v42
  %v687 = vsub.f32 %v671, %v43
  %v688 = vsub.f32 %v672, %v44
  %v689 = vsub.f32 %v673, %v45
  %v690 = vsub.f32 %v674, %v46
  %v691 = vsub.f32 %v675, %v47
  %v692 = vsub.f32 %v676, %v48
  %v693 = vsub.f32 %v677, %v49
  %v694 = vsub.f32 %v678, %v50
  %v695 = vsub.f32 %v679, %v51
  %v696 = vsub.f32 %v680, %v52
  %v697 = vsub.f32 %v681, %v53
  %v698 = vsub.f32 %v682, %v54
  %v699 = vsub.f32 %v683, %v55
  %v700 = vsub.f32 %v684, %v56
  %v701 = vsub.f32 %v685, %v57
  %v702 = vld [vmem:[%s2 + $0x100] sm:$0xff]
  %v703 = vld [vmem:[%s2 + $0x108] sm:$0xff]
  %v704 = vld [vmem:[%s2 + $0x110] sm:$0xff]
  %v705 = vld [vmem:[%s2 + $0x118] sm:$0xff]
  %v706 = vld [vmem:[%s2 + $0x120] sm:$0xff]
  %v707 = vld [vmem:[%s2 + $0x128] sm:$0xff]
  %v708 = vld [vmem:[%s2 + $0x130] sm:$0xff]
  %v709 = vld [vmem:[%s2 + $0x138] sm:$0xff]
  %v710 = vld [vmem:[%s2 + $0x140] sm:$0xff]
  %v711 = vld [vmem:[%s2 + $0x148] sm:$0xff]
  %v712 = vld [vmem:[%s2 + $0x150] sm:$0xff]
  %v713 = vld [vmem:[%s2 + $0x158] sm:$0xff]
  %v714 = vld [vmem:[%s2 + $0x160] sm:$0xff]
  %v715 = vld [vmem:[%s2 + $0x168] sm:$0xff]
  %v716 = vld [vmem:[%s2 + $0x170] sm:$0xff]
  %v717 = vld [vmem:[%s2 + $0x178] sm:$0xff]
  %718 = vmatprep.subr.mxu0 0.0
  %719 = vmatpush1.msra.mxu0 %v702
  %720 = vmatprep.subr.mxu0 0.0
  %721 = vmatpush1.msra.mxu0 %v703
  %722 = vmatprep.subr.mxu0 0.0
  %723 = vmatpush1.msra.mxu0 %v704
  %724 = vmatprep.subr.mxu0 0.0
  %725 = vmatpush1.msra.mxu0 %v705
  %726 = vmatprep.subr.mxu0 0.0
  %727 = vmatpush1.msra.mxu0 %v706
  %728 = vmatprep.subr.mxu0 0.0
  %729 = vmatpush1.msra.mxu0 %v707
  %730 = vmatprep.subr.mxu0 0.0
  %731 = vmatpush1.msra.mxu0 %v708
  %732 = vmatprep.subr.mxu0 0.0
  %733 = vmatpush1.msra.mxu0 %v709
  %734 = vmatprep.subr.mxu0 0.0
  %735 = vmatpush1.msra.mxu0 %v710
  %736 = vmatprep.subr.mxu0 0.0
  %737 = vmatpush1.msra.mxu0 %v711
  %738 = vmatprep.subr.mxu0 0.0
  %739 = vmatpush1.msra.mxu0 %v712
  %740 = vmatprep.subr.mxu0 0.0
  %741 = vmatpush1.msra.mxu0 %v713
  %742 = vmatprep.subr.mxu0 0.0
  %743 = vmatpush1.msra.mxu0 %v714
  %744 = vmatprep.subr.mxu0 0.0
  %745 = vmatpush1.msra.mxu0 %v715
  %746 = vmatprep.subr.mxu0 0.0
  %747 = vmatpush1.msra.mxu0 %v716
  %748 = vmatprep.subr.mxu0 0.0
  %749 = vmatpush1.msra.mxu0 %v717
  %750 = vmatprep.subr.mxu0 0.0
  %751 = vmatpush1.msra.mxu0 0.0
  %752 = vmatprep.subr.mxu0 0.0
  %753 = vmatpush1.msra.mxu0 0.0
  %754 = vmatprep.subr.mxu0 0.0
  %755 = vmatpush1.msra.mxu0 0.0
  %756 = vmatprep.subr.mxu0 0.0
  %757 = vmatpush1.msra.mxu0 0.0
  %758 = vmatprep.subr.mxu0 0.0
  %759 = vmatpush1.msra.mxu0 0.0
  %760 = vmatprep.subr.mxu0 0.0
  %761 = vmatpush1.msra.mxu0 0.0
  %762 = vmatprep.subr.mxu0 0.0
  %763 = vmatpush1.msra.mxu0 0.0
  %764 = vmatprep.subr.mxu0 0.0
  %765 = vmatpush1.msra.mxu0 0.0
  %766 = vmatprep.subr.mxu0 0.0
  %767 = vmatpush1.msra.mxu0 0.0
  %768 = vmatprep.subr.mxu0 0.0
  %769 = vmatpush1.msra.mxu0 0.0
  %770 = vmatprep.subr.mxu0 0.0
  %771 = vmatpush1.msra.mxu0 0.0
  %772 = vmatprep.subr.mxu0 0.0
  %773 = vmatpush1.msra.mxu0 0.0
  %774 = vmatprep.subr.mxu0 0.0
  %775 = vmatpush1.msra.mxu0 0.0
  %776 = vmatprep.subr.mxu0 0.0
  %777 = vmatpush1.msra.mxu0 0.0
  %778 = vmatprep.subr.mxu0 0.0
  %779 = vmatpush1.msra.mxu0 0.0
  %780 = vmatprep.subr.mxu0 0.0
  %781 = vmatpush1.msra.mxu0 0.0
  %782 = vmatprep.mubr.f32.mxu0 0.0
  %783 = vmatmul.mubr.f32.gmra.mrb[0].mxu0 %v686
  %v784 = vpop.f32.mrb[0].mxu0
  %v785 = vadd.f32 0.0, %v784
  %v786 = vpop.f32.mrb[0].mxu0
  %787 = vmatprep.mubr.f32.mxu0 0.0
  %788 = vmatmul.mubr.f32.gmra.mrb[0].mxu0 %v687
  %v789 = vpop.f32.mrb[0].mxu0
  %v790 = vadd.f32 0.0, %v789
  %v791 = vpop.f32.mrb[0].mxu0
  %792 = vmatprep.mubr.f32.mxu0 0.0
  %793 = vmatmul.mubr.f32.gmra.mrb[0].mxu0 %v688
  %v794 = vpop.f32.mrb[0].mxu0
  %v795 = vadd.f32 0.0, %v794
  %v796 = vpop.f32.mrb[0].mxu0
  %797 = vmatprep.mubr.f32.mxu0 0.0
  %798 = vmatmul.mubr.f32.gmra.mrb[0].mxu0 %v689
  %v799 = vpop.f32.mrb[0].mxu0
  %v800 = vadd.f32 0.0, %v799
  %v801 = vpop.f32.mrb[0].mxu0
  %802 = vmatprep.mubr.f32.mxu0 0.0
  %803 = vmatmul.mubr.f32.gmra.mrb[0].mxu0 %v690
  %v804 = vpop.f32.mrb[0].mxu0
  %v805 = vadd.f32 0.0, %v804
  %v806 = vpop.f32.mrb[0].mxu0
  %807 = vmatprep.mubr.f32.mxu0 0.0
  %808 = vmatmul.mubr.f32.gmra.mrb[0].mxu0 %v691
  %v809 = vpop.f32.mrb[0].mxu0
  %v810 = vadd.f32 0.0, %v809
  %v811 = vpop.f32.mrb[0].mxu0
  %812 = vmatprep.mubr.f32.mxu0 0.0
  %813 = vmatmul.mubr.f32.gmra.mrb[0].mxu0 %v692
  %v814 = vpop.f32.mrb[0].mxu0
  %v815 = vadd.f32 0.0, %v814
  %v816 = vpop.f32.mrb[0].mxu0
  %817 = vmatprep.mubr.f32.mxu0 0.0
  %818 = vmatmul.mubr.f32.gmra.mrb[0].mxu0 %v693
  %v819 = vpop.f32.mrb[0].mxu0
  %v820 = vadd.f32 0.0, %v819
  %v821 = vpop.f32.mrb[0].mxu0
  %822 = vmatprep.mubr.f32.mxu0 0.0
  %823 = vmatmul.mubr.f32.gmra.mrb[0].mxu0 %v694
  %v824 = vpop.f32.mrb[0].mxu0
  %v825 = vadd.f32 0.0, %v824
  %v826 = vpop.f32.mrb[0].mxu0
  %827 = vmatprep.mubr.f32.mxu0 0.0
  %828 = vmatmul.mubr.f32.gmra.mrb[0].mxu0 %v695
  %v829 = vpop.f32.mrb[0].mxu0
  %v830 = vadd.f32 0.0, %v829
  %v831 = vpop.f32.mrb[0].mxu0
  %832 = vmatprep.mubr.f32.mxu0 0.0
  %833 = vmatmul.mubr.f32.gmra.mrb[0].mxu0 %v696
  %v834 = vpop.f32.mrb[0].mxu0
  %v835 = vadd.f32 0.0, %v834
  %v836 = vpop.f32.mrb[0].mxu0
  %837 = vmatprep.mubr.f32.mxu0 0.0
  %838 = vmatmul.mubr.f32.gmra.mrb[0].mxu0 %v697
  %v839 = vpop.f32.mrb[0].mxu0
  %v840 = vadd.f32 0.0, %v839
  %v841 = vpop.f32.mrb[0].mxu0
  %842 = vmatprep.mubr.f32.mxu0 0.0
  %843 = vmatmul.mubr.f32.gmra.mrb[0].mxu0 %v698
  %v844 = vpop.f32.mrb[0].mxu0
  %v845 = vadd.f32 0.0, %v844
  %v846 = vpop.f32.mrb[0].mxu0
  %847 = vmatprep.mubr.f32.mxu0 0.0
  %848 = vmatmul.mubr.f32.gmra.mrb[0].mxu0 %v699
  %v849 = vpop.f32.mrb[0].mxu0
  %v850 = vadd.f32 0.0, %v849
  %v851 = vpop.f32.mrb[0].mxu0
  %852 = vmatprep.mubr.f32.mxu0 0.0
  %853 = vmatmul.mubr.f32.gmra.mrb[0].mxu0 %v700
  %v854 = vpop.f32.mrb[0].mxu0
  %v855 = vadd.f32 0.0, %v854
  %v856 = vpop.f32.mrb[0].mxu0
  %857 = vmatprep.mubr.f32.mxu0 0.0
  %858 = vmatmul.mubr.f32.gmra.mrb[0].mxu0 %v701
  %v859 = vpop.f32.mrb[0].mxu0
  %v860 = vadd.f32 0.0, %v859
  %v861 = vpop.f32.mrb[0].mxu0
  %862 = vdwg.mxu0
  %v863 = vadd.f32 %v447, %v785
  %v864 = vadd.f32 %v452, %v790
  %v865 = vadd.f32 %v457, %v795
  %v866 = vadd.f32 %v462, %v800
  %v867 = vadd.f32 %v467, %v805
  %v868 = vadd.f32 %v472, %v810
  %v869 = vadd.f32 %v477, %v815
  %v870 = vadd.f32 %v482, %v820
  %v871 = vadd.f32 %v487, %v825
  %v872 = vadd.f32 %v492, %v830
  %v873 = vadd.f32 %v497, %v835
  %v874 = vadd.f32 %v502, %v840
  %v875 = vadd.f32 %v507, %v845
  %v876 = vadd.f32 %v512, %v850
  %v877 = vadd.f32 %v517, %v855
  %v878 = vadd.f32 %v522, %v860
  %v879 = vmax.f32 %v863, 0.0
  %v880 = vmax.f32 %v864, 0.0
  %v881 = vmax.f32 %v865, 0.0
  %v882 = vmax.f32 %v866, 0.0
  %v883 = vmax.f32 %v867, 0.0
  %v884 = vmax.f32 %v868, 0.0
  %v885 = vmax.f32 %v869, 0.0
  %v886 = vmax.f32 %v870, 0.0
  %v887 = vmax.f32 %v871, 0.0
  %v888 = vmax.f32 %v872, 0.0
  %v889 = vmax.f32 %v873, 0.0
  %v890 = vmax.f32 %v874, 0.0
  %v891 = vmax.f32 %v875, 0.0
  %v892 = vmax.f32 %v876, 0.0
  %v893 = vmax.f32 %v877, 0.0
  %v894 = vmax.f32 %v878, 0.0
  %v895 = vld [vmem:[%s3] sm:$0xff]
  %v896 = vld [vmem:[%s3 + $0x8] sm:$0xff]
  %v897 = vld [vmem:[%s3 + $0x10] sm:$0xff]
  %v898 = vld [vmem:[%s3 + $0x18] sm:$0xff]
  %v899 = vld [vmem:[%s3 + $0x20] sm:$0xff]
  %v900 = vld [vmem:[%s3 + $0x28] sm:$0xff]
  %v901 = vld [vmem:[%s3 + $0x30] sm:$0xff]
  %v902 = vld [vmem:[%s3 + $0x38] sm:$0xff]
  %v903 = vld [vmem:[%s3 + $0x40] sm:$0xff]
  %v904 = vld [vmem:[%s3 + $0x48] sm:$0xff]
  %v905 = vld [vmem:[%s3 + $0x50] sm:$0xff]
  %v906 = vld [vmem:[%s3 + $0x58] sm:$0xff]
  %v907 = vld [vmem:[%s3 + $0x60] sm:$0xff]
  %v908 = vld [vmem:[%s3 + $0x68] sm:$0xff]
  %v909 = vld [vmem:[%s3 + $0x70] sm:$0xff]
  %v910 = vld [vmem:[%s3 + $0x78] sm:$0xff]
  %911 = vmatprep.subr.mxu0 0.0
  %912 = vmatpush1.msra.mxu0 %v879
  %913 = vmatprep.subr.mxu0 0.0
  %914 = vmatpush1.msra.mxu0 %v880
  %915 = vmatprep.subr.mxu0 0.0
  %916 = vmatpush1.msra.mxu0 %v881
  %917 = vmatprep.subr.mxu0 0.0
  %918 = vmatpush1.msra.mxu0 %v882
  %919 = vmatprep.subr.mxu0 0.0
  %920 = vmatpush1.msra.mxu0 %v883
  %921 = vmatprep.subr.mxu0 0.0
  %922 = vmatpush1.msra.mxu0 %v884
  %923 = vmatprep.subr.mxu0 0.0
  %924 = vmatpush1.msra.mxu0 %v885
  %925 = vmatprep.subr.mxu0 0.0
  %926 = vmatpush1.msra.mxu0 %v886
  %927 = vmatprep.subr.mxu0 0.0
  %928 = vmatpush1.msra.mxu0 %v887
  %929 = vmatprep.subr.mxu0 0.0
  %930 = vmatpush1.msra.mxu0 %v888
  %931 = vmatprep.subr.mxu0 0.0
  %932 = vmatpush1.msra.mxu0 %v889
  %933 = vmatprep.subr.mxu0 0.0
  %934 = vmatpush1.msra.mxu0 %v890
  %935 = vmatprep.subr.mxu0 0.0
  %936 = vmatpush1.msra.mxu0 %v891
  %937 = vmatprep.subr.mxu0 0.0
  %938 = vmatpush1.msra.mxu0 %v892
  %939 = vmatprep.subr.mxu0 0.0
  %940 = vmatpush1.msra.mxu0 %v893
  %941 = vmatprep.subr.mxu0 0.0
  %942 = vmatpush1.msra.mxu0 %v894
  %943 = vmatprep.subr.mxu0 0.0
  %944 = vmatpush1.msra.mxu0 0.0
  %945 = vmatprep.subr.mxu0 0.0
  %946 = vmatpush1.msra.mxu0 0.0
  %947 = vmatprep.subr.mxu0 0.0
  %948 = vmatpush1.msra.mxu0 0.0
  %949 = vmatprep.subr.mxu0 0.0
  %950 = vmatpush1.msra.mxu0 0.0
  %951 = vmatprep.subr.mxu0 0.0
  %952 = vmatpush1.msra.mxu0 0.0
  %953 = vmatprep.subr.mxu0 0.0
  %954 = vmatpush1.msra.mxu0 0.0
  %955 = vmatprep.subr.mxu0 0.0
  %956 = vmatpush1.msra.mxu0 0.0
  %957 = vmatprep.subr.mxu0 0.0
  %958 = vmatpush1.msra.mxu0 0.0
  %959 = vmatprep.subr.mxu0 0.0
  %960 = vmatpush1.msra.mxu0 0.0
  %961 = vmatprep.subr.mxu0 0.0
  %962 = vmatpush1.msra.mxu0 0.0
  %963 = vmatprep.subr.mxu0 0.0
  %964 = vmatpush1.msra.mxu0 0.0
  %965 = vmatprep.subr.mxu0 0.0
  %966 = vmatpush1.msra.mxu0 0.0
  %967 = vmatprep.subr.mxu0 0.0
  %968 = vmatpush1.msra.mxu0 0.0
  %969 = vmatprep.subr.mxu0 0.0
  %970 = vmatpush1.msra.mxu0 0.0
  %971 = vmatprep.subr.mxu0 0.0
  %972 = vmatpush1.msra.mxu0 0.0
  %973 = vmatprep.subr.mxu0 0.0
  %974 = vmatpush1.msra.mxu0 0.0
  %975 = vmatprep.mubr.f32.mxu0 0.0
  %976 = vmatmul.mubr.f32.gmra.mrb[0].mxu0 %v26
  %v977 = vpop.f32.mrb[0].mxu0
  %v978 = vadd.f32 0.0, %v977
  %v979 = vpop.f32.mrb[0].mxu0
  %980 = vmatprep.mubr.f32.mxu0 0.0
  %981 = vmatmul.mubr.f32.gmra.mrb[0].mxu0 %v27
  %v982 = vpop.f32.mrb[0].mxu0
  %v983 = vadd.f32 0.0, %v982
  %v984 = vpop.f32.mrb[0].mxu0
  %985 = vmatprep.mubr.f32.mxu0 0.0
  %986 = vmatmul.mubr.f32.gmra.mrb[0].mxu0 %v28
  %v987 = vpop.f32.mrb[0].mxu0
  %v988 = vadd.f32 0.0, %v987
  %v989 = vpop.f32.mrb[0].mxu0
  %990 = vmatprep.mubr.f32.mxu0 0.0
  %991 = vmatmul.mubr.f32.gmra.mrb[0].mxu0 %v29
  %v992 = vpop.f32.mrb[0].mxu0
  %v993 = vadd.f32 0.0, %v992
  %v994 = vpop.f32.mrb[0].mxu0
  %995 = vmatprep.mubr.f32.mxu0 0.0
  %996 = vmatmul.mubr.f32.gmra.mrb[0].mxu0 %v30
  %v997 = vpop.f32.mrb[0].mxu0
  %v998 = vadd.f32 0.0, %v997
  %v999 = vpop.f32.mrb[0].mxu0
  %1000 = vmatprep.mubr.f32.mxu0 0.0
  %1001 = vmatmul.mubr.f32.gmra.mrb[0].mxu0 %v31
  %v1002 = vpop.f32.mrb[0].mxu0
  %v1003 = vadd.f32 0.0, %v1002
  %v1004 = vpop.f32.mrb[0].mxu0
  %1005 = vmatprep.mubr.f32.mxu0 0.0
  %1006 = vmatmul.mubr.f32.gmra.mrb[0].mxu0 %v32
  %v1007 = vpop.f32.mrb[0].mxu0
  %v1008 = vadd.f32 0.0, %v1007
  %v1009 = vpop.f32.mrb[0].mxu0
  %1010 = vmatprep.mubr.f32.mxu0 0.0
  %1011 = vmatmul.mubr.f32.gmra.mrb[0].mxu0 %v33
  %v1012 = vpop.f32.mrb[0].mxu0
  %v1013 = vadd.f32 0.0, %v1012
  %v1014 = vpop.f32.mrb[0].mxu0
  %1015 = vmatprep.mubr.f32.mxu0 0.0
  %1016 = vmatmul.mubr.f32.gmra.mrb[0].mxu0 %v34
  %v1017 = vpop.f32.mrb[0].mxu0
  %v1018 = vadd.f32 0.0, %v1017
  %v1019 = vpop.f32.mrb[0].mxu0
  %1020 = vmatprep.mubr.f32.mxu0 0.0
  %1021 = vmatmul.mubr.f32.gmra.mrb[0].mxu0 %v35
  %v1022 = vpop.f32.mrb[0].mxu0
  %v1023 = vadd.f32 0.0, %v1022
  %v1024 = vpop.f32.mrb[0].mxu0
  %1025 = vmatprep.mubr.f32.mxu0 0.0
  %1026 = vmatmul.mubr.f32.gmra.mrb[0].mxu0 %v36
  %v1027 = vpop.f32.mrb[0].mxu0
  %v1028 = vadd.f32 0.0, %v1027
  %v1029 = vpop.f32.mrb[0].mxu0
  %1030 = vmatprep.mubr.f32.mxu0 0.0
  %1031 = vmatmul.mubr.f32.gmra.mrb[0].mxu0 %v37
  %v1032 = vpop.f32.mrb[0].mxu0
  %v1033 = vadd.f32 0.0, %v1032
  %v1034 = vpop.f32.mrb[0].mxu0
  %1035 = vmatprep.mubr.f32.mxu0 0.0
  %1036 = vmatmul.mubr.f32.gmra.mrb[0].mxu0 %v38
  %v1037 = vpop.f32.mrb[0].mxu0
  %v1038 = vadd.f32 0.0, %v1037
  %v1039 = vpop.f32.mrb[0].mxu0
  %1040 = vmatprep.mubr.f32.mxu0 0.0
  %1041 = vmatmul.mubr.f32.gmra.mrb[0].mxu0 %v39
  %v1042 = vpop.f32.mrb[0].mxu0
  %v1043 = vadd.f32 0.0, %v1042
  %v1044 = vpop.f32.mrb[0].mxu0
  %1045 = vmatprep.mubr.f32.mxu0 0.0
  %1046 = vmatmul.mubr.f32.gmra.mrb[0].mxu0 %v40
  %v1047 = vpop.f32.mrb[0].mxu0
  %v1048 = vadd.f32 0.0, %v1047
  %v1049 = vpop.f32.mrb[0].mxu0
  %1050 = vmatprep.mubr.f32.mxu0 0.0
  %1051 = vmatmul.mubr.f32.gmra.mrb[0].mxu0 %v41
  %v1052 = vpop.f32.mrb[0].mxu0
  %v1053 = vadd.f32 0.0, %v1052
  %v1054 = vpop.f32.mrb[0].mxu0
  %1055 = vdwg.mxu0
  %v1056 = vld [vmem:[%s3 + $0x80] sm:$0xff]
  %v1057 = vld [vmem:[%s3 + $0x88] sm:$0xff]
  %v1058 = vld [vmem:[%s3 + $0x90] sm:$0xff]
  %v1059 = vld [vmem:[%s3 + $0x98] sm:$0xff]
  %v1060 = vld [vmem:[%s3 + $0xa0] sm:$0xff]
  %v1061 = vld [vmem:[%s3 + $0xa8] sm:$0xff]
  %v1062 = vld [vmem:[%s3 + $0xb0] sm:$0xff]
  %v1063 = vld [vmem:[%s3 + $0xb8] sm:$0xff]
  %v1064 = vld [vmem:[%s3 + $0xc0] sm:$0xff]
  %v1065 = vld [vmem:[%s3 + $0xc8] sm:$0xff]
  %v1066 = vld [vmem:[%s3 + $0xd0] sm:$0xff]
  %v1067 = vld [vmem:[%s3 + $0xd8] sm:$0xff]
  %v1068 = vld [vmem:[%s3 + $0xe0] sm:$0xff]
  %v1069 = vld [vmem:[%s3 + $0xe8] sm:$0xff]
  %v1070 = vld [vmem:[%s3 + $0xf0] sm:$0xff]
  %v1071 = vld [vmem:[%s3 + $0xf8] sm:$0xff]
  %1072 = vmatprep.subr.mxu0 0.0
  %1073 = vmatpush1.msra.mxu0 %v1056
  %1074 = vmatprep.subr.mxu0 0.0
  %1075 = vmatpush1.msra.mxu0 %v1057
  %1076 = vmatprep.subr.mxu0 0.0
  %1077 = vmatpush1.msra.mxu0 %v1058
  %1078 = vmatprep.subr.mxu0 0.0
  %1079 = vmatpush1.msra.mxu0 %v1059
  %1080 = vmatprep.subr.mxu0 0.0
  %1081 = vmatpush1.msra.mxu0 %v1060
  %1082 = vmatprep.subr.mxu0 0.0
  %1083 = vmatpush1.msra.mxu0 %v1061
  %1084 = vmatprep.subr.mxu0 0.0
  %1085 = vmatpush1.msra.mxu0 %v1062
  %1086 = vmatprep.subr.mxu0 0.0
  %1087 = vmatpush1.msra.mxu0 %v1063
  %1088 = vmatprep.subr.mxu0 0.0
  %1089 = vmatpush1.msra.mxu0 %v1064
  %1090 = vmatprep.subr.mxu0 0.0
  %1091 = vmatpush1.msra.mxu0 %v1065
  %1092 = vmatprep.subr.mxu0 0.0
  %1093 = vmatpush1.msra.mxu0 %v1066
  %1094 = vmatprep.subr.mxu0 0.0
  %1095 = vmatpush1.msra.mxu0 %v1067
  %1096 = vmatprep.subr.mxu0 0.0
  %1097 = vmatpush1.msra.mxu0 %v1068
  %1098 = vmatprep.subr.mxu0 0.0
  %1099 = vmatpush1.msra.mxu0 %v1069
  %1100 = vmatprep.subr.mxu0 0.0
  %1101 = vmatpush1.msra.mxu0 %v1070
  %1102 = vmatprep.subr.mxu0 0.0
  %1103 = vmatpush1.msra.mxu0 %v1071
  %1104 = vmatprep.subr.mxu0 0.0
  %1105 = vmatpush1.msra.mxu0 0.0
  %1106 = vmatprep.subr.mxu0 0.0
  %1107 = vmatpush1.msra.mxu0 0.0
  %1108 = vmatprep.subr.mxu0 0.0
  %1109 = vmatpush1.msra.mxu0 0.0
  %1110 = vmatprep.subr.mxu0 0.0
  %1111 = vmatpush1.msra.mxu0 0.0
  %1112 = vmatprep.subr.mxu0 0.0
  %1113 = vmatpush1.msra.mxu0 0.0
  %1114 = vmatprep.subr.mxu0 0.0
  %1115 = vmatpush1.msra.mxu0 0.0
  %1116 = vmatprep.subr.mxu0 0.0
  %1117 = vmatpush1.msra.mxu0 0.0
  %1118 = vmatprep.subr.mxu0 0.0
  %1119 = vmatpush1.msra.mxu0 0.0
  %1120 = vmatprep.subr.mxu0 0.0
  %1121 = vmatpush1.msra.mxu0 0.0
  %1122 = vmatprep.subr.mxu0 0.0
  %1123 = vmatpush1.msra.mxu0 0.0
  %1124 = vmatprep.subr.mxu0 0.0
  %1125 = vmatpush1.msra.mxu0 0.0
  %1126 = vmatprep.subr.mxu0 0.0
  %1127 = vmatpush1.msra.mxu0 0.0
  %1128 = vmatprep.subr.mxu0 0.0
  %1129 = vmatpush1.msra.mxu0 0.0
  %1130 = vmatprep.subr.mxu0 0.0
  %1131 = vmatpush1.msra.mxu0 0.0
  %1132 = vmatprep.subr.mxu0 0.0
  %1133 = vmatpush1.msra.mxu0 0.0
  %1134 = vmatprep.subr.mxu0 0.0
  %1135 = vmatpush1.msra.mxu0 0.0
  %1136 = vmatprep.mubr.f32.mxu0 0.0
  %1137 = vmatmul.mubr.f32.gmra.mrb[0].mxu0 %v978
  %v1138 = vpop.f32.mrb[0].mxu0
  %v1139 = vadd.f32 0.0, %v1138
  %v1140 = vpop.f32.mrb[0].mxu0
  %1141 = vmatprep.mubr.f32.mxu0 0.0
  %1142 = vmatmul.mubr.f32.gmra.mrb[0].mxu0 %v983
  %v1143 = vpop.f32.mrb[0].mxu0
  %v1144 = vadd.f32 0.0, %v1143
  %v1145 = vpop.f32.mrb[0].mxu0
  %1146 = vmatprep.mubr.f32.mxu0 0.0
  %1147 = vmatmul.mubr.f32.gmra.mrb[0].mxu0 %v988
  %v1148 = vpop.f32.mrb[0].mxu0
  %v1149 = vadd.f32 0.0, %v1148
  %v1150 = vpop.f32.mrb[0].mxu0
  %1151 = vmatprep.mubr.f32.mxu0 0.0
  %1152 = vmatmul.mubr.f32.gmra.mrb[0].mxu0 %v993
  %v1153 = vpop.f32.mrb[0].mxu0
  %v1154 = vadd.f32 0.0, %v1153
  %v1155 = vpop.f32.mrb[0].mxu0
  %1156 = vmatprep.mubr.f32.mxu0 0.0
  %1157 = vmatmul.mubr.f32.gmra.mrb[0].mxu0 %v998
  %v1158 = vpop.f32.mrb[0].mxu0
  %v1159 = vadd.f32 0.0, %v1158
  %v1160 = vpop.f32.mrb[0].mxu0
  %1161 = vmatprep.mubr.f32.mxu0 0.0
  %1162 = vmatmul.mubr.f32.gmra.mrb[0].mxu0 %v1003
  %v1163 = vpop.f32.mrb[0].mxu0
  %v1164 = vadd.f32 0.0, %v1163
  %v1165 = vpop.f32.mrb[0].mxu0
  %1166 = vmatprep.mubr.f32.mxu0 0.0
  %1167 = vmatmul.mubr.f32.gmra.mrb[0].mxu0 %v1008
  %v1168 = vpop.f32.mrb[0].mxu0
  %v1169 = vadd.f32 0.0, %v1168
  %v1170 = vpop.f32.mrb[0].mxu0
  %1171 = vmatprep.mubr.f32.mxu0 0.0
  %1172 = vmatmul.mubr.f32.gmra.mrb[0].mxu0 %v1013
  %v1173 = vpop.f32.mrb[0].mxu0
  %v1174 = vadd.f32 0.0, %v1173
  %v1175 = vpop.f32.mrb[0].mxu0
  %1176 = vmatprep.mubr.f32.mxu0 0.0
  %1177 = vmatmul.mubr.f32.gmra.mrb[0].mxu0 %v1018
  %v1178 = vpop.f32.mrb[0].mxu0
  %v1179 = vadd.f32 0.0, %v1178
  %v1180 = vpop.f32.mrb[0].mxu0
  %1181 = vmatprep.mubr.f32.mxu0 0.0
  %1182 = vmatmul.mubr.f32.gmra.mrb[0].mxu0 %v1023
  %v1183 = vpop.f32.mrb[0].mxu0
  %v1184 = vadd.f32 0.0, %v1183
  %v1185 = vpop.f32.mrb[0].mxu0
  %1186 = vmatprep.mubr.f32.mxu0 0.0
  %1187 = vmatmul.mubr.f32.gmra.mrb[0].mxu0 %v1028
  %v1188 = vpop.f32.mrb[0].mxu0
  %v1189 = vadd.f32 0.0, %v1188
  %v1190 = vpop.f32.mrb[0].mxu0
  %1191 = vmatprep.mubr.f32.mxu0 0.0
  %1192 = vmatmul.mubr.f32.gmra.mrb[0].mxu0 %v1033
  %v1193 = vpop.f32.mrb[0].mxu0
  %v1194 = vadd.f32 0.0, %v1193
  %v1195 = vpop.f32.mrb[0].mxu0
  %1196 = vmatprep.mubr.f32.mxu0 0.0
  %1197 = vmatmul.mubr.f32.gmra.mrb[0].mxu0 %v1038
  %v1198 = vpop.f32.mrb[0].mxu0
  %v1199 = vadd.f32 0.0, %v1198
  %v1200 = vpop.f32.mrb[0].mxu0
  %1201 = vmatprep.mubr.f32.mxu0 0.0
  %1202 = vmatmul.mubr.f32.gmra.mrb[0].mxu0 %v1043
  %v1203 = vpop.f32.mrb[0].mxu0
  %v1204 = vadd.f32 0.0, %v1203
  %v1205 = vpop.f32.mrb[0].mxu0
  %1206 = vmatprep.mubr.f32.mxu0 0.0
  %1207 = vmatmul.mubr.f32.gmra.mrb[0].mxu0 %v1048
  %v1208 = vpop.f32.mrb[0].mxu0
  %v1209 = vadd.f32 0.0, %v1208
  %v1210 = vpop.f32.mrb[0].mxu0
  %1211 = vmatprep.mubr.f32.mxu0 0.0
  %1212 = vmatmul.mubr.f32.gmra.mrb[0].mxu0 %v1053
  %v1213 = vpop.f32.mrb[0].mxu0
  %v1214 = vadd.f32 0.0, %v1213
  %v1215 = vpop.f32.mrb[0].mxu0
  %1216 = vdwg.mxu0
  %1217 = vmatprep.subr.mxu0 0.0
  %1218 = vmatpush1.msra.mxu0 %v895
  %1219 = vmatprep.subr.mxu0 0.0
  %1220 = vmatpush1.msra.mxu0 %v896
  %1221 = vmatprep.subr.mxu0 0.0
  %1222 = vmatpush1.msra.mxu0 %v897
  %1223 = vmatprep.subr.mxu0 0.0
  %1224 = vmatpush1.msra.mxu0 %v898
  %1225 = vmatprep.subr.mxu0 0.0
  %1226 = vmatpush1.msra.mxu0 %v899
  %1227 = vmatprep.subr.mxu0 0.0
  %1228 = vmatpush1.msra.mxu0 %v900
  %1229 = vmatprep.subr.mxu0 0.0
  %1230 = vmatpush1.msra.mxu0 %v901
  %1231 = vmatprep.subr.mxu0 0.0
  %1232 = vmatpush1.msra.mxu0 %v902
  %1233 = vmatprep.subr.mxu0 0.0
  %1234 = vmatpush1.msra.mxu0 %v903
  %1235 = vmatprep.subr.mxu0 0.0
  %1236 = vmatpush1.msra.mxu0 %v904
  %1237 = vmatprep.subr.mxu0 0.0
  %1238 = vmatpush1.msra.mxu0 %v905
  %1239 = vmatprep.subr.mxu0 0.0
  %1240 = vmatpush1.msra.mxu0 %v906
  %1241 = vmatprep.subr.mxu0 0.0
  %1242 = vmatpush1.msra.mxu0 %v907
  %1243 = vmatprep.subr.mxu0 0.0
  %1244 = vmatpush1.msra.mxu0 %v908
  %1245 = vmatprep.subr.mxu0 0.0
  %1246 = vmatpush1.msra.mxu0 %v909
  %1247 = vmatprep.subr.mxu0 0.0
  %1248 = vmatpush1.msra.mxu0 %v910
  %1249 = vmatprep.subr.mxu0 0.0
  %1250 = vmatpush1.msra.mxu0 0.0
  %1251 = vmatprep.subr.mxu0 0.0
  %1252 = vmatpush1.msra.mxu0 0.0
  %1253 = vmatprep.subr.mxu0 0.0
  %1254 = vmatpush1.msra.mxu0 0.0
  %1255 = vmatprep.subr.mxu0 0.0
  %1256 = vmatpush1.msra.mxu0 0.0
  %1257 = vmatprep.subr.mxu0 0.0
  %1258 = vmatpush1.msra.mxu0 0.0
  %1259 = vmatprep.subr.mxu0 0.0
  %1260 = vmatpush1.msra.mxu0 0.0
  %1261 = vmatprep.subr.mxu0 0.0
  %1262 = vmatpush1.msra.mxu0 0.0
  %1263 = vmatprep.subr.mxu0 0.0
  %1264 = vmatpush1.msra.mxu0 0.0
  %1265 = vmatprep.subr.mxu0 0.0
  %1266 = vmatpush1.msra.mxu0 0.0
  %1267 = vmatprep.subr.mxu0 0.0
  %1268 = vmatpush1.msra.mxu0 0.0
  %1269 = vmatprep.subr.mxu0 0.0
  %1270 = vmatpush1.msra.mxu0 0.0
  %1271 = vmatprep.subr.mxu0 0.0
  %1272 = vmatpush1.msra.mxu0 0.0
  %1273 = vmatprep.subr.mxu0 0.0
  %1274 = vmatpush1.msra.mxu0 0.0
  %1275 = vmatprep.subr.mxu0 0.0
  %1276 = vmatpush1.msra.mxu0 0.0
  %1277 = vmatprep.subr.mxu0 0.0
  %1278 = vmatpush1.msra.mxu0 0.0
  %1279 = vmatprep.subr.mxu0 0.0
  %1280 = vmatpush1.msra.mxu0 0.0
  %1281 = vmatprep.mubr.f32.mxu0 0.0
  %1282 = vmatmul.mubr.f32.gmra.mrb[0].mxu0 %v879
  %v1283 = vpop.f32.mrb[0].mxu0
  %v1284 = vadd.f32 %v1139, %v1283
  %v1285 = vpop.f32.mrb[0].mxu0
  %1286 = vmatprep.mubr.f32.mxu0 0.0
  %1287 = vmatmul.mubr.f32.gmra.mrb[0].mxu0 %v880
  %v1288 = vpop.f32.mrb[0].mxu0
  %v1289 = vadd.f32 %v1144, %v1288
  %v1290 = vpop.f32.mrb[0].mxu0
  %1291 = vmatprep.mubr.f32.mxu0 0.0
  %1292 = vmatmul.mubr.f32.gmra.mrb[0].mxu0 %v881
  %v1293 = vpop.f32.mrb[0].mxu0
  %v1294 = vadd.f32 %v1149, %v1293
  %v1295 = vpop.f32.mrb[0].mxu0
  %1296 = vmatprep.mubr.f32.mxu0 0.0
  %1297 = vmatmul.mubr.f32.gmra.mrb[0].mxu0 %v882
  %v1298 = vpop.f32.mrb[0].mxu0
  %v1299 = vadd.f32 %v1154, %v1298
  %v1300 = vpop.f32.mrb[0].mxu0
  %1301 = vmatprep.mubr.f32.mxu0 0.0
  %1302 = vmatmul.mubr.f32.gmra.mrb[0].mxu0 %v883
  %v1303 = vpop.f32.mrb[0].mxu0
  %v1304 = vadd.f32 %v1159, %v1303
  %v1305 = vpop.f32.mrb[0].mxu0
  %1306 = vmatprep.mubr.f32.mxu0 0.0
  %1307 = vmatmul.mubr.f32.gmra.mrb[0].mxu0 %v884
  %v1308 = vpop.f32.mrb[0].mxu0
  %v1309 = vadd.f32 %v1164, %v1308
  %v1310 = vpop.f32.mrb[0].mxu0
  %1311 = vmatprep.mubr.f32.mxu0 0.0
  %1312 = vmatmul.mubr.f32.gmra.mrb[0].mxu0 %v885
  %v1313 = vpop.f32.mrb[0].mxu0
  %v1314 = vadd.f32 %v1169, %v1313
  %v1315 = vpop.f32.mrb[0].mxu0
  %1316 = vmatprep.mubr.f32.mxu0 0.0
  %1317 = vmatmul.mubr.f32.gmra.mrb[0].mxu0 %v886
  %v1318 = vpop.f32.mrb[0].mxu0
  %v1319 = vadd.f32 %v1174, %v1318
  %v1320 = vpop.f32.mrb[0].mxu0
  %1321 = vmatprep.mubr.f32.mxu0 0.0
  %1322 = vmatmul.mubr.f32.gmra.mrb[0].mxu0 %v887
  %v1323 = vpop.f32.mrb[0].mxu0
  %v1324 = vadd.f32 %v1179, %v1323
  %v1325 = vpop.f32.mrb[0].mxu0
  %1326 = vmatprep.mubr.f32.mxu0 0.0
  %1327 = vmatmul.mubr.f32.gmra.mrb[0].mxu0 %v888
  %v1328 = vpop.f32.mrb[0].mxu0
  %v1329 = vadd.f32 %v1184, %v1328
  %v1330 = vpop.f32.mrb[0].mxu0
  %1331 = vmatprep.mubr.f32.mxu0 0.0
  %1332 = vmatmul.mubr.f32.gmra.mrb[0].mxu0 %v889
  %v1333 = vpop.f32.mrb[0].mxu0
  %v1334 = vadd.f32 %v1189, %v1333
  %v1335 = vpop.f32.mrb[0].mxu0
  %1336 = vmatprep.mubr.f32.mxu0 0.0
  %1337 = vmatmul.mubr.f32.gmra.mrb[0].mxu0 %v890
  %v1338 = vpop.f32.mrb[0].mxu0
  %v1339 = vadd.f32 %v1194, %v1338
  %v1340 = vpop.f32.mrb[0].mxu0
  %1341 = vmatprep.mubr.f32.mxu0 0.0
  %1342 = vmatmul.mubr.f32.gmra.mrb[0].mxu0 %v891
  %v1343 = vpop.f32.mrb[0].mxu0
  %v1344 = vadd.f32 %v1199, %v1343
  %v1345 = vpop.f32.mrb[0].mxu0
  %1346 = vmatprep.mubr.f32.mxu0 0.0
  %1347 = vmatmul.mubr.f32.gmra.mrb[0].mxu0 %v892
  %v1348 = vpop.f32.mrb[0].mxu0
  %v1349 = vadd.f32 %v1204, %v1348
  %v1350 = vpop.f32.mrb[0].mxu0
  %1351 = vmatprep.mubr.f32.mxu0 0.0
  %1352 = vmatmul.mubr.f32.gmra.mrb[0].mxu0 %v893
  %v1353 = vpop.f32.mrb[0].mxu0
  %v1354 = vadd.f32 %v1209, %v1353
  %v1355 = vpop.f32.mrb[0].mxu0
  %1356 = vmatprep.mubr.f32.mxu0 0.0
  %1357 = vmatmul.mubr.f32.gmra.mrb[0].mxu0 %v894
  %v1358 = vpop.f32.mrb[0].mxu0
  %v1359 = vadd.f32 %v1214, %v1358
  %v1360 = vpop.f32.mrb[0].mxu0
  %1361 = vdwg.mxu0
  %1362 = vmatprep.subr.mxu0 0.0
  %1363 = vmatpush1.msra.mxu0 %v978
  %1364 = vmatprep.subr.mxu0 0.0
  %1365 = vmatpush1.msra.mxu0 %v983
  %1366 = vmatprep.subr.mxu0 0.0
  %1367 = vmatpush1.msra.mxu0 %v988
  %1368 = vmatprep.subr.mxu0 0.0
  %1369 = vmatpush1.msra.mxu0 %v993
  %1370 = vmatprep.subr.mxu0 0.0
  %1371 = vmatpush1.msra.mxu0 %v998
  %1372 = vmatprep.subr.mxu0 0.0
  %1373 = vmatpush1.msra.mxu0 %v1003
  %1374 = vmatprep.subr.mxu0 0.0
  %1375 = vmatpush1.msra.mxu0 %v1008
  %1376 = vmatprep.subr.mxu0 0.0
  %1377 = vmatpush1.msra.mxu0 %v1013
  %1378 = vmatprep.subr.mxu0 0.0
  %1379 = vmatpush1.msra.mxu0 %v1018
  %1380 = vmatprep.subr.mxu0 0.0
  %1381 = vmatpush1.msra.mxu0 %v1023
  %1382 = vmatprep.subr.mxu0 0.0
  %1383 = vmatpush1.msra.mxu0 %v1028
  %1384 = vmatprep.subr.mxu0 0.0
  %1385 = vmatpush1.msra.mxu0 %v1033
  %1386 = vmatprep.subr.mxu0 0.0
  %1387 = vmatpush1.msra.mxu0 %v1038
  %1388 = vmatprep.subr.mxu0 0.0
  %1389 = vmatpush1.msra.mxu0 %v1043
  %1390 = vmatprep.subr.mxu0 0.0
  %1391 = vmatpush1.msra.mxu0 %v1048
  %1392 = vmatprep.subr.mxu0 0.0
  %1393 = vmatpush1.msra.mxu0 %v1053
  %1394 = vmatprep.subr.mxu0 0.0
  %1395 = vmatpush1.msra.mxu0 0.0
  %1396 = vmatprep.subr.mxu0 0.0
  %1397 = vmatpush1.msra.mxu0 0.0
  %1398 = vmatprep.subr.mxu0 0.0
  %1399 = vmatpush1.msra.mxu0 0.0
  %1400 = vmatprep.subr.mxu0 0.0
  %1401 = vmatpush1.msra.mxu0 0.0
  %1402 = vmatprep.subr.mxu0 0.0
  %1403 = vmatpush1.msra.mxu0 0.0
  %1404 = vmatprep.subr.mxu0 0.0
  %1405 = vmatpush1.msra.mxu0 0.0
  %1406 = vmatprep.subr.mxu0 0.0
  %1407 = vmatpush1.msra.mxu0 0.0
  %1408 = vmatprep.subr.mxu0 0.0
  %1409 = vmatpush1.msra.mxu0 0.0
  %1410 = vmatprep.subr.mxu0 0.0
  %1411 = vmatpush1.msra.mxu0 0.0
  %1412 = vmatprep.subr.mxu0 0.0
  %1413 = vmatpush1.msra.mxu0 0.0
  %1414 = vmatprep.subr.mxu0 0.0
  %1415 = vmatpush1.msra.mxu0 0.0
  %1416 = vmatprep.subr.mxu0 0.0
  %1417 = vmatpush1.msra.mxu0 0.0
  %1418 = vmatprep.subr.mxu0 0.0
  %1419 = vmatpush1.msra.mxu0 0.0
  %1420 = vmatprep.subr.mxu0 0.0
  %1421 = vmatpush1.msra.mxu0 0.0
  %1422 = vmatprep.subr.mxu0 0.0
  %1423 = vmatpush1.msra.mxu0 0.0
  %1424 = vmatprep.subr.mxu0 0.0
  %1425 = vmatpush1.msra.mxu0 0.0
  %1426 = vmatprep.mubr.f32.mxu0 0.0
  %1427 = vmatmul.mubr.f32.gmra.mrb[0].mxu0 %v26
  %v1428 = vpop.f32.mrb[0].mxu0
  %v1429 = vadd.f32 0.0, %v1428
  %v1430 = vpop.f32.mrb[0].mxu0
  %1431 = vmatprep.mubr.f32.mxu0 0.0
  %1432 = vmatmul.mubr.f32.gmra.mrb[0].mxu0 %v27
  %v1433 = vpop.f32.mrb[0].mxu0
  %v1434 = vadd.f32 0.0, %v1433
  %v1435 = vpop.f32.mrb[0].mxu0
  %1436 = vmatprep.mubr.f32.mxu0 0.0
  %1437 = vmatmul.mubr.f32.gmra.mrb[0].mxu0 %v28
  %v1438 = vpop.f32.mrb[0].mxu0
  %v1439 = vadd.f32 0.0, %v1438
  %v1440 = vpop.f32.mrb[0].mxu0
  %1441 = vmatprep.mubr.f32.mxu0 0.0
  %1442 = vmatmul.mubr.f32.gmra.mrb[0].mxu0 %v29
  %v1443 = vpop.f32.mrb[0].mxu0
  %v1444 = vadd.f32 0.0, %v1443
  %v1445 = vpop.f32.mrb[0].mxu0
  %1446 = vmatprep.mubr.f32.mxu0 0.0
  %1447 = vmatmul.mubr.f32.gmra.mrb[0].mxu0 %v30
  %v1448 = vpop.f32.mrb[0].mxu0
  %v1449 = vadd.f32 0.0, %v1448
  %v1450 = vpop.f32.mrb[0].mxu0
  %1451 = vmatprep.mubr.f32.mxu0 0.0
  %1452 = vmatmul.mubr.f32.gmra.mrb[0].mxu0 %v31
  %v1453 = vpop.f32.mrb[0].mxu0
  %v1454 = vadd.f32 0.0, %v1453
  %v1455 = vpop.f32.mrb[0].mxu0
  %1456 = vmatprep.mubr.f32.mxu0 0.0
  %1457 = vmatmul.mubr.f32.gmra.mrb[0].mxu0 %v32
  %v1458 = vpop.f32.mrb[0].mxu0
  %v1459 = vadd.f32 0.0, %v1458
  %v1460 = vpop.f32.mrb[0].mxu0
  %1461 = vmatprep.mubr.f32.mxu0 0.0
  %1462 = vmatmul.mubr.f32.gmra.mrb[0].mxu0 %v33
  %v1463 = vpop.f32.mrb[0].mxu0
  %v1464 = vadd.f32 0.0, %v1463
  %v1465 = vpop.f32.mrb[0].mxu0
  %1466 = vmatprep.mubr.f32.mxu0 0.0
  %1467 = vmatmul.mubr.f32.gmra.mrb[0].mxu0 %v34
  %v1468 = vpop.f32.mrb[0].mxu0
  %v1469 = vadd.f32 0.0, %v1468
  %v1470 = vpop.f32.mrb[0].mxu0
  %1471 = vmatprep.mubr.f32.mxu0 0.0
  %1472 = vmatmul.mubr.f32.gmra.mrb[0].mxu0 %v35
  %v1473 = vpop.f32.mrb[0].mxu0
  %v1474 = vadd.f32 0.0, %v1473
  %v1475 = vpop.f32.mrb[0].mxu0
  %1476 = vmatprep.mubr.f32.mxu0 0.0
  %1477 = vmatmul.mubr.f32.gmra.mrb[0].mxu0 %v36
  %v1478 = vpop.f32.mrb[0].mxu0
  %v1479 = vadd.f32 0.0, %v1478
  %v1480 = vpop.f32.mrb[0].mxu0
  %1481 = vmatprep.mubr.f32.mxu0 0.0
  %1482 = vmatmul.mubr.f32.gmra.mrb[0].mxu0 %v37
  %v1483 = vpop.f32.mrb[0].mxu0
  %v1484 = vadd.f32 0.0, %v1483
  %v1485 = vpop.f32.mrb[0].mxu0
  %1486 = vmatprep.mubr.f32.mxu0 0.0
  %1487 = vmatmul.mubr.f32.gmra.mrb[0].mxu0 %v38
  %v1488 = vpop.f32.mrb[0].mxu0
  %v1489 = vadd.f32 0.0, %v1488
  %v1490 = vpop.f32.mrb[0].mxu0
  %1491 = vmatprep.mubr.f32.mxu0 0.0
  %1492 = vmatmul.mubr.f32.gmra.mrb[0].mxu0 %v39
  %v1493 = vpop.f32.mrb[0].mxu0
  %v1494 = vadd.f32 0.0, %v1493
  %v1495 = vpop.f32.mrb[0].mxu0
  %1496 = vmatprep.mubr.f32.mxu0 0.0
  %1497 = vmatmul.mubr.f32.gmra.mrb[0].mxu0 %v40
  %v1498 = vpop.f32.mrb[0].mxu0
  %v1499 = vadd.f32 0.0, %v1498
  %v1500 = vpop.f32.mrb[0].mxu0
  %1501 = vmatprep.mubr.f32.mxu0 0.0
  %1502 = vmatmul.mubr.f32.gmra.mrb[0].mxu0 %v41
  %v1503 = vpop.f32.mrb[0].mxu0
  %v1504 = vadd.f32 0.0, %v1503
  %v1505 = vpop.f32.mrb[0].mxu0
  %1506 = vdwg.mxu0
  %v1507 = vmul.f32 %v1429, 2.0
  %v1508 = vmul.f32 %v1434, 2.0
  %v1509 = vmul.f32 %v1439, 2.0
  %v1510 = vmul.f32 %v1444, 2.0
  %v1511 = vmul.f32 %v1449, 2.0
  %v1512 = vmul.f32 %v1454, 2.0
  %v1513 = vmul.f32 %v1459, 2.0
  %v1514 = vmul.f32 %v1464, 2.0
  %v1515 = vmul.f32 %v1469, 2.0
  %v1516 = vmul.f32 %v1474, 2.0
  %v1517 = vmul.f32 %v1479, 2.0
  %v1518 = vmul.f32 %v1484, 2.0
  %v1519 = vmul.f32 %v1489, 2.0
  %v1520 = vmul.f32 %v1494, 2.0
  %v1521 = vmul.f32 %v1499, 2.0
  %v1522 = vmul.f32 %v1504, 2.0
  %v1523 = vsub.f32 %v1507, %v879
  %v1524 = vsub.f32 %v1508, %v880
  %v1525 = vsub.f32 %v1509, %v881
  %v1526 = vsub.f32 %v1510, %v882
  %v1527 = vsub.f32 %v1511, %v883
  %v1528 = vsub.f32 %v1512, %v884
  %v1529 = vsub.f32 %v1513, %v885
  %v1530 = vsub.f32 %v1514, %v886
  %v1531 = vsub.f32 %v1515, %v887
  %v1532 = vsub.f32 %v1516, %v888
  %v1533 = vsub.f32 %v1517, %v889
  %v1534 = vsub.f32 %v1518, %v890
  %v1535 = vsub.f32 %v1519, %v891
  %v1536 = vsub.f32 %v1520, %v892
  %v1537 = vsub.f32 %v1521, %v893
  %v1538 = vsub.f32 %v1522, %v894
  %v1539 = vld [vmem:[%s3 + $0x100] sm:$0xff]
  %v1540 = vld [vmem:[%s3 + $0x108] sm:$0xff]
  %v1541 = vld [vmem:[%s3 + $0x110] sm:$0xff]
  %v1542 = vld [vmem:[%s3 + $0x118] sm:$0xff]
  %v1543 = vld [vmem:[%s3 + $0x120] sm:$0xff]
  %v1544 = vld [vmem:[%s3 + $0x128] sm:$0xff]
  %v1545 = vld [vmem:[%s3 + $0x130] sm:$0xff]
  %v1546 = vld [vmem:[%s3 + $0x138] sm:$0xff]
  %v1547 = vld [vmem:[%s3 + $0x140] sm:$0xff]
  %v1548 = vld [vmem:[%s3 + $0x148] sm:$0xff]
  %v1549 = vld [vmem:[%s3 + $0x150] sm:$0xff]
  %v1550 = vld [vmem:[%s3 + $0x158] sm:$0xff]
  %v1551 = vld [vmem:[%s3 + $0x160] sm:$0xff]
  %v1552 = vld [vmem:[%s3 + $0x168] sm:$0xff]
  %v1553 = vld [vmem:[%s3 + $0x170] sm:$0xff]
  %v1554 = vld [vmem:[%s3 + $0x178] sm:$0xff]
  %1555 = vmatprep.subr.mxu0 0.0
  %1556 = vmatpush1.msra.mxu0 %v1539
  %1557 = vmatprep.subr.mxu0 0.0
  %1558 = vmatpush1.msra.mxu0 %v1540
  %1559 = vmatprep.subr.mxu0 0.0
  %1560 = vmatpush1.msra.mxu0 %v1541
  %1561 = vmatprep.subr.mxu0 0.0
  %1562 = vmatpush1.msra.mxu0 %v1542
  %1563 = vmatprep.subr.mxu0 0.0
  %1564 = vmatpush1.msra.mxu0 %v1543
  %1565 = vmatprep.subr.mxu0 0.0
  %1566 = vmatpush1.msra.mxu0 %v1544
  %1567 = vmatprep.subr.mxu0 0.0
  %1568 = vmatpush1.msra.mxu0 %v1545
  %1569 = vmatprep.subr.mxu0 0.0
  %1570 = vmatpush1.msra.mxu0 %v1546
  %1571 = vmatprep.subr.mxu0 0.0
  %1572 = vmatpush1.msra.mxu0 %v1547
  %1573 = vmatprep.subr.mxu0 0.0
  %1574 = vmatpush1.msra.mxu0 %v1548
  %1575 = vmatprep.subr.mxu0 0.0
  %1576 = vmatpush1.msra.mxu0 %v1549
  %1577 = vmatprep.subr.mxu0 0.0
  %1578 = vmatpush1.msra.mxu0 %v1550
  %1579 = vmatprep.subr.mxu0 0.0
  %1580 = vmatpush1.msra.mxu0 %v1551
  %1581 = vmatprep.subr.mxu0 0.0
  %1582 = vmatpush1.msra.mxu0 %v1552
  %1583 = vmatprep.subr.mxu0 0.0
  %1584 = vmatpush1.msra.mxu0 %v1553
  %1585 = vmatprep.subr.mxu0 0.0
  %1586 = vmatpush1.msra.mxu0 %v1554
  %1587 = vmatprep.subr.mxu0 0.0
  %1588 = vmatpush1.msra.mxu0 0.0
  %1589 = vmatprep.subr.mxu0 0.0
  %1590 = vmatpush1.msra.mxu0 0.0
  %1591 = vmatprep.subr.mxu0 0.0
  %1592 = vmatpush1.msra.mxu0 0.0
  %1593 = vmatprep.subr.mxu0 0.0
  %1594 = vmatpush1.msra.mxu0 0.0
  %1595 = vmatprep.subr.mxu0 0.0
  %1596 = vmatpush1.msra.mxu0 0.0
  %1597 = vmatprep.subr.mxu0 0.0
  %1598 = vmatpush1.msra.mxu0 0.0
  %1599 = vmatprep.subr.mxu0 0.0
  %1600 = vmatpush1.msra.mxu0 0.0
  %1601 = vmatprep.subr.mxu0 0.0
  %1602 = vmatpush1.msra.mxu0 0.0
  %1603 = vmatprep.subr.mxu0 0.0
  %1604 = vmatpush1.msra.mxu0 0.0
  %1605 = vmatprep.subr.mxu0 0.0
  %1606 = vmatpush1.msra.mxu0 0.0
  %1607 = vmatprep.subr.mxu0 0.0
  %1608 = vmatpush1.msra.mxu0 0.0
  %1609 = vmatprep.subr.mxu0 0.0
  %1610 = vmatpush1.msra.mxu0 0.0
  %1611 = vmatprep.subr.mxu0 0.0
  %1612 = vmatpush1.msra.mxu0 0.0
  %1613 = vmatprep.subr.mxu0 0.0
  %1614 = vmatpush1.msra.mxu0 0.0
  %1615 = vmatprep.subr.mxu0 0.0
  %1616 = vmatpush1.msra.mxu0 0.0
  %1617 = vmatprep.subr.mxu0 0.0
  %1618 = vmatpush1.msra.mxu0 0.0
  %1619 = vmatprep.mubr.f32.mxu0 0.0
  %1620 = vmatmul.mubr.f32.gmra.mrb[0].mxu0 %v1523
  %v1621 = vpop.f32.mrb[0].mxu0
  %v1622 = vadd.f32 0.0, %v1621
  %v1623 = vpop.f32.mrb[0].mxu0
  %1624 = vmatprep.mubr.f32.mxu0 0.0
  %1625 = vmatmul.mubr.f32.gmra.mrb[0].mxu0 %v1524
  %v1626 = vpop.f32.mrb[0].mxu0
  %v1627 = vadd.f32 0.0, %v1626
  %v1628 = vpop.f32.mrb[0].mxu0
  %1629 = vmatprep.mubr.f32.mxu0 0.0
  %1630 = vmatmul.mubr.f32.gmra.mrb[0].mxu0 %v1525
  %v1631 = vpop.f32.mrb[0].mxu0
  %v1632 = vadd.f32 0.0, %v1631
  %v1633 = vpop.f32.mrb[0].mxu0
  %1634 = vmatprep.mubr.f32.mxu0 0.0
  %1635 = vmatmul.mubr.f32.gmra.mrb[0].mxu0 %v1526
  %v1636 = vpop.f32.mrb[0].mxu0
  %v1637 = vadd.f32 0.0, %v1636
  %v1638 = vpop.f32.mrb[0].mxu0
  %1639 = vmatprep.mubr.f32.mxu0 0.0
  %1640 = vmatmul.mubr.f32.gmra.mrb[0].mxu0 %v1527
  %v1641 = vpop.f32.mrb[0].mxu0
  %v1642 = vadd.f32 0.0, %v1641
  %v1643 = vpop.f32.mrb[0].mxu0
  %1644 = vmatprep.mubr.f32.mxu0 0.0
  %1645 = vmatmul.mubr.f32.gmra.mrb[0].mxu0 %v1528
  %v1646 = vpop.f32.mrb[0].mxu0
  %v1647 = vadd.f32 0.0, %v1646
  %v1648 = vpop.f32.mrb[0].mxu0
  %1649 = vmatprep.mubr.f32.mxu0 0.0
  %1650 = vmatmul.mubr.f32.gmra.mrb[0].mxu0 %v1529
  %v1651 = vpop.f32.mrb[0].mxu0
  %v1652 = vadd.f32 0.0, %v1651
  %v1653 = vpop.f32.mrb[0].mxu0
  %1654 = vmatprep.mubr.f32.mxu0 0.0
  %1655 = vmatmul.mubr.f32.gmra.mrb[0].mxu0 %v1530
  %v1656 = vpop.f32.mrb[0].mxu0
  %v1657 = vadd.f32 0.0, %v1656
  %v1658 = vpop.f32.mrb[0].mxu0
  %1659 = vmatprep.mubr.f32.mxu0 0.0
  %1660 = vmatmul.mubr.f32.gmra.mrb[0].mxu0 %v1531
  %v1661 = vpop.f32.mrb[0].mxu0
  %v1662 = vadd.f32 0.0, %v1661
  %v1663 = vpop.f32.mrb[0].mxu0
  %1664 = vmatprep.mubr.f32.mxu0 0.0
  %1665 = vmatmul.mubr.f32.gmra.mrb[0].mxu0 %v1532
  %v1666 = vpop.f32.mrb[0].mxu0
  %v1667 = vadd.f32 0.0, %v1666
  %v1668 = vpop.f32.mrb[0].mxu0
  %1669 = vmatprep.mubr.f32.mxu0 0.0
  %1670 = vmatmul.mubr.f32.gmra.mrb[0].mxu0 %v1533
  %v1671 = vpop.f32.mrb[0].mxu0
  %v1672 = vadd.f32 0.0, %v1671
  %v1673 = vpop.f32.mrb[0].mxu0
  %1674 = vmatprep.mubr.f32.mxu0 0.0
  %1675 = vmatmul.mubr.f32.gmra.mrb[0].mxu0 %v1534
  %v1676 = vpop.f32.mrb[0].mxu0
  %v1677 = vadd.f32 0.0, %v1676
  %v1678 = vpop.f32.mrb[0].mxu0
  %1679 = vmatprep.mubr.f32.mxu0 0.0
  %1680 = vmatmul.mubr.f32.gmra.mrb[0].mxu0 %v1535
  %v1681 = vpop.f32.mrb[0].mxu0
  %v1682 = vadd.f32 0.0, %v1681
  %v1683 = vpop.f32.mrb[0].mxu0
  %1684 = vmatprep.mubr.f32.mxu0 0.0
  %1685 = vmatmul.mubr.f32.gmra.mrb[0].mxu0 %v1536
  %v1686 = vpop.f32.mrb[0].mxu0
  %v1687 = vadd.f32 0.0, %v1686
  %v1688 = vpop.f32.mrb[0].mxu0
  %1689 = vmatprep.mubr.f32.mxu0 0.0
  %1690 = vmatmul.mubr.f32.gmra.mrb[0].mxu0 %v1537
  %v1691 = vpop.f32.mrb[0].mxu0
  %v1692 = vadd.f32 0.0, %v1691
  %v1693 = vpop.f32.mrb[0].mxu0
  %1694 = vmatprep.mubr.f32.mxu0 0.0
  %1695 = vmatmul.mubr.f32.gmra.mrb[0].mxu0 %v1538
  %v1696 = vpop.f32.mrb[0].mxu0
  %v1697 = vadd.f32 0.0, %v1696
  %v1698 = vpop.f32.mrb[0].mxu0
  %1699 = vdwg.mxu0
  %v1700 = vadd.f32 %v1284, %v1622
  %v1701 = vadd.f32 %v1289, %v1627
  %v1702 = vadd.f32 %v1294, %v1632
  %v1703 = vadd.f32 %v1299, %v1637
  %v1704 = vadd.f32 %v1304, %v1642
  %v1705 = vadd.f32 %v1309, %v1647
  %v1706 = vadd.f32 %v1314, %v1652
  %v1707 = vadd.f32 %v1319, %v1657
  %v1708 = vadd.f32 %v1324, %v1662
  %v1709 = vadd.f32 %v1329, %v1667
  %v1710 = vadd.f32 %v1334, %v1672
  %v1711 = vadd.f32 %v1339, %v1677
  %v1712 = vadd.f32 %v1344, %v1682
  %v1713 = vadd.f32 %v1349, %v1687
  %v1714 = vadd.f32 %v1354, %v1692
  %v1715 = vadd.f32 %v1359, %v1697
  %v1716 = vmax.f32 %v1700, 0.0
  %v1717 = vmax.f32 %v1701, 0.0
  %v1718 = vmax.f32 %v1702, 0.0
  %v1719 = vmax.f32 %v1703, 0.0
  %v1720 = vmax.f32 %v1704, 0.0
  %v1721 = vmax.f32 %v1705, 0.0
  %v1722 = vmax.f32 %v1706, 0.0
  %v1723 = vmax.f32 %v1707, 0.0
  %v1724 = vmax.f32 %v1708, 0.0
  %v1725 = vmax.f32 %v1709, 0.0
  %v1726 = vmax.f32 %v1710, 0.0
  %v1727 = vmax.f32 %v1711, 0.0
  %v1728 = vmax.f32 %v1712, 0.0
  %v1729 = vmax.f32 %v1713, 0.0
  %v1730 = vmax.f32 %v1714, 0.0
  %v1731 = vmax.f32 %v1715, 0.0
  %v1732 = vld [vmem:[%s4] sm:$0xff]
  %v1733 = vld [vmem:[%s4 + $0x8] sm:$0xff]
  %v1734 = vld [vmem:[%s4 + $0x10] sm:$0xff]
  %v1735 = vld [vmem:[%s4 + $0x18] sm:$0xff]
  %v1736 = vld [vmem:[%s4 + $0x20] sm:$0xff]
  %v1737 = vld [vmem:[%s4 + $0x28] sm:$0xff]
  %v1738 = vld [vmem:[%s4 + $0x30] sm:$0xff]
  %v1739 = vld [vmem:[%s4 + $0x38] sm:$0xff]
  %v1740 = vld [vmem:[%s4 + $0x40] sm:$0xff]
  %v1741 = vld [vmem:[%s4 + $0x48] sm:$0xff]
  %v1742 = vld [vmem:[%s4 + $0x50] sm:$0xff]
  %v1743 = vld [vmem:[%s4 + $0x58] sm:$0xff]
  %v1744 = vld [vmem:[%s4 + $0x60] sm:$0xff]
  %v1745 = vld [vmem:[%s4 + $0x68] sm:$0xff]
  %v1746 = vld [vmem:[%s4 + $0x70] sm:$0xff]
  %v1747 = vld [vmem:[%s4 + $0x78] sm:$0xff]
  %1748 = vmatprep.subr.mxu0 0.0
  %1749 = vmatpush1.msra.mxu0 %v1716
  %1750 = vmatprep.subr.mxu0 0.0
  %1751 = vmatpush1.msra.mxu0 %v1717
  %1752 = vmatprep.subr.mxu0 0.0
  %1753 = vmatpush1.msra.mxu0 %v1718
  %1754 = vmatprep.subr.mxu0 0.0
  %1755 = vmatpush1.msra.mxu0 %v1719
  %1756 = vmatprep.subr.mxu0 0.0
  %1757 = vmatpush1.msra.mxu0 %v1720
  %1758 = vmatprep.subr.mxu0 0.0
  %1759 = vmatpush1.msra.mxu0 %v1721
  %1760 = vmatprep.subr.mxu0 0.0
  %1761 = vmatpush1.msra.mxu0 %v1722
  %1762 = vmatprep.subr.mxu0 0.0
  %1763 = vmatpush1.msra.mxu0 %v1723
  %1764 = vmatprep.subr.mxu0 0.0
  %1765 = vmatpush1.msra.mxu0 %v1724
  %1766 = vmatprep.subr.mxu0 0.0
  %1767 = vmatpush1.msra.mxu0 %v1725
  %1768 = vmatprep.subr.mxu0 0.0
  %1769 = vmatpush1.msra.mxu0 %v1726
  %1770 = vmatprep.subr.mxu0 0.0
  %1771 = vmatpush1.msra.mxu0 %v1727
  %1772 = vmatprep.subr.mxu0 0.0
  %1773 = vmatpush1.msra.mxu0 %v1728
  %1774 = vmatprep.subr.mxu0 0.0
  %1775 = vmatpush1.msra.mxu0 %v1729
  %1776 = vmatprep.subr.mxu0 0.0
  %1777 = vmatpush1.msra.mxu0 %v1730
  %1778 = vmatprep.subr.mxu0 0.0
  %1779 = vmatpush1.msra.mxu0 %v1731
  %1780 = vmatprep.subr.mxu0 0.0
  %1781 = vmatpush1.msra.mxu0 0.0
  %1782 = vmatprep.subr.mxu0 0.0
  %1783 = vmatpush1.msra.mxu0 0.0
  %1784 = vmatprep.subr.mxu0 0.0
  %1785 = vmatpush1.msra.mxu0 0.0
  %1786 = vmatprep.subr.mxu0 0.0
  %1787 = vmatpush1.msra.mxu0 0.0
  %1788 = vmatprep.subr.mxu0 0.0
  %1789 = vmatpush1.msra.mxu0 0.0
  %1790 = vmatprep.subr.mxu0 0.0
  %1791 = vmatpush1.msra.mxu0 0.0
  %1792 = vmatprep.subr.mxu0 0.0
  %1793 = vmatpush1.msra.mxu0 0.0
  %1794 = vmatprep.subr.mxu0 0.0
  %1795 = vmatpush1.msra.mxu0 0.0
  %1796 = vmatprep.subr.mxu0 0.0
  %1797 = vmatpush1.msra.mxu0 0.0
  %1798 = vmatprep.subr.mxu0 0.0
  %1799 = vmatpush1.msra.mxu0 0.0
  %1800 = vmatprep.subr.mxu0 0.0
  %1801 = vmatpush1.msra.mxu0 0.0
  %1802 = vmatprep.subr.mxu0 0.0
  %1803 = vmatpush1.msra.mxu0 0.0
  %1804 = vmatprep.subr.mxu0 0.0
  %1805 = vmatpush1.msra.mxu0 0.0
  %1806 = vmatprep.subr.mxu0 0.0
  %1807 = vmatpush1.msra.mxu0 0.0
  %1808 = vmatprep.subr.mxu0 0.0
  %1809 = vmatpush1.msra.mxu0 0.0
  %1810 = vmatprep.subr.mxu0 0.0
  %1811 = vmatpush1.msra.mxu0 0.0
  %1812 = vmatprep.mubr.f32.mxu0 0.0
  %1813 = vmatmul.mubr.f32.gmra.mrb[0].mxu0 %v26
  %v1814 = vpop.f32.mrb[0].mxu0
  %v1815 = vadd.f32 0.0, %v1814
  %v1816 = vpop.f32.mrb[0].mxu0
  %1817 = vmatprep.mubr.f32.mxu0 0.0
  %1818 = vmatmul.mubr.f32.gmra.mrb[0].mxu0 %v27
  %v1819 = vpop.f32.mrb[0].mxu0
  %v1820 = vadd.f32 0.0, %v1819
  %v1821 = vpop.f32.mrb[0].mxu0
  %1822 = vmatprep.mubr.f32.mxu0 0.0
  %1823 = vmatmul.mubr.f32.gmra.mrb[0].mxu0 %v28
  %v1824 = vpop.f32.mrb[0].mxu0
  %v1825 = vadd.f32 0.0, %v1824
  %v1826 = vpop.f32.mrb[0].mxu0
  %1827 = vmatprep.mubr.f32.mxu0 0.0
  %1828 = vmatmul.mubr.f32.gmra.mrb[0].mxu0 %v29
  %v1829 = vpop.f32.mrb[0].mxu0
  %v1830 = vadd.f32 0.0, %v1829
  %v1831 = vpop.f32.mrb[0].mxu0
  %1832 = vmatprep.mubr.f32.mxu0 0.0
  %1833 = vmatmul.mubr.f32.gmra.mrb[0].mxu0 %v30
  %v1834 = vpop.f32.mrb[0].mxu0
  %v1835 = vadd.f32 0.0, %v1834
  %v1836 = vpop.f32.mrb[0].mxu0
  %1837 = vmatprep.mubr.f32.mxu0 0.0
  %1838 = vmatmul.mubr.f32.gmra.mrb[0].mxu0 %v31
  %v1839 = vpop.f32.mrb[0].mxu0
  %v1840 = vadd.f32 0.0, %v1839
  %v1841 = vpop.f32.mrb[0].mxu0
  %1842 = vmatprep.mubr.f32.mxu0 0.0
  %1843 = vmatmul.mubr.f32.gmra.mrb[0].mxu0 %v32
  %v1844 = vpop.f32.mrb[0].mxu0
  %v1845 = vadd.f32 0.0, %v1844
  %v1846 = vpop.f32.mrb[0].mxu0
  %1847 = vmatprep.mubr.f32.mxu0 0.0
  %1848 = vmatmul.mubr.f32.gmra.mrb[0].mxu0 %v33
  %v1849 = vpop.f32.mrb[0].mxu0
  %v1850 = vadd.f32 0.0, %v1849
  %v1851 = vpop.f32.mrb[0].mxu0
  %1852 = vmatprep.mubr.f32.mxu0 0.0
  %1853 = vmatmul.mubr.f32.gmra.mrb[0].mxu0 %v34
  %v1854 = vpop.f32.mrb[0].mxu0
  %v1855 = vadd.f32 0.0, %v1854
  %v1856 = vpop.f32.mrb[0].mxu0
  %1857 = vmatprep.mubr.f32.mxu0 0.0
  %1858 = vmatmul.mubr.f32.gmra.mrb[0].mxu0 %v35
  %v1859 = vpop.f32.mrb[0].mxu0
  %v1860 = vadd.f32 0.0, %v1859
  %v1861 = vpop.f32.mrb[0].mxu0
  %1862 = vmatprep.mubr.f32.mxu0 0.0
  %1863 = vmatmul.mubr.f32.gmra.mrb[0].mxu0 %v36
  %v1864 = vpop.f32.mrb[0].mxu0
  %v1865 = vadd.f32 0.0, %v1864
  %v1866 = vpop.f32.mrb[0].mxu0
  %1867 = vmatprep.mubr.f32.mxu0 0.0
  %1868 = vmatmul.mubr.f32.gmra.mrb[0].mxu0 %v37
  %v1869 = vpop.f32.mrb[0].mxu0
  %v1870 = vadd.f32 0.0, %v1869
  %v1871 = vpop.f32.mrb[0].mxu0
  %1872 = vmatprep.mubr.f32.mxu0 0.0
  %1873 = vmatmul.mubr.f32.gmra.mrb[0].mxu0 %v38
  %v1874 = vpop.f32.mrb[0].mxu0
  %v1875 = vadd.f32 0.0, %v1874
  %v1876 = vpop.f32.mrb[0].mxu0
  %1877 = vmatprep.mubr.f32.mxu0 0.0
  %1878 = vmatmul.mubr.f32.gmra.mrb[0].mxu0 %v39
  %v1879 = vpop.f32.mrb[0].mxu0
  %v1880 = vadd.f32 0.0, %v1879
  %v1881 = vpop.f32.mrb[0].mxu0
  %1882 = vmatprep.mubr.f32.mxu0 0.0
  %1883 = vmatmul.mubr.f32.gmra.mrb[0].mxu0 %v40
  %v1884 = vpop.f32.mrb[0].mxu0
  %v1885 = vadd.f32 0.0, %v1884
  %v1886 = vpop.f32.mrb[0].mxu0
  %1887 = vmatprep.mubr.f32.mxu0 0.0
  %1888 = vmatmul.mubr.f32.gmra.mrb[0].mxu0 %v41
  %v1889 = vpop.f32.mrb[0].mxu0
  %v1890 = vadd.f32 0.0, %v1889
  %v1891 = vpop.f32.mrb[0].mxu0
  %1892 = vdwg.mxu0
  %v1893 = vld [vmem:[%s4 + $0x80] sm:$0xff]
  %v1894 = vld [vmem:[%s4 + $0x88] sm:$0xff]
  %v1895 = vld [vmem:[%s4 + $0x90] sm:$0xff]
  %v1896 = vld [vmem:[%s4 + $0x98] sm:$0xff]
  %v1897 = vld [vmem:[%s4 + $0xa0] sm:$0xff]
  %v1898 = vld [vmem:[%s4 + $0xa8] sm:$0xff]
  %v1899 = vld [vmem:[%s4 + $0xb0] sm:$0xff]
  %v1900 = vld [vmem:[%s4 + $0xb8] sm:$0xff]
  %v1901 = vld [vmem:[%s4 + $0xc0] sm:$0xff]
  %v1902 = vld [vmem:[%s4 + $0xc8] sm:$0xff]
  %v1903 = vld [vmem:[%s4 + $0xd0] sm:$0xff]
  %v1904 = vld [vmem:[%s4 + $0xd8] sm:$0xff]
  %v1905 = vld [vmem:[%s4 + $0xe0] sm:$0xff]
  %v1906 = vld [vmem:[%s4 + $0xe8] sm:$0xff]
  %v1907 = vld [vmem:[%s4 + $0xf0] sm:$0xff]
  %v1908 = vld [vmem:[%s4 + $0xf8] sm:$0xff]
  %1909 = vmatprep.subr.mxu0 0.0
  %1910 = vmatpush1.msra.mxu0 %v1893
  %1911 = vmatprep.subr.mxu0 0.0
  %1912 = vmatpush1.msra.mxu0 %v1894
  %1913 = vmatprep.subr.mxu0 0.0
  %1914 = vmatpush1.msra.mxu0 %v1895
  %1915 = vmatprep.subr.mxu0 0.0
  %1916 = vmatpush1.msra.mxu0 %v1896
  %1917 = vmatprep.subr.mxu0 0.0
  %1918 = vmatpush1.msra.mxu0 %v1897
  %1919 = vmatprep.subr.mxu0 0.0
  %1920 = vmatpush1.msra.mxu0 %v1898
  %1921 = vmatprep.subr.mxu0 0.0
  %1922 = vmatpush1.msra.mxu0 %v1899
  %1923 = vmatprep.subr.mxu0 0.0
  %1924 = vmatpush1.msra.mxu0 %v1900
  %1925 = vmatprep.subr.mxu0 0.0
  %1926 = vmatpush1.msra.mxu0 %v1901
  %1927 = vmatprep.subr.mxu0 0.0
  %1928 = vmatpush1.msra.mxu0 %v1902
  %1929 = vmatprep.subr.mxu0 0.0
  %1930 = vmatpush1.msra.mxu0 %v1903
  %1931 = vmatprep.subr.mxu0 0.0
  %1932 = vmatpush1.msra.mxu0 %v1904
  %1933 = vmatprep.subr.mxu0 0.0
  %1934 = vmatpush1.msra.mxu0 %v1905
  %1935 = vmatprep.subr.mxu0 0.0
  %1936 = vmatpush1.msra.mxu0 %v1906
  %1937 = vmatprep.subr.mxu0 0.0
  %1938 = vmatpush1.msra.mxu0 %v1907
  %1939 = vmatprep.subr.mxu0 0.0
  %1940 = vmatpush1.msra.mxu0 %v1908
  %1941 = vmatprep.subr.mxu0 0.0
  %1942 = vmatpush1.msra.mxu0 0.0
  %1943 = vmatprep.subr.mxu0 0.0
  %1944 = vmatpush1.msra.mxu0 0.0
  %1945 = vmatprep.subr.mxu0 0.0
  %1946 = vmatpush1.msra.mxu0 0.0
  %1947 = vmatprep.subr.mxu0 0.0
  %1948 = vmatpush1.msra.mxu0 0.0
  %1949 = vmatprep.subr.mxu0 0.0
  %1950 = vmatpush1.msra.mxu0 0.0
  %1951 = vmatprep.subr.mxu0 0.0
  %1952 = vmatpush1.msra.mxu0 0.0
  %1953 = vmatprep.subr.mxu0 0.0
  %1954 = vmatpush1.msra.mxu0 0.0
  %1955 = vmatprep.subr.mxu0 0.0
  %1956 = vmatpush1.msra.mxu0 0.0
  %1957 = vmatprep.subr.mxu0 0.0
  %1958 = vmatpush1.msra.mxu0 0.0
  %1959 = vmatprep.subr.mxu0 0.0
  %1960 = vmatpush1.msra.mxu0 0.0
  %1961 = vmatprep.subr.mxu0 0.0
  %1962 = vmatpush1.msra.mxu0 0.0
  %1963 = vmatprep.subr.mxu0 0.0
  %1964 = vmatpush1.msra.mxu0 0.0
  %1965 = vmatprep.subr.mxu0 0.0
  %1966 = vmatpush1.msra.mxu0 0.0
  %1967 = vmatprep.subr.mxu0 0.0
  %1968 = vmatpush1.msra.mxu0 0.0
  %1969 = vmatprep.subr.mxu0 0.0
  %1970 = vmatpush1.msra.mxu0 0.0
  %1971 = vmatprep.subr.mxu0 0.0
  %1972 = vmatpush1.msra.mxu0 0.0
  %1973 = vmatprep.mubr.f32.mxu0 0.0
  %1974 = vmatmul.mubr.f32.gmra.mrb[0].mxu0 %v1815
  %v1975 = vpop.f32.mrb[0].mxu0
  %v1976 = vadd.f32 0.0, %v1975
  %v1977 = vpop.f32.mrb[0].mxu0
  %1978 = vmatprep.mubr.f32.mxu0 0.0
  %1979 = vmatmul.mubr.f32.gmra.mrb[0].mxu0 %v1820
  %v1980 = vpop.f32.mrb[0].mxu0
  %v1981 = vadd.f32 0.0, %v1980
  %v1982 = vpop.f32.mrb[0].mxu0
  %1983 = vmatprep.mubr.f32.mxu0 0.0
  %1984 = vmatmul.mubr.f32.gmra.mrb[0].mxu0 %v1825
  %v1985 = vpop.f32.mrb[0].mxu0
  %v1986 = vadd.f32 0.0, %v1985
  %v1987 = vpop.f32.mrb[0].mxu0
  %1988 = vmatprep.mubr.f32.mxu0 0.0
  %1989 = vmatmul.mubr.f32.gmra.mrb[0].mxu0 %v1830
  %v1990 = vpop.f32.mrb[0].mxu0
  %v1991 = vadd.f32 0.0, %v1990
  %v1992 = vpop.f32.mrb[0].mxu0
  %1993 = vmatprep.mubr.f32.mxu0 0.0
  %1994 = vmatmul.mubr.f32.gmra.mrb[0].mxu0 %v1835
  %v1995 = vpop.f32.mrb[0].mxu0
  %v1996 = vadd.f32 0.0, %v1995
  %v1997 = vpop.f32.mrb[0].mxu0
  %1998 = vmatprep.mubr.f32.mxu0 0.0
  %1999 = vmatmul.mubr.f32.gmra.mrb[0].mxu0 %v1840
  %v2000 = vpop.f32.mrb[0].mxu0
  %v2001 = vadd.f32 0.0, %v2000
  %v2002 = vpop.f32.mrb[0].mxu0
  %2003 = vmatprep.mubr.f32.mxu0 0.0
  %2004 = vmatmul.mubr.f32.gmra.mrb[0].mxu0 %v1845
  %v2005 = vpop.f32.mrb[0].mxu0
  %v2006 = vadd.f32 0.0, %v2005
  %v2007 = vpop.f32.mrb[0].mxu0
  %2008 = vmatprep.mubr.f32.mxu0 0.0
  %2009 = vmatmul.mubr.f32.gmra.mrb[0].mxu0 %v1850
  %v2010 = vpop.f32.mrb[0].mxu0
  %v2011 = vadd.f32 0.0, %v2010
  %v2012 = vpop.f32.mrb[0].mxu0
  %2013 = vmatprep.mubr.f32.mxu0 0.0
  %2014 = vmatmul.mubr.f32.gmra.mrb[0].mxu0 %v1855
  %v2015 = vpop.f32.mrb[0].mxu0
  %v2016 = vadd.f32 0.0, %v2015
  %v2017 = vpop.f32.mrb[0].mxu0
  %2018 = vmatprep.mubr.f32.mxu0 0.0
  %2019 = vmatmul.mubr.f32.gmra.mrb[0].mxu0 %v1860
  %v2020 = vpop.f32.mrb[0].mxu0
  %v2021 = vadd.f32 0.0, %v2020
  %v2022 = vpop.f32.mrb[0].mxu0
  %2023 = vmatprep.mubr.f32.mxu0 0.0
  %2024 = vmatmul.mubr.f32.gmra.mrb[0].mxu0 %v1865
  %v2025 = vpop.f32.mrb[0].mxu0
  %v2026 = vadd.f32 0.0, %v2025
  %v2027 = vpop.f32.mrb[0].mxu0
  %2028 = vmatprep.mubr.f32.mxu0 0.0
  %2029 = vmatmul.mubr.f32.gmra.mrb[0].mxu0 %v1870
  %v2030 = vpop.f32.mrb[0].mxu0
  %v2031 = vadd.f32 0.0, %v2030
  %v2032 = vpop.f32.mrb[0].mxu0
  %2033 = vmatprep.mubr.f32.mxu0 0.0
  %2034 = vmatmul.mubr.f32.gmra.mrb[0].mxu0 %v1875
  %v2035 = vpop.f32.mrb[0].mxu0
  %v2036 = vadd.f32 0.0, %v2035
  %v2037 = vpop.f32.mrb[0].mxu0
  %2038 = vmatprep.mubr.f32.mxu0 0.0
  %2039 = vmatmul.mubr.f32.gmra.mrb[0].mxu0 %v1880
  %v2040 = vpop.f32.mrb[0].mxu0
  %v2041 = vadd.f32 0.0, %v2040
  %v2042 = vpop.f32.mrb[0].mxu0
  %2043 = vmatprep.mubr.f32.mxu0 0.0
  %2044 = vmatmul.mubr.f32.gmra.mrb[0].mxu0 %v1885
  %v2045 = vpop.f32.mrb[0].mxu0
  %v2046 = vadd.f32 0.0, %v2045
  %v2047 = vpop.f32.mrb[0].mxu0
  %2048 = vmatprep.mubr.f32.mxu0 0.0
  %2049 = vmatmul.mubr.f32.gmra.mrb[0].mxu0 %v1890
  %v2050 = vpop.f32.mrb[0].mxu0
  %v2051 = vadd.f32 0.0, %v2050
  %v2052 = vpop.f32.mrb[0].mxu0
  %2053 = vdwg.mxu0
  %2054 = vmatprep.subr.mxu0 0.0
  %2055 = vmatpush1.msra.mxu0 %v1732
  %2056 = vmatprep.subr.mxu0 0.0
  %2057 = vmatpush1.msra.mxu0 %v1733
  %2058 = vmatprep.subr.mxu0 0.0
  %2059 = vmatpush1.msra.mxu0 %v1734
  %2060 = vmatprep.subr.mxu0 0.0
  %2061 = vmatpush1.msra.mxu0 %v1735
  %2062 = vmatprep.subr.mxu0 0.0
  %2063 = vmatpush1.msra.mxu0 %v1736
  %2064 = vmatprep.subr.mxu0 0.0
  %2065 = vmatpush1.msra.mxu0 %v1737
  %2066 = vmatprep.subr.mxu0 0.0
  %2067 = vmatpush1.msra.mxu0 %v1738
  %2068 = vmatprep.subr.mxu0 0.0
  %2069 = vmatpush1.msra.mxu0 %v1739
  %2070 = vmatprep.subr.mxu0 0.0
  %2071 = vmatpush1.msra.mxu0 %v1740
  %2072 = vmatprep.subr.mxu0 0.0
  %2073 = vmatpush1.msra.mxu0 %v1741
  %2074 = vmatprep.subr.mxu0 0.0
  %2075 = vmatpush1.msra.mxu0 %v1742
  %2076 = vmatprep.subr.mxu0 0.0
  %2077 = vmatpush1.msra.mxu0 %v1743
  %2078 = vmatprep.subr.mxu0 0.0
  %2079 = vmatpush1.msra.mxu0 %v1744
  %2080 = vmatprep.subr.mxu0 0.0
  %2081 = vmatpush1.msra.mxu0 %v1745
  %2082 = vmatprep.subr.mxu0 0.0
  %2083 = vmatpush1.msra.mxu0 %v1746
  %2084 = vmatprep.subr.mxu0 0.0
  %2085 = vmatpush1.msra.mxu0 %v1747
  %2086 = vmatprep.subr.mxu0 0.0
  %2087 = vmatpush1.msra.mxu0 0.0
  %2088 = vmatprep.subr.mxu0 0.0
  %2089 = vmatpush1.msra.mxu0 0.0
  %2090 = vmatprep.subr.mxu0 0.0
  %2091 = vmatpush1.msra.mxu0 0.0
  %2092 = vmatprep.subr.mxu0 0.0
  %2093 = vmatpush1.msra.mxu0 0.0
  %2094 = vmatprep.subr.mxu0 0.0
  %2095 = vmatpush1.msra.mxu0 0.0
  %2096 = vmatprep.subr.mxu0 0.0
  %2097 = vmatpush1.msra.mxu0 0.0
  %2098 = vmatprep.subr.mxu0 0.0
  %2099 = vmatpush1.msra.mxu0 0.0
  %2100 = vmatprep.subr.mxu0 0.0
  %2101 = vmatpush1.msra.mxu0 0.0
  %2102 = vmatprep.subr.mxu0 0.0
  %2103 = vmatpush1.msra.mxu0 0.0
  %2104 = vmatprep.subr.mxu0 0.0
  %2105 = vmatpush1.msra.mxu0 0.0
  %2106 = vmatprep.subr.mxu0 0.0
  %2107 = vmatpush1.msra.mxu0 0.0
  %2108 = vmatprep.subr.mxu0 0.0
  %2109 = vmatpush1.msra.mxu0 0.0
  %2110 = vmatprep.subr.mxu0 0.0
  %2111 = vmatpush1.msra.mxu0 0.0
  %2112 = vmatprep.subr.mxu0 0.0
  %2113 = vmatpush1.msra.mxu0 0.0
  %2114 = vmatprep.subr.mxu0 0.0
  %2115 = vmatpush1.msra.mxu0 0.0
  %2116 = vmatprep.subr.mxu0 0.0
  %2117 = vmatpush1.msra.mxu0 0.0
  %2118 = vmatprep.mubr.f32.mxu0 0.0
  %2119 = vmatmul.mubr.f32.gmra.mrb[0].mxu0 %v1716
  %v2120 = vpop.f32.mrb[0].mxu0
  %v2121 = vadd.f32 %v1976, %v2120
  %v2122 = vpop.f32.mrb[0].mxu0
  %2123 = vmatprep.mubr.f32.mxu0 0.0
  %2124 = vmatmul.mubr.f32.gmra.mrb[0].mxu0 %v1717
  %v2125 = vpop.f32.mrb[0].mxu0
  %v2126 = vadd.f32 %v1981, %v2125
  %v2127 = vpop.f32.mrb[0].mxu0
  %2128 = vmatprep.mubr.f32.mxu0 0.0
  %2129 = vmatmul.mubr.f32.gmra.mrb[0].mxu0 %v1718
  %v2130 = vpop.f32.mrb[0].mxu0
  %v2131 = vadd.f32 %v1986, %v2130
  %v2132 = vpop.f32.mrb[0].mxu0
  %2133 = vmatprep.mubr.f32.mxu0 0.0
  %2134 = vmatmul.mubr.f32.gmra.mrb[0].mxu0 %v1719
  %v2135 = vpop.f32.mrb[0].mxu0
  %v2136 = vadd.f32 %v1991, %v2135
  %v2137 = vpop.f32.mrb[0].mxu0
  %2138 = vmatprep.mubr.f32.mxu0 0.0
  %2139 = vmatmul.mubr.f32.gmra.mrb[0].mxu0 %v1720
  %v2140 = vpop.f32.mrb[0].mxu0
  %v2141 = vadd.f32 %v1996, %v2140
  %v2142 = vpop.f32.mrb[0].mxu0
  %2143 = vmatprep.mubr.f32.mxu0 0.0
  %2144 = vmatmul.mubr.f32.gmra.mrb[0].mxu0 %v1721
  %v2145 = vpop.f32.mrb[0].mxu0
  %v2146 = vadd.f32 %v2001, %v2145
  %v2147 = vpop.f32.mrb[0].mxu0
  %2148 = vmatprep.mubr.f32.mxu0 0.0
  %2149 = vmatmul.mubr.f32.gmra.mrb[0].mxu0 %v1722
  %v2150 = vpop.f32.mrb[0].mxu0
  %v2151 = vadd.f32 %v2006, %v2150
  %v2152 = vpop.f32.mrb[0].mxu0
  %2153 = vmatprep.mubr.f32.mxu0 0.0
  %2154 = vmatmul.mubr.f32.gmra.mrb[0].mxu0 %v1723
  %v2155 = vpop.f32.mrb[0].mxu0
  %v2156 = vadd.f32 %v2011, %v2155
  %v2157 = vpop.f32.mrb[0].mxu0
  %2158 = vmatprep.mubr.f32.mxu0 0.0
  %2159 = vmatmul.mubr.f32.gmra.mrb[0].mxu0 %v1724
  %v2160 = vpop.f32.mrb[0].mxu0
  %v2161 = vadd.f32 %v2016, %v2160
  %v2162 = vpop.f32.mrb[0].mxu0
  %2163 = vmatprep.mubr.f32.mxu0 0.0
  %2164 = vmatmul.mubr.f32.gmra.mrb[0].mxu0 %v1725
  %v2165 = vpop.f32.mrb[0].mxu0
  %v2166 = vadd.f32 %v2021, %v2165
  %v2167 = vpop.f32.mrb[0].mxu0
  %2168 = vmatprep.mubr.f32.mxu0 0.0
  %2169 = vmatmul.mubr.f32.gmra.mrb[0].mxu0 %v1726
  %v2170 = vpop.f32.mrb[0].mxu0
  %v2171 = vadd.f32 %v2026, %v2170
  %v2172 = vpop.f32.mrb[0].mxu0
  %2173 = vmatprep.mubr.f32.mxu0 0.0
  %2174 = vmatmul.mubr.f32.gmra.mrb[0].mxu0 %v1727
  %v2175 = vpop.f32.mrb[0].mxu0
  %v2176 = vadd.f32 %v2031, %v2175
  %v2177 = vpop.f32.mrb[0].mxu0
  %2178 = vmatprep.mubr.f32.mxu0 0.0
  %2179 = vmatmul.mubr.f32.gmra.mrb[0].mxu0 %v1728
  %v2180 = vpop.f32.mrb[0].mxu0
  %v2181 = vadd.f32 %v2036, %v2180
  %v2182 = vpop.f32.mrb[0].mxu0
  %2183 = vmatprep.mubr.f32.mxu0 0.0
  %2184 = vmatmul.mubr.f32.gmra.mrb[0].mxu0 %v1729
  %v2185 = vpop.f32.mrb[0].mxu0
  %v2186 = vadd.f32 %v2041, %v2185
  %v2187 = vpop.f32.mrb[0].mxu0
  %2188 = vmatprep.mubr.f32.mxu0 0.0
  %2189 = vmatmul.mubr.f32.gmra.mrb[0].mxu0 %v1730
  %v2190 = vpop.f32.mrb[0].mxu0
  %v2191 = vadd.f32 %v2046, %v2190
  %v2192 = vpop.f32.mrb[0].mxu0
  %2193 = vmatprep.mubr.f32.mxu0 0.0
  %2194 = vmatmul.mubr.f32.gmra.mrb[0].mxu0 %v1731
  %v2195 = vpop.f32.mrb[0].mxu0
  %v2196 = vadd.f32 %v2051, %v2195
  %v2197 = vpop.f32.mrb[0].mxu0
  %2198 = vdwg.mxu0
  %2199 = vmatprep.subr.mxu0 0.0
  %2200 = vmatpush1.msra.mxu0 %v1815
  %2201 = vmatprep.subr.mxu0 0.0
  %2202 = vmatpush1.msra.mxu0 %v1820
  %2203 = vmatprep.subr.mxu0 0.0
  %2204 = vmatpush1.msra.mxu0 %v1825
  %2205 = vmatprep.subr.mxu0 0.0
  %2206 = vmatpush1.msra.mxu0 %v1830
  %2207 = vmatprep.subr.mxu0 0.0
  %2208 = vmatpush1.msra.mxu0 %v1835
  %2209 = vmatprep.subr.mxu0 0.0
  %2210 = vmatpush1.msra.mxu0 %v1840
  %2211 = vmatprep.subr.mxu0 0.0
  %2212 = vmatpush1.msra.mxu0 %v1845
  %2213 = vmatprep.subr.mxu0 0.0
  %2214 = vmatpush1.msra.mxu0 %v1850
  %2215 = vmatprep.subr.mxu0 0.0
  %2216 = vmatpush1.msra.mxu0 %v1855
  %2217 = vmatprep.subr.mxu0 0.0
  %2218 = vmatpush1.msra.mxu0 %v1860
  %2219 = vmatprep.subr.mxu0 0.0
  %2220 = vmatpush1.msra.mxu0 %v1865
  %2221 = vmatprep.subr.mxu0 0.0
  %2222 = vmatpush1.msra.mxu0 %v1870
  %2223 = vmatprep.subr.mxu0 0.0
  %2224 = vmatpush1.msra.mxu0 %v1875
  %2225 = vmatprep.subr.mxu0 0.0
  %2226 = vmatpush1.msra.mxu0 %v1880
  %2227 = vmatprep.subr.mxu0 0.0
  %2228 = vmatpush1.msra.mxu0 %v1885
  %2229 = vmatprep.subr.mxu0 0.0
  %2230 = vmatpush1.msra.mxu0 %v1890
  %2231 = vmatprep.subr.mxu0 0.0
  %2232 = vmatpush1.msra.mxu0 0.0
  %2233 = vmatprep.subr.mxu0 0.0
  %2234 = vmatpush1.msra.mxu0 0.0
  %2235 = vmatprep.subr.mxu0 0.0
  %2236 = vmatpush1.msra.mxu0 0.0
  %2237 = vmatprep.subr.mxu0 0.0
  %2238 = vmatpush1.msra.mxu0 0.0
  %2239 = vmatprep.subr.mxu0 0.0
  %2240 = vmatpush1.msra.mxu0 0.0
  %2241 = vmatprep.subr.mxu0 0.0
  %2242 = vmatpush1.msra.mxu0 0.0
  %2243 = vmatprep.subr.mxu0 0.0
  %2244 = vmatpush1.msra.mxu0 0.0
  %2245 = vmatprep.subr.mxu0 0.0
  %2246 = vmatpush1.msra.mxu0 0.0
  %2247 = vmatprep.subr.mxu0 0.0
  %2248 = vmatpush1.msra.mxu0 0.0
  %2249 = vmatprep.subr.mxu0 0.0
  %2250 = vmatpush1.msra.mxu0 0.0
  %2251 = vmatprep.subr.mxu0 0.0
  %2252 = vmatpush1.msra.mxu0 0.0
  %2253 = vmatprep.subr.mxu0 0.0
  %2254 = vmatpush1.msra.mxu0 0.0
  %2255 = vmatprep.subr.mxu0 0.0
  %2256 = vmatpush1.msra.mxu0 0.0
  %2257 = vmatprep.subr.mxu0 0.0
  %2258 = vmatpush1.msra.mxu0 0.0
  %2259 = vmatprep.subr.mxu0 0.0
  %2260 = vmatpush1.msra.mxu0 0.0
  %2261 = vmatprep.subr.mxu0 0.0
  %2262 = vmatpush1.msra.mxu0 0.0
  %2263 = vmatprep.mubr.f32.mxu0 0.0
  %2264 = vmatmul.mubr.f32.gmra.mrb[0].mxu0 %v26
  %v2265 = vpop.f32.mrb[0].mxu0
  %v2266 = vadd.f32 0.0, %v2265
  %v2267 = vpop.f32.mrb[0].mxu0
  %2268 = vmatprep.mubr.f32.mxu0 0.0
  %2269 = vmatmul.mubr.f32.gmra.mrb[0].mxu0 %v27
  %v2270 = vpop.f32.mrb[0].mxu0
  %v2271 = vadd.f32 0.0, %v2270
  %v2272 = vpop.f32.mrb[0].mxu0
  %2273 = vmatprep.mubr.f32.mxu0 0.0
  %2274 = vmatmul.mubr.f32.gmra.mrb[0].mxu0 %v28
  %v2275 = vpop.f32.mrb[0].mxu0
  %v2276 = vadd.f32 0.0, %v2275
  %v2277 = vpop.f32.mrb[0].mxu0
  %2278 = vmatprep.mubr.f32.mxu0 0.0
  %2279 = vmatmul.mubr.f32.gmra.mrb[0].mxu0 %v29
  %v2280 = vpop.f32.mrb[0].mxu0
  %v2281 = vadd.f32 0.0, %v2280
  %v2282 = vpop.f32.mrb[0].mxu0
  %2283 = vmatprep.mubr.f32.mxu0 0.0
  %2284 = vmatmul.mubr.f32.gmra.mrb[0].mxu0 %v30
  %v2285 = vpop.f32.mrb[0].mxu0
  %v2286 = vadd.f32 0.0, %v2285
  %v2287 = vpop.f32.mrb[0].mxu0
  %2288 = vmatprep.mubr.f32.mxu0 0.0
  %2289 = vmatmul.mubr.f32.gmra.mrb[0].mxu0 %v31
  %v2290 = vpop.f32.mrb[0].mxu0
  %v2291 = vadd.f32 0.0, %v2290
  %v2292 = vpop.f32.mrb[0].mxu0
  %2293 = vmatprep.mubr.f32.mxu0 0.0
  %2294 = vmatmul.mubr.f32.gmra.mrb[0].mxu0 %v32
  %v2295 = vpop.f32.mrb[0].mxu0
  %v2296 = vadd.f32 0.0, %v2295
  %v2297 = vpop.f32.mrb[0].mxu0
  %2298 = vmatprep.mubr.f32.mxu0 0.0
  %2299 = vmatmul.mubr.f32.gmra.mrb[0].mxu0 %v33
  %v2300 = vpop.f32.mrb[0].mxu0
  %v2301 = vadd.f32 0.0, %v2300
  %v2302 = vpop.f32.mrb[0].mxu0
  %2303 = vmatprep.mubr.f32.mxu0 0.0
  %2304 = vmatmul.mubr.f32.gmra.mrb[0].mxu0 %v34
  %v2305 = vpop.f32.mrb[0].mxu0
  %v2306 = vadd.f32 0.0, %v2305
  %v2307 = vpop.f32.mrb[0].mxu0
  %2308 = vmatprep.mubr.f32.mxu0 0.0
  %2309 = vmatmul.mubr.f32.gmra.mrb[0].mxu0 %v35
  %v2310 = vpop.f32.mrb[0].mxu0
  %v2311 = vadd.f32 0.0, %v2310
  %v2312 = vpop.f32.mrb[0].mxu0
  %2313 = vmatprep.mubr.f32.mxu0 0.0
  %2314 = vmatmul.mubr.f32.gmra.mrb[0].mxu0 %v36
  %v2315 = vpop.f32.mrb[0].mxu0
  %v2316 = vadd.f32 0.0, %v2315
  %v2317 = vpop.f32.mrb[0].mxu0
  %2318 = vmatprep.mubr.f32.mxu0 0.0
  %2319 = vmatmul.mubr.f32.gmra.mrb[0].mxu0 %v37
  %v2320 = vpop.f32.mrb[0].mxu0
  %v2321 = vadd.f32 0.0, %v2320
  %v2322 = vpop.f32.mrb[0].mxu0
  %2323 = vmatprep.mubr.f32.mxu0 0.0
  %2324 = vmatmul.mubr.f32.gmra.mrb[0].mxu0 %v38
  %v2325 = vpop.f32.mrb[0].mxu0
  %v2326 = vadd.f32 0.0, %v2325
  %v2327 = vpop.f32.mrb[0].mxu0
  %2328 = vmatprep.mubr.f32.mxu0 0.0
  %2329 = vmatmul.mubr.f32.gmra.mrb[0].mxu0 %v39
  %v2330 = vpop.f32.mrb[0].mxu0
  %v2331 = vadd.f32 0.0, %v2330
  %v2332 = vpop.f32.mrb[0].mxu0
  %2333 = vmatprep.mubr.f32.mxu0 0.0
  %2334 = vmatmul.mubr.f32.gmra.mrb[0].mxu0 %v40
  %v2335 = vpop.f32.mrb[0].mxu0
  %v2336 = vadd.f32 0.0, %v2335
  %v2337 = vpop.f32.mrb[0].mxu0
  %2338 = vmatprep.mubr.f32.mxu0 0.0
  %2339 = vmatmul.mubr.f32.gmra.mrb[0].mxu0 %v41
  %v2340 = vpop.f32.mrb[0].mxu0
  %v2341 = vadd.f32 0.0, %v2340
  %v2342 = vpop.f32.mrb[0].mxu0
  %2343 = vdwg.mxu0
  %v2344 = vmul.f32 %v2266, 2.0
  %v2345 = vmul.f32 %v2271, 2.0
  %v2346 = vmul.f32 %v2276, 2.0
  %v2347 = vmul.f32 %v2281, 2.0
  %v2348 = vmul.f32 %v2286, 2.0
  %v2349 = vmul.f32 %v2291, 2.0
  %v2350 = vmul.f32 %v2296, 2.0
  %v2351 = vmul.f32 %v2301, 2.0
  %v2352 = vmul.f32 %v2306, 2.0
  %v2353 = vmul.f32 %v2311, 2.0
  %v2354 = vmul.f32 %v2316, 2.0
  %v2355 = vmul.f32 %v2321, 2.0
  %v2356 = vmul.f32 %v2326, 2.0
  %v2357 = vmul.f32 %v2331, 2.0
  %v2358 = vmul.f32 %v2336, 2.0
  %v2359 = vmul.f32 %v2341, 2.0
  %v2360 = vsub.f32 %v2344, %v1716
  %v2361 = vsub.f32 %v2345, %v1717
  %v2362 = vsub.f32 %v2346, %v1718
  %v2363 = vsub.f32 %v2347, %v1719
  %v2364 = vsub.f32 %v2348, %v1720
  %v2365 = vsub.f32 %v2349, %v1721
  %v2366 = vsub.f32 %v2350, %v1722
  %v2367 = vsub.f32 %v2351, %v1723
  %v2368 = vsub.f32 %v2352, %v1724
  %v2369 = vsub.f32 %v2353, %v1725
  %v2370 = vsub.f32 %v2354, %v1726
  %v2371 = vsub.f32 %v2355, %v1727
  %v2372 = vsub.f32 %v2356, %v1728
  %v2373 = vsub.f32 %v2357, %v1729
  %v2374 = vsub.f32 %v2358, %v1730
  %v2375 = vsub.f32 %v2359, %v1731
  %v2376 = vld [vmem:[%s4 + $0x100] sm:$0xff]
  %v2377 = vld [vmem:[%s4 + $0x108] sm:$0xff]
  %v2378 = vld [vmem:[%s4 + $0x110] sm:$0xff]
  %v2379 = vld [vmem:[%s4 + $0x118] sm:$0xff]
  %v2380 = vld [vmem:[%s4 + $0x120] sm:$0xff]
  %v2381 = vld [vmem:[%s4 + $0x128] sm:$0xff]
  %v2382 = vld [vmem:[%s4 + $0x130] sm:$0xff]
  %v2383 = vld [vmem:[%s4 + $0x138] sm:$0xff]
  %v2384 = vld [vmem:[%s4 + $0x140] sm:$0xff]
  %v2385 = vld [vmem:[%s4 + $0x148] sm:$0xff]
  %v2386 = vld [vmem:[%s4 + $0x150] sm:$0xff]
  %v2387 = vld [vmem:[%s4 + $0x158] sm:$0xff]
  %v2388 = vld [vmem:[%s4 + $0x160] sm:$0xff]
  %v2389 = vld [vmem:[%s4 + $0x168] sm:$0xff]
  %v2390 = vld [vmem:[%s4 + $0x170] sm:$0xff]
  %v2391 = vld [vmem:[%s4 + $0x178] sm:$0xff]
  %2392 = vmatprep.subr.mxu0 0.0
  %2393 = vmatpush1.msra.mxu0 %v2376
  %2394 = vmatprep.subr.mxu0 0.0
  %2395 = vmatpush1.msra.mxu0 %v2377
  %2396 = vmatprep.subr.mxu0 0.0
  %2397 = vmatpush1.msra.mxu0 %v2378
  %2398 = vmatprep.subr.mxu0 0.0
  %2399 = vmatpush1.msra.mxu0 %v2379
  %2400 = vmatprep.subr.mxu0 0.0
  %2401 = vmatpush1.msra.mxu0 %v2380
  %2402 = vmatprep.subr.mxu0 0.0
  %2403 = vmatpush1.msra.mxu0 %v2381
  %2404 = vmatprep.subr.mxu0 0.0
  %2405 = vmatpush1.msra.mxu0 %v2382
  %2406 = vmatprep.subr.mxu0 0.0
  %2407 = vmatpush1.msra.mxu0 %v2383
  %2408 = vmatprep.subr.mxu0 0.0
  %2409 = vmatpush1.msra.mxu0 %v2384
  %2410 = vmatprep.subr.mxu0 0.0
  %2411 = vmatpush1.msra.mxu0 %v2385
  %2412 = vmatprep.subr.mxu0 0.0
  %2413 = vmatpush1.msra.mxu0 %v2386
  %2414 = vmatprep.subr.mxu0 0.0
  %2415 = vmatpush1.msra.mxu0 %v2387
  %2416 = vmatprep.subr.mxu0 0.0
  %2417 = vmatpush1.msra.mxu0 %v2388
  %2418 = vmatprep.subr.mxu0 0.0
  %2419 = vmatpush1.msra.mxu0 %v2389
  %2420 = vmatprep.subr.mxu0 0.0
  %2421 = vmatpush1.msra.mxu0 %v2390
  %2422 = vmatprep.subr.mxu0 0.0
  %2423 = vmatpush1.msra.mxu0 %v2391
  %2424 = vmatprep.subr.mxu0 0.0
  %2425 = vmatpush1.msra.mxu0 0.0
  %2426 = vmatprep.subr.mxu0 0.0
  %2427 = vmatpush1.msra.mxu0 0.0
  %2428 = vmatprep.subr.mxu0 0.0
  %2429 = vmatpush1.msra.mxu0 0.0
  %2430 = vmatprep.subr.mxu0 0.0
  %2431 = vmatpush1.msra.mxu0 0.0
  %2432 = vmatprep.subr.mxu0 0.0
  %2433 = vmatpush1.msra.mxu0 0.0
  %2434 = vmatprep.subr.mxu0 0.0
  %2435 = vmatpush1.msra.mxu0 0.0
  %2436 = vmatprep.subr.mxu0 0.0
  %2437 = vmatpush1.msra.mxu0 0.0
  %2438 = vmatprep.subr.mxu0 0.0
  %2439 = vmatpush1.msra.mxu0 0.0
  %2440 = vmatprep.subr.mxu0 0.0
  %2441 = vmatpush1.msra.mxu0 0.0
  %2442 = vmatprep.subr.mxu0 0.0
  %2443 = vmatpush1.msra.mxu0 0.0
  %2444 = vmatprep.subr.mxu0 0.0
  %2445 = vmatpush1.msra.mxu0 0.0
  %2446 = vmatprep.subr.mxu0 0.0
  %2447 = vmatpush1.msra.mxu0 0.0
  %2448 = vmatprep.subr.mxu0 0.0
  %2449 = vmatpush1.msra.mxu0 0.0
  %2450 = vmatprep.subr.mxu0 0.0
  %2451 = vmatpush1.msra.mxu0 0.0
  %2452 = vmatprep.subr.mxu0 0.0
  %2453 = vmatpush1.msra.mxu0 0.0
  %2454 = vmatprep.subr.mxu0 0.0
  %2455 = vmatpush1.msra.mxu0 0.0
  %2456 = vmatprep.mubr.f32.mxu0 0.0
  %2457 = vmatmul.mubr.f32.gmra.mrb[0].mxu0 %v2360
  %v2458 = vpop.f32.mrb[0].mxu0
  %v2459 = vadd.f32 0.0, %v2458
  %v2460 = vpop.f32.mrb[0].mxu0
  %2461 = vmatprep.mubr.f32.mxu0 0.0
  %2462 = vmatmul.mubr.f32.gmra.mrb[0].mxu0 %v2361
  %v2463 = vpop.f32.mrb[0].mxu0
  %v2464 = vadd.f32 0.0, %v2463
  %v2465 = vpop.f32.mrb[0].mxu0
  %2466 = vmatprep.mubr.f32.mxu0 0.0
  %2467 = vmatmul.mubr.f32.gmra.mrb[0].mxu0 %v2362
  %v2468 = vpop.f32.mrb[0].mxu0
  %v2469 = vadd.f32 0.0, %v2468
  %v2470 = vpop.f32.mrb[0].mxu0
  %2471 = vmatprep.mubr.f32.mxu0 0.0
  %2472 = vmatmul.mubr.f32.gmra.mrb[0].mxu0 %v2363
  %v2473 = vpop.f32.mrb[0].mxu0
  %v2474 = vadd.f32 0.0, %v2473
  %v2475 = vpop.f32.mrb[0].mxu0
  %2476 = vmatprep.mubr.f32.mxu0 0.0
  %2477 = vmatmul.mubr.f32.gmra.mrb[0].mxu0 %v2364
  %v2478 = vpop.f32.mrb[0].mxu0
  %v2479 = vadd.f32 0.0, %v2478
  %v2480 = vpop.f32.mrb[0].mxu0
  %2481 = vmatprep.mubr.f32.mxu0 0.0
  %2482 = vmatmul.mubr.f32.gmra.mrb[0].mxu0 %v2365
  %v2483 = vpop.f32.mrb[0].mxu0
  %v2484 = vadd.f32 0.0, %v2483
  %v2485 = vpop.f32.mrb[0].mxu0
  %2486 = vmatprep.mubr.f32.mxu0 0.0
  %2487 = vmatmul.mubr.f32.gmra.mrb[0].mxu0 %v2366
  %v2488 = vpop.f32.mrb[0].mxu0
  %v2489 = vadd.f32 0.0, %v2488
  %v2490 = vpop.f32.mrb[0].mxu0
  %2491 = vmatprep.mubr.f32.mxu0 0.0
  %2492 = vmatmul.mubr.f32.gmra.mrb[0].mxu0 %v2367
  %v2493 = vpop.f32.mrb[0].mxu0
  %v2494 = vadd.f32 0.0, %v2493
  %v2495 = vpop.f32.mrb[0].mxu0
  %2496 = vmatprep.mubr.f32.mxu0 0.0
  %2497 = vmatmul.mubr.f32.gmra.mrb[0].mxu0 %v2368
  %v2498 = vpop.f32.mrb[0].mxu0
  %v2499 = vadd.f32 0.0, %v2498
  %v2500 = vpop.f32.mrb[0].mxu0
  %2501 = vmatprep.mubr.f32.mxu0 0.0
  %2502 = vmatmul.mubr.f32.gmra.mrb[0].mxu0 %v2369
  %v2503 = vpop.f32.mrb[0].mxu0
  %v2504 = vadd.f32 0.0, %v2503
  %v2505 = vpop.f32.mrb[0].mxu0
  %2506 = vmatprep.mubr.f32.mxu0 0.0
  %2507 = vmatmul.mubr.f32.gmra.mrb[0].mxu0 %v2370
  %v2508 = vpop.f32.mrb[0].mxu0
  %v2509 = vadd.f32 0.0, %v2508
  %v2510 = vpop.f32.mrb[0].mxu0
  %2511 = vmatprep.mubr.f32.mxu0 0.0
  %2512 = vmatmul.mubr.f32.gmra.mrb[0].mxu0 %v2371
  %v2513 = vpop.f32.mrb[0].mxu0
  %v2514 = vadd.f32 0.0, %v2513
  %v2515 = vpop.f32.mrb[0].mxu0
  %2516 = vmatprep.mubr.f32.mxu0 0.0
  %2517 = vmatmul.mubr.f32.gmra.mrb[0].mxu0 %v2372
  %v2518 = vpop.f32.mrb[0].mxu0
  %v2519 = vadd.f32 0.0, %v2518
  %v2520 = vpop.f32.mrb[0].mxu0
  %2521 = vmatprep.mubr.f32.mxu0 0.0
  %2522 = vmatmul.mubr.f32.gmra.mrb[0].mxu0 %v2373
  %v2523 = vpop.f32.mrb[0].mxu0
  %v2524 = vadd.f32 0.0, %v2523
  %v2525 = vpop.f32.mrb[0].mxu0
  %2526 = vmatprep.mubr.f32.mxu0 0.0
  %2527 = vmatmul.mubr.f32.gmra.mrb[0].mxu0 %v2374
  %v2528 = vpop.f32.mrb[0].mxu0
  %v2529 = vadd.f32 0.0, %v2528
  %v2530 = vpop.f32.mrb[0].mxu0
  %2531 = vmatprep.mubr.f32.mxu0 0.0
  %2532 = vmatmul.mubr.f32.gmra.mrb[0].mxu0 %v2375
  %v2533 = vpop.f32.mrb[0].mxu0
  %v2534 = vadd.f32 0.0, %v2533
  %v2535 = vpop.f32.mrb[0].mxu0
  %2536 = vdwg.mxu0
  %v2537 = vadd.f32 %v2121, %v2459
  %v2538 = vadd.f32 %v2126, %v2464
  %v2539 = vadd.f32 %v2131, %v2469
  %v2540 = vadd.f32 %v2136, %v2474
  %v2541 = vadd.f32 %v2141, %v2479
  %v2542 = vadd.f32 %v2146, %v2484
  %v2543 = vadd.f32 %v2151, %v2489
  %v2544 = vadd.f32 %v2156, %v2494
  %v2545 = vadd.f32 %v2161, %v2499
  %v2546 = vadd.f32 %v2166, %v2504
  %v2547 = vadd.f32 %v2171, %v2509
  %v2548 = vadd.f32 %v2176, %v2514
  %v2549 = vadd.f32 %v2181, %v2519
  %v2550 = vadd.f32 %v2186, %v2524
  %v2551 = vadd.f32 %v2191, %v2529
  %v2552 = vadd.f32 %v2196, %v2534
  %v2553 = vmax.f32 %v2537, 0.0
  %v2554 = vmax.f32 %v2538, 0.0
  %v2555 = vmax.f32 %v2539, 0.0
  %v2556 = vmax.f32 %v2540, 0.0
  %v2557 = vmax.f32 %v2541, 0.0
  %v2558 = vmax.f32 %v2542, 0.0
  %v2559 = vmax.f32 %v2543, 0.0
  %v2560 = vmax.f32 %v2544, 0.0
  %v2561 = vmax.f32 %v2545, 0.0
  %v2562 = vmax.f32 %v2546, 0.0
  %v2563 = vmax.f32 %v2547, 0.0
  %v2564 = vmax.f32 %v2548, 0.0
  %v2565 = vmax.f32 %v2549, 0.0
  %v2566 = vmax.f32 %v2550, 0.0
  %v2567 = vmax.f32 %v2551, 0.0
  %v2568 = vmax.f32 %v2552, 0.0
  %v2569 = vld [vmem:[%s5] sm:$0xff]
  %v2570 = vld [vmem:[%s5 + $0x8] sm:$0xff]
  %v2571 = vld [vmem:[%s5 + $0x10] sm:$0xff]
  %v2572 = vld [vmem:[%s5 + $0x18] sm:$0xff]
  %v2573 = vld [vmem:[%s5 + $0x20] sm:$0xff]
  %v2574 = vld [vmem:[%s5 + $0x28] sm:$0xff]
  %v2575 = vld [vmem:[%s5 + $0x30] sm:$0xff]
  %v2576 = vld [vmem:[%s5 + $0x38] sm:$0xff]
  %v2577 = vld [vmem:[%s5 + $0x40] sm:$0xff]
  %v2578 = vld [vmem:[%s5 + $0x48] sm:$0xff]
  %v2579 = vld [vmem:[%s5 + $0x50] sm:$0xff]
  %v2580 = vld [vmem:[%s5 + $0x58] sm:$0xff]
  %v2581 = vld [vmem:[%s5 + $0x60] sm:$0xff]
  %v2582 = vld [vmem:[%s5 + $0x68] sm:$0xff]
  %v2583 = vld [vmem:[%s5 + $0x70] sm:$0xff]
  %v2584 = vld [vmem:[%s5 + $0x78] sm:$0xff]
  %2585 = vmatprep.subr.mxu0 0.0
  %2586 = vmatpush1.msra.mxu0 %v2553
  %2587 = vmatprep.subr.mxu0 0.0
  %2588 = vmatpush1.msra.mxu0 %v2554
  %2589 = vmatprep.subr.mxu0 0.0
  %2590 = vmatpush1.msra.mxu0 %v2555
  %2591 = vmatprep.subr.mxu0 0.0
  %2592 = vmatpush1.msra.mxu0 %v2556
  %2593 = vmatprep.subr.mxu0 0.0
  %2594 = vmatpush1.msra.mxu0 %v2557
  %2595 = vmatprep.subr.mxu0 0.0
  %2596 = vmatpush1.msra.mxu0 %v2558
  %2597 = vmatprep.subr.mxu0 0.0
  %2598 = vmatpush1.msra.mxu0 %v2559
  %2599 = vmatprep.subr.mxu0 0.0
  %2600 = vmatpush1.msra.mxu0 %v2560
  %2601 = vmatprep.subr.mxu0 0.0
  %2602 = vmatpush1.msra.mxu0 %v2561
  %2603 = vmatprep.subr.mxu0 0.0
  %2604 = vmatpush1.msra.mxu0 %v2562
  %2605 = vmatprep.subr.mxu0 0.0
  %2606 = vmatpush1.msra.mxu0 %v2563
  %2607 = vmatprep.subr.mxu0 0.0
  %2608 = vmatpush1.msra.mxu0 %v2564
  %2609 = vmatprep.subr.mxu0 0.0
  %2610 = vmatpush1.msra.mxu0 %v2565
  %2611 = vmatprep.subr.mxu0 0.0
  %2612 = vmatpush1.msra.mxu0 %v2566
  %2613 = vmatprep.subr.mxu0 0.0
  %2614 = vmatpush1.msra.mxu0 %v2567
  %2615 = vmatprep.subr.mxu0 0.0
  %2616 = vmatpush1.msra.mxu0 %v2568
  %2617 = vmatprep.subr.mxu0 0.0
  %2618 = vmatpush1.msra.mxu0 0.0
  %2619 = vmatprep.subr.mxu0 0.0
  %2620 = vmatpush1.msra.mxu0 0.0
  %2621 = vmatprep.subr.mxu0 0.0
  %2622 = vmatpush1.msra.mxu0 0.0
  %2623 = vmatprep.subr.mxu0 0.0
  %2624 = vmatpush1.msra.mxu0 0.0
  %2625 = vmatprep.subr.mxu0 0.0
  %2626 = vmatpush1.msra.mxu0 0.0
  %2627 = vmatprep.subr.mxu0 0.0
  %2628 = vmatpush1.msra.mxu0 0.0
  %2629 = vmatprep.subr.mxu0 0.0
  %2630 = vmatpush1.msra.mxu0 0.0
  %2631 = vmatprep.subr.mxu0 0.0
  %2632 = vmatpush1.msra.mxu0 0.0
  %2633 = vmatprep.subr.mxu0 0.0
  %2634 = vmatpush1.msra.mxu0 0.0
  %2635 = vmatprep.subr.mxu0 0.0
  %2636 = vmatpush1.msra.mxu0 0.0
  %2637 = vmatprep.subr.mxu0 0.0
  %2638 = vmatpush1.msra.mxu0 0.0
  %2639 = vmatprep.subr.mxu0 0.0
  %2640 = vmatpush1.msra.mxu0 0.0
  %2641 = vmatprep.subr.mxu0 0.0
  %2642 = vmatpush1.msra.mxu0 0.0
  %2643 = vmatprep.subr.mxu0 0.0
  %2644 = vmatpush1.msra.mxu0 0.0
  %2645 = vmatprep.subr.mxu0 0.0
  %2646 = vmatpush1.msra.mxu0 0.0
  %2647 = vmatprep.subr.mxu0 0.0
  %2648 = vmatpush1.msra.mxu0 0.0
  %2649 = vmatprep.mubr.f32.mxu0 0.0
  %2650 = vmatmul.mubr.f32.gmra.mrb[0].mxu0 %v26
  %v2651 = vpop.f32.mrb[0].mxu0
  %v2652 = vadd.f32 0.0, %v2651
  %v2653 = vpop.f32.mrb[0].mxu0
  %2654 = vmatprep.mubr.f32.mxu0 0.0
  %2655 = vmatmul.mubr.f32.gmra.mrb[0].mxu0 %v27
  %v2656 = vpop.f32.mrb[0].mxu0
  %v2657 = vadd.f32 0.0, %v2656
  %v2658 = vpop.f32.mrb[0].mxu0
  %2659 = vmatprep.mubr.f32.mxu0 0.0
  %2660 = vmatmul.mubr.f32.gmra.mrb[0].mxu0 %v28
  %v2661 = vpop.f32.mrb[0].mxu0
  %v2662 = vadd.f32 0.0, %v2661
  %v2663 = vpop.f32.mrb[0].mxu0
  %2664 = vmatprep.mubr.f32.mxu0 0.0
  %2665 = vmatmul.mubr.f32.gmra.mrb[0].mxu0 %v29
  %v2666 = vpop.f32.mrb[0].mxu0
  %v2667 = vadd.f32 0.0, %v2666
  %v2668 = vpop.f32.mrb[0].mxu0
  %2669 = vmatprep.mubr.f32.mxu0 0.0
  %2670 = vmatmul.mubr.f32.gmra.mrb[0].mxu0 %v30
  %v2671 = vpop.f32.mrb[0].mxu0
  %v2672 = vadd.f32 0.0, %v2671
  %v2673 = vpop.f32.mrb[0].mxu0
  %2674 = vmatprep.mubr.f32.mxu0 0.0
  %2675 = vmatmul.mubr.f32.gmra.mrb[0].mxu0 %v31
  %v2676 = vpop.f32.mrb[0].mxu0
  %v2677 = vadd.f32 0.0, %v2676
  %v2678 = vpop.f32.mrb[0].mxu0
  %2679 = vmatprep.mubr.f32.mxu0 0.0
  %2680 = vmatmul.mubr.f32.gmra.mrb[0].mxu0 %v32
  %v2681 = vpop.f32.mrb[0].mxu0
  %v2682 = vadd.f32 0.0, %v2681
  %v2683 = vpop.f32.mrb[0].mxu0
  %2684 = vmatprep.mubr.f32.mxu0 0.0
  %2685 = vmatmul.mubr.f32.gmra.mrb[0].mxu0 %v33
  %v2686 = vpop.f32.mrb[0].mxu0
  %v2687 = vadd.f32 0.0, %v2686
  %v2688 = vpop.f32.mrb[0].mxu0
  %2689 = vmatprep.mubr.f32.mxu0 0.0
  %2690 = vmatmul.mubr.f32.gmra.mrb[0].mxu0 %v34
  %v2691 = vpop.f32.mrb[0].mxu0
  %v2692 = vadd.f32 0.0, %v2691
  %v2693 = vpop.f32.mrb[0].mxu0
  %2694 = vmatprep.mubr.f32.mxu0 0.0
  %2695 = vmatmul.mubr.f32.gmra.mrb[0].mxu0 %v35
  %v2696 = vpop.f32.mrb[0].mxu0
  %v2697 = vadd.f32 0.0, %v2696
  %v2698 = vpop.f32.mrb[0].mxu0
  %2699 = vmatprep.mubr.f32.mxu0 0.0
  %2700 = vmatmul.mubr.f32.gmra.mrb[0].mxu0 %v36
  %v2701 = vpop.f32.mrb[0].mxu0
  %v2702 = vadd.f32 0.0, %v2701
  %v2703 = vpop.f32.mrb[0].mxu0
  %2704 = vmatprep.mubr.f32.mxu0 0.0
  %2705 = vmatmul.mubr.f32.gmra.mrb[0].mxu0 %v37
  %v2706 = vpop.f32.mrb[0].mxu0
  %v2707 = vadd.f32 0.0, %v2706
  %v2708 = vpop.f32.mrb[0].mxu0
  %2709 = vmatprep.mubr.f32.mxu0 0.0
  %2710 = vmatmul.mubr.f32.gmra.mrb[0].mxu0 %v38
  %v2711 = vpop.f32.mrb[0].mxu0
  %v2712 = vadd.f32 0.0, %v2711
  %v2713 = vpop.f32.mrb[0].mxu0
  %2714 = vmatprep.mubr.f32.mxu0 0.0
  %2715 = vmatmul.mubr.f32.gmra.mrb[0].mxu0 %v39
  %v2716 = vpop.f32.mrb[0].mxu0
  %v2717 = vadd.f32 0.0, %v2716
  %v2718 = vpop.f32.mrb[0].mxu0
  %2719 = vmatprep.mubr.f32.mxu0 0.0
  %2720 = vmatmul.mubr.f32.gmra.mrb[0].mxu0 %v40
  %v2721 = vpop.f32.mrb[0].mxu0
  %v2722 = vadd.f32 0.0, %v2721
  %v2723 = vpop.f32.mrb[0].mxu0
  %2724 = vmatprep.mubr.f32.mxu0 0.0
  %2725 = vmatmul.mubr.f32.gmra.mrb[0].mxu0 %v41
  %v2726 = vpop.f32.mrb[0].mxu0
  %v2727 = vadd.f32 0.0, %v2726
  %v2728 = vpop.f32.mrb[0].mxu0
  %2729 = vdwg.mxu0
  %v2730 = vld [vmem:[%s5 + $0x80] sm:$0xff]
  %v2731 = vld [vmem:[%s5 + $0x88] sm:$0xff]
  %v2732 = vld [vmem:[%s5 + $0x90] sm:$0xff]
  %v2733 = vld [vmem:[%s5 + $0x98] sm:$0xff]
  %v2734 = vld [vmem:[%s5 + $0xa0] sm:$0xff]
  %v2735 = vld [vmem:[%s5 + $0xa8] sm:$0xff]
  %v2736 = vld [vmem:[%s5 + $0xb0] sm:$0xff]
  %v2737 = vld [vmem:[%s5 + $0xb8] sm:$0xff]
  %v2738 = vld [vmem:[%s5 + $0xc0] sm:$0xff]
  %v2739 = vld [vmem:[%s5 + $0xc8] sm:$0xff]
  %v2740 = vld [vmem:[%s5 + $0xd0] sm:$0xff]
  %v2741 = vld [vmem:[%s5 + $0xd8] sm:$0xff]
  %v2742 = vld [vmem:[%s5 + $0xe0] sm:$0xff]
  %v2743 = vld [vmem:[%s5 + $0xe8] sm:$0xff]
  %v2744 = vld [vmem:[%s5 + $0xf0] sm:$0xff]
  %v2745 = vld [vmem:[%s5 + $0xf8] sm:$0xff]
  %2746 = vmatprep.subr.mxu0 0.0
  %2747 = vmatpush1.msra.mxu0 %v2730
  %2748 = vmatprep.subr.mxu0 0.0
  %2749 = vmatpush1.msra.mxu0 %v2731
  %2750 = vmatprep.subr.mxu0 0.0
  %2751 = vmatpush1.msra.mxu0 %v2732
  %2752 = vmatprep.subr.mxu0 0.0
  %2753 = vmatpush1.msra.mxu0 %v2733
  %2754 = vmatprep.subr.mxu0 0.0
  %2755 = vmatpush1.msra.mxu0 %v2734
  %2756 = vmatprep.subr.mxu0 0.0
  %2757 = vmatpush1.msra.mxu0 %v2735
  %2758 = vmatprep.subr.mxu0 0.0
  %2759 = vmatpush1.msra.mxu0 %v2736
  %2760 = vmatprep.subr.mxu0 0.0
  %2761 = vmatpush1.msra.mxu0 %v2737
  %2762 = vmatprep.subr.mxu0 0.0
  %2763 = vmatpush1.msra.mxu0 %v2738
  %2764 = vmatprep.subr.mxu0 0.0
  %2765 = vmatpush1.msra.mxu0 %v2739
  %2766 = vmatprep.subr.mxu0 0.0
  %2767 = vmatpush1.msra.mxu0 %v2740
  %2768 = vmatprep.subr.mxu0 0.0
  %2769 = vmatpush1.msra.mxu0 %v2741
  %2770 = vmatprep.subr.mxu0 0.0
  %2771 = vmatpush1.msra.mxu0 %v2742
  %2772 = vmatprep.subr.mxu0 0.0
  %2773 = vmatpush1.msra.mxu0 %v2743
  %2774 = vmatprep.subr.mxu0 0.0
  %2775 = vmatpush1.msra.mxu0 %v2744
  %2776 = vmatprep.subr.mxu0 0.0
  %2777 = vmatpush1.msra.mxu0 %v2745
  %2778 = vmatprep.subr.mxu0 0.0
  %2779 = vmatpush1.msra.mxu0 0.0
  %2780 = vmatprep.subr.mxu0 0.0
  %2781 = vmatpush1.msra.mxu0 0.0
  %2782 = vmatprep.subr.mxu0 0.0
  %2783 = vmatpush1.msra.mxu0 0.0
  %2784 = vmatprep.subr.mxu0 0.0
  %2785 = vmatpush1.msra.mxu0 0.0
  %2786 = vmatprep.subr.mxu0 0.0
  %2787 = vmatpush1.msra.mxu0 0.0
  %2788 = vmatprep.subr.mxu0 0.0
  %2789 = vmatpush1.msra.mxu0 0.0
  %2790 = vmatprep.subr.mxu0 0.0
  %2791 = vmatpush1.msra.mxu0 0.0
  %2792 = vmatprep.subr.mxu0 0.0
  %2793 = vmatpush1.msra.mxu0 0.0
  %2794 = vmatprep.subr.mxu0 0.0
  %2795 = vmatpush1.msra.mxu0 0.0
  %2796 = vmatprep.subr.mxu0 0.0
  %2797 = vmatpush1.msra.mxu0 0.0
  %2798 = vmatprep.subr.mxu0 0.0
  %2799 = vmatpush1.msra.mxu0 0.0
  %2800 = vmatprep.subr.mxu0 0.0
  %2801 = vmatpush1.msra.mxu0 0.0
  %2802 = vmatprep.subr.mxu0 0.0
  %2803 = vmatpush1.msra.mxu0 0.0
  %2804 = vmatprep.subr.mxu0 0.0
  %2805 = vmatpush1.msra.mxu0 0.0
  %2806 = vmatprep.subr.mxu0 0.0
  %2807 = vmatpush1.msra.mxu0 0.0
  %2808 = vmatprep.subr.mxu0 0.0
  %2809 = vmatpush1.msra.mxu0 0.0
  %2810 = vmatprep.mubr.f32.mxu0 0.0
  %2811 = vmatmul.mubr.f32.gmra.mrb[0].mxu0 %v2652
  %v2812 = vpop.f32.mrb[0].mxu0
  %v2813 = vadd.f32 0.0, %v2812
  %v2814 = vpop.f32.mrb[0].mxu0
  %2815 = vmatprep.mubr.f32.mxu0 0.0
  %2816 = vmatmul.mubr.f32.gmra.mrb[0].mxu0 %v2657
  %v2817 = vpop.f32.mrb[0].mxu0
  %v2818 = vadd.f32 0.0, %v2817
  %v2819 = vpop.f32.mrb[0].mxu0
  %2820 = vmatprep.mubr.f32.mxu0 0.0
  %2821 = vmatmul.mubr.f32.gmra.mrb[0].mxu0 %v2662
  %v2822 = vpop.f32.mrb[0].mxu0
  %v2823 = vadd.f32 0.0, %v2822
  %v2824 = vpop.f32.mrb[0].mxu0
  %2825 = vmatprep.mubr.f32.mxu0 0.0
  %2826 = vmatmul.mubr.f32.gmra.mrb[0].mxu0 %v2667
  %v2827 = vpop.f32.mrb[0].mxu0
  %v2828 = vadd.f32 0.0, %v2827
  %v2829 = vpop.f32.mrb[0].mxu0
  %2830 = vmatprep.mubr.f32.mxu0 0.0
  %2831 = vmatmul.mubr.f32.gmra.mrb[0].mxu0 %v2672
  %v2832 = vpop.f32.mrb[0].mxu0
  %v2833 = vadd.f32 0.0, %v2832
  %v2834 = vpop.f32.mrb[0].mxu0
  %2835 = vmatprep.mubr.f32.mxu0 0.0
  %2836 = vmatmul.mubr.f32.gmra.mrb[0].mxu0 %v2677
  %v2837 = vpop.f32.mrb[0].mxu0
  %v2838 = vadd.f32 0.0, %v2837
  %v2839 = vpop.f32.mrb[0].mxu0
  %2840 = vmatprep.mubr.f32.mxu0 0.0
  %2841 = vmatmul.mubr.f32.gmra.mrb[0].mxu0 %v2682
  %v2842 = vpop.f32.mrb[0].mxu0
  %v2843 = vadd.f32 0.0, %v2842
  %v2844 = vpop.f32.mrb[0].mxu0
  %2845 = vmatprep.mubr.f32.mxu0 0.0
  %2846 = vmatmul.mubr.f32.gmra.mrb[0].mxu0 %v2687
  %v2847 = vpop.f32.mrb[0].mxu0
  %v2848 = vadd.f32 0.0, %v2847
  %v2849 = vpop.f32.mrb[0].mxu0
  %2850 = vmatprep.mubr.f32.mxu0 0.0
  %2851 = vmatmul.mubr.f32.gmra.mrb[0].mxu0 %v2692
  %v2852 = vpop.f32.mrb[0].mxu0
  %v2853 = vadd.f32 0.0, %v2852
  %v2854 = vpop.f32.mrb[0].mxu0
  %2855 = vmatprep.mubr.f32.mxu0 0.0
  %2856 = vmatmul.mubr.f32.gmra.mrb[0].mxu0 %v2697
  %v2857 = vpop.f32.mrb[0].mxu0
  %v2858 = vadd.f32 0.0, %v2857
  %v2859 = vpop.f32.mrb[0].mxu0
  %2860 = vmatprep.mubr.f32.mxu0 0.0
  %2861 = vmatmul.mubr.f32.gmra.mrb[0].mxu0 %v2702
  %v2862 = vpop.f32.mrb[0].mxu0
  %v2863 = vadd.f32 0.0, %v2862
  %v2864 = vpop.f32.mrb[0].mxu0
  %2865 = vmatprep.mubr.f32.mxu0 0.0
  %2866 = vmatmul.mubr.f32.gmra.mrb[0].mxu0 %v2707
  %v2867 = vpop.f32.mrb[0].mxu0
  %v2868 = vadd.f32 0.0, %v2867
  %v2869 = vpop.f32.mrb[0].mxu0
  %2870 = vmatprep.mubr.f32.mxu0 0.0
  %2871 = vmatmul.mubr.f32.gmra.mrb[0].mxu0 %v2712
  %v2872 = vpop.f32.mrb[0].mxu0
  %v2873 = vadd.f32 0.0, %v2872
  %v2874 = vpop.f32.mrb[0].mxu0
  %2875 = vmatprep.mubr.f32.mxu0 0.0
  %2876 = vmatmul.mubr.f32.gmra.mrb[0].mxu0 %v2717
  %v2877 = vpop.f32.mrb[0].mxu0
  %v2878 = vadd.f32 0.0, %v2877
  %v2879 = vpop.f32.mrb[0].mxu0
  %2880 = vmatprep.mubr.f32.mxu0 0.0
  %2881 = vmatmul.mubr.f32.gmra.mrb[0].mxu0 %v2722
  %v2882 = vpop.f32.mrb[0].mxu0
  %v2883 = vadd.f32 0.0, %v2882
  %v2884 = vpop.f32.mrb[0].mxu0
  %2885 = vmatprep.mubr.f32.mxu0 0.0
  %2886 = vmatmul.mubr.f32.gmra.mrb[0].mxu0 %v2727
  %v2887 = vpop.f32.mrb[0].mxu0
  %v2888 = vadd.f32 0.0, %v2887
  %v2889 = vpop.f32.mrb[0].mxu0
  %2890 = vdwg.mxu0
  %2891 = vmatprep.subr.mxu0 0.0
  %2892 = vmatpush1.msra.mxu0 %v2569
  %2893 = vmatprep.subr.mxu0 0.0
  %2894 = vmatpush1.msra.mxu0 %v2570
  %2895 = vmatprep.subr.mxu0 0.0
  %2896 = vmatpush1.msra.mxu0 %v2571
  %2897 = vmatprep.subr.mxu0 0.0
  %2898 = vmatpush1.msra.mxu0 %v2572
  %2899 = vmatprep.subr.mxu0 0.0
  %2900 = vmatpush1.msra.mxu0 %v2573
  %2901 = vmatprep.subr.mxu0 0.0
  %2902 = vmatpush1.msra.mxu0 %v2574
  %2903 = vmatprep.subr.mxu0 0.0
  %2904 = vmatpush1.msra.mxu0 %v2575
  %2905 = vmatprep.subr.mxu0 0.0
  %2906 = vmatpush1.msra.mxu0 %v2576
  %2907 = vmatprep.subr.mxu0 0.0
  %2908 = vmatpush1.msra.mxu0 %v2577
  %2909 = vmatprep.subr.mxu0 0.0
  %2910 = vmatpush1.msra.mxu0 %v2578
  %2911 = vmatprep.subr.mxu0 0.0
  %2912 = vmatpush1.msra.mxu0 %v2579
  %2913 = vmatprep.subr.mxu0 0.0
  %2914 = vmatpush1.msra.mxu0 %v2580
  %2915 = vmatprep.subr.mxu0 0.0
  %2916 = vmatpush1.msra.mxu0 %v2581
  %2917 = vmatprep.subr.mxu0 0.0
  %2918 = vmatpush1.msra.mxu0 %v2582
  %2919 = vmatprep.subr.mxu0 0.0
  %2920 = vmatpush1.msra.mxu0 %v2583
  %2921 = vmatprep.subr.mxu0 0.0
  %2922 = vmatpush1.msra.mxu0 %v2584
  %2923 = vmatprep.subr.mxu0 0.0
  %2924 = vmatpush1.msra.mxu0 0.0
  %2925 = vmatprep.subr.mxu0 0.0
  %2926 = vmatpush1.msra.mxu0 0.0
  %2927 = vmatprep.subr.mxu0 0.0
  %2928 = vmatpush1.msra.mxu0 0.0
  %2929 = vmatprep.subr.mxu0 0.0
  %2930 = vmatpush1.msra.mxu0 0.0
  %2931 = vmatprep.subr.mxu0 0.0
  %2932 = vmatpush1.msra.mxu0 0.0
  %2933 = vmatprep.subr.mxu0 0.0
  %2934 = vmatpush1.msra.mxu0 0.0
  %2935 = vmatprep.subr.mxu0 0.0
  %2936 = vmatpush1.msra.mxu0 0.0
  %2937 = vmatprep.subr.mxu0 0.0
  %2938 = vmatpush1.msra.mxu0 0.0
  %2939 = vmatprep.subr.mxu0 0.0
  %2940 = vmatpush1.msra.mxu0 0.0
  %2941 = vmatprep.subr.mxu0 0.0
  %2942 = vmatpush1.msra.mxu0 0.0
  %2943 = vmatprep.subr.mxu0 0.0
  %2944 = vmatpush1.msra.mxu0 0.0
  %2945 = vmatprep.subr.mxu0 0.0
  %2946 = vmatpush1.msra.mxu0 0.0
  %2947 = vmatprep.subr.mxu0 0.0
  %2948 = vmatpush1.msra.mxu0 0.0
  %2949 = vmatprep.subr.mxu0 0.0
  %2950 = vmatpush1.msra.mxu0 0.0
  %2951 = vmatprep.subr.mxu0 0.0
  %2952 = vmatpush1.msra.mxu0 0.0
  %2953 = vmatprep.subr.mxu0 0.0
  %2954 = vmatpush1.msra.mxu0 0.0
  %2955 = vmatprep.mubr.f32.mxu0 0.0
  %2956 = vmatmul.mubr.f32.gmra.mrb[0].mxu0 %v2553
  %v2957 = vpop.f32.mrb[0].mxu0
  %v2958 = vadd.f32 %v2813, %v2957
  %v2959 = vpop.f32.mrb[0].mxu0
  %2960 = vmatprep.mubr.f32.mxu0 0.0
  %2961 = vmatmul.mubr.f32.gmra.mrb[0].mxu0 %v2554
  %v2962 = vpop.f32.mrb[0].mxu0
  %v2963 = vadd.f32 %v2818, %v2962
  %v2964 = vpop.f32.mrb[0].mxu0
  %2965 = vmatprep.mubr.f32.mxu0 0.0
  %2966 = vmatmul.mubr.f32.gmra.mrb[0].mxu0 %v2555
  %v2967 = vpop.f32.mrb[0].mxu0
  %v2968 = vadd.f32 %v2823, %v2967
  %v2969 = vpop.f32.mrb[0].mxu0
  %2970 = vmatprep.mubr.f32.mxu0 0.0
  %2971 = vmatmul.mubr.f32.gmra.mrb[0].mxu0 %v2556
  %v2972 = vpop.f32.mrb[0].mxu0
  %v2973 = vadd.f32 %v2828, %v2972
  %v2974 = vpop.f32.mrb[0].mxu0
  %2975 = vmatprep.mubr.f32.mxu0 0.0
  %2976 = vmatmul.mubr.f32.gmra.mrb[0].mxu0 %v2557
  %v2977 = vpop.f32.mrb[0].mxu0
  %v2978 = vadd.f32 %v2833, %v2977
  %v2979 = vpop.f32.mrb[0].mxu0
  %2980 = vmatprep.mubr.f32.mxu0 0.0
  %2981 = vmatmul.mubr.f32.gmra.mrb[0].mxu0 %v2558
  %v2982 = vpop.f32.mrb[0].mxu0
  %v2983 = vadd.f32 %v2838, %v2982
  %v2984 = vpop.f32.mrb[0].mxu0
  %2985 = vmatprep.mubr.f32.mxu0 0.0
  %2986 = vmatmul.mubr.f32.gmra.mrb[0].mxu0 %v2559
  %v2987 = vpop.f32.mrb[0].mxu0
  %v2988 = vadd.f32 %v2843, %v2987
  %v2989 = vpop.f32.mrb[0].mxu0
  %2990 = vmatprep.mubr.f32.mxu0 0.0
  %2991 = vmatmul.mubr.f32.gmra.mrb[0].mxu0 %v2560
  %v2992 = vpop.f32.mrb[0].mxu0
  %v2993 = vadd.f32 %v2848, %v2992
  %v2994 = vpop.f32.mrb[0].mxu0
  %2995 = vmatprep.mubr.f32.mxu0 0.0
  %2996 = vmatmul.mubr.f32.gmra.mrb[0].mxu0 %v2561
  %v2997 = vpop.f32.mrb[0].mxu0
  %v2998 = vadd.f32 %v2853, %v2997
  %v2999 = vpop.f32.mrb[0].mxu0
  %3000 = vmatprep.mubr.f32.mxu0 0.0
  %3001 = vmatmul.mubr.f32.gmra.mrb[0].mxu0 %v2562
  %v3002 = vpop.f32.mrb[0].mxu0
  %v3003 = vadd.f32 %v2858, %v3002
  %v3004 = vpop.f32.mrb[0].mxu0
  %3005 = vmatprep.mubr.f32.mxu0 0.0
  %3006 = vmatmul.mubr.f32.gmra.mrb[0].mxu0 %v2563
  %v3007 = vpop.f32.mrb[0].mxu0
  %v3008 = vadd.f32 %v2863, %v3007
  %v3009 = vpop.f32.mrb[0].mxu0
  %3010 = vmatprep.mubr.f32.mxu0 0.0
  %3011 = vmatmul.mubr.f32.gmra.mrb[0].mxu0 %v2564
  %v3012 = vpop.f32.mrb[0].mxu0
  %v3013 = vadd.f32 %v2868, %v3012
  %v3014 = vpop.f32.mrb[0].mxu0
  %3015 = vmatprep.mubr.f32.mxu0 0.0
  %3016 = vmatmul.mubr.f32.gmra.mrb[0].mxu0 %v2565
  %v3017 = vpop.f32.mrb[0].mxu0
  %v3018 = vadd.f32 %v2873, %v3017
  %v3019 = vpop.f32.mrb[0].mxu0
  %3020 = vmatprep.mubr.f32.mxu0 0.0
  %3021 = vmatmul.mubr.f32.gmra.mrb[0].mxu0 %v2566
  %v3022 = vpop.f32.mrb[0].mxu0
  %v3023 = vadd.f32 %v2878, %v3022
  %v3024 = vpop.f32.mrb[0].mxu0
  %3025 = vmatprep.mubr.f32.mxu0 0.0
  %3026 = vmatmul.mubr.f32.gmra.mrb[0].mxu0 %v2567
  %v3027 = vpop.f32.mrb[0].mxu0
  %v3028 = vadd.f32 %v2883, %v3027
  %v3029 = vpop.f32.mrb[0].mxu0
  %3030 = vmatprep.mubr.f32.mxu0 0.0
  %3031 = vmatmul.mubr.f32.gmra.mrb[0].mxu0 %v2568
  %v3032 = vpop.f32.mrb[0].mxu0
  %v3033 = vadd.f32 %v2888, %v3032
  %v3034 = vpop.f32.mrb[0].mxu0
  %3035 = vdwg.mxu0
  %3036 = vmatprep.subr.mxu0 0.0
  %3037 = vmatpush1.msra.mxu0 %v2652
  %3038 = vmatprep.subr.mxu0 0.0
  %3039 = vmatpush1.msra.mxu0 %v2657
  %3040 = vmatprep.subr.mxu0 0.0
  %3041 = vmatpush1.msra.mxu0 %v2662
  %3042 = vmatprep.subr.mxu0 0.0
  %3043 = vmatpush1.msra.mxu0 %v2667
  %3044 = vmatprep.subr.mxu0 0.0
  %3045 = vmatpush1.msra.mxu0 %v2672
  %3046 = vmatprep.subr.mxu0 0.0
  %3047 = vmatpush1.msra.mxu0 %v2677
  %3048 = vmatprep.subr.mxu0 0.0
  %3049 = vmatpush1.msra.mxu0 %v2682
  %3050 = vmatprep.subr.mxu0 0.0
  %3051 = vmatpush1.msra.mxu0 %v2687
  %3052 = vmatprep.subr.mxu0 0.0
  %3053 = vmatpush1.msra.mxu0 %v2692
  %3054 = vmatprep.subr.mxu0 0.0
  %3055 = vmatpush1.msra.mxu0 %v2697
  %3056 = vmatprep.subr.mxu0 0.0
  %3057 = vmatpush1.msra.mxu0 %v2702
  %3058 = vmatprep.subr.mxu0 0.0
  %3059 = vmatpush1.msra.mxu0 %v2707
  %3060 = vmatprep.subr.mxu0 0.0
  %3061 = vmatpush1.msra.mxu0 %v2712
  %3062 = vmatprep.subr.mxu0 0.0
  %3063 = vmatpush1.msra.mxu0 %v2717
  %3064 = vmatprep.subr.mxu0 0.0
  %3065 = vmatpush1.msra.mxu0 %v2722
  %3066 = vmatprep.subr.mxu0 0.0
  %3067 = vmatpush1.msra.mxu0 %v2727
  %3068 = vmatprep.subr.mxu0 0.0
  %3069 = vmatpush1.msra.mxu0 0.0
  %3070 = vmatprep.subr.mxu0 0.0
  %3071 = vmatpush1.msra.mxu0 0.0
  %3072 = vmatprep.subr.mxu0 0.0
  %3073 = vmatpush1.msra.mxu0 0.0
  %3074 = vmatprep.subr.mxu0 0.0
  %3075 = vmatpush1.msra.mxu0 0.0
  %3076 = vmatprep.subr.mxu0 0.0
  %3077 = vmatpush1.msra.mxu0 0.0
  %3078 = vmatprep.subr.mxu0 0.0
  %3079 = vmatpush1.msra.mxu0 0.0
  %3080 = vmatprep.subr.mxu0 0.0
  %3081 = vmatpush1.msra.mxu0 0.0
  %3082 = vmatprep.subr.mxu0 0.0
  %3083 = vmatpush1.msra.mxu0 0.0
  %3084 = vmatprep.subr.mxu0 0.0
  %3085 = vmatpush1.msra.mxu0 0.0
  %3086 = vmatprep.subr.mxu0 0.0
  %3087 = vmatpush1.msra.mxu0 0.0
  %3088 = vmatprep.subr.mxu0 0.0
  %3089 = vmatpush1.msra.mxu0 0.0
  %3090 = vmatprep.subr.mxu0 0.0
  %3091 = vmatpush1.msra.mxu0 0.0
  %3092 = vmatprep.subr.mxu0 0.0
  %3093 = vmatpush1.msra.mxu0 0.0
  %3094 = vmatprep.subr.mxu0 0.0
  %3095 = vmatpush1.msra.mxu0 0.0
  %3096 = vmatprep.subr.mxu0 0.0
  %3097 = vmatpush1.msra.mxu0 0.0
  %3098 = vmatprep.subr.mxu0 0.0
  %3099 = vmatpush1.msra.mxu0 0.0
  %3100 = vmatprep.mubr.f32.mxu0 0.0
  %3101 = vmatmul.mubr.f32.gmra.mrb[0].mxu0 %v26
  %v3102 = vpop.f32.mrb[0].mxu0
  %v3103 = vadd.f32 0.0, %v3102
  %v3104 = vpop.f32.mrb[0].mxu0
  %3105 = vmatprep.mubr.f32.mxu0 0.0
  %3106 = vmatmul.mubr.f32.gmra.mrb[0].mxu0 %v27
  %v3107 = vpop.f32.mrb[0].mxu0
  %v3108 = vadd.f32 0.0, %v3107
  %v3109 = vpop.f32.mrb[0].mxu0
  %3110 = vmatprep.mubr.f32.mxu0 0.0
  %3111 = vmatmul.mubr.f32.gmra.mrb[0].mxu0 %v28
  %v3112 = vpop.f32.mrb[0].mxu0
  %v3113 = vadd.f32 0.0, %v3112
  %v3114 = vpop.f32.mrb[0].mxu0
  %3115 = vmatprep.mubr.f32.mxu0 0.0
  %3116 = vmatmul.mubr.f32.gmra.mrb[0].mxu0 %v29
  %v3117 = vpop.f32.mrb[0].mxu0
  %v3118 = vadd.f32 0.0, %v3117
  %v3119 = vpop.f32.mrb[0].mxu0
  %3120 = vmatprep.mubr.f32.mxu0 0.0
  %3121 = vmatmul.mubr.f32.gmra.mrb[0].mxu0 %v30
  %v3122 = vpop.f32.mrb[0].mxu0
  %v3123 = vadd.f32 0.0, %v3122
  %v3124 = vpop.f32.mrb[0].mxu0
  %3125 = vmatprep.mubr.f32.mxu0 0.0
  %3126 = vmatmul.mubr.f32.gmra.mrb[0].mxu0 %v31
  %v3127 = vpop.f32.mrb[0].mxu0
  %v3128 = vadd.f32 0.0, %v3127
  %v3129 = vpop.f32.mrb[0].mxu0
  %3130 = vmatprep.mubr.f32.mxu0 0.0
  %3131 = vmatmul.mubr.f32.gmra.mrb[0].mxu0 %v32
  %v3132 = vpop.f32.mrb[0].mxu0
  %v3133 = vadd.f32 0.0, %v3132
  %v3134 = vpop.f32.mrb[0].mxu0
  %3135 = vmatprep.mubr.f32.mxu0 0.0
  %3136 = vmatmul.mubr.f32.gmra.mrb[0].mxu0 %v33
  %v3137 = vpop.f32.mrb[0].mxu0
  %v3138 = vadd.f32 0.0, %v3137
  %v3139 = vpop.f32.mrb[0].mxu0
  %3140 = vmatprep.mubr.f32.mxu0 0.0
  %3141 = vmatmul.mubr.f32.gmra.mrb[0].mxu0 %v34
  %v3142 = vpop.f32.mrb[0].mxu0
  %v3143 = vadd.f32 0.0, %v3142
  %v3144 = vpop.f32.mrb[0].mxu0
  %3145 = vmatprep.mubr.f32.mxu0 0.0
  %3146 = vmatmul.mubr.f32.gmra.mrb[0].mxu0 %v35
  %v3147 = vpop.f32.mrb[0].mxu0
  %v3148 = vadd.f32 0.0, %v3147
  %v3149 = vpop.f32.mrb[0].mxu0
  %3150 = vmatprep.mubr.f32.mxu0 0.0
  %3151 = vmatmul.mubr.f32.gmra.mrb[0].mxu0 %v36
  %v3152 = vpop.f32.mrb[0].mxu0
  %v3153 = vadd.f32 0.0, %v3152
  %v3154 = vpop.f32.mrb[0].mxu0
  %3155 = vmatprep.mubr.f32.mxu0 0.0
  %3156 = vmatmul.mubr.f32.gmra.mrb[0].mxu0 %v37
  %v3157 = vpop.f32.mrb[0].mxu0
  %v3158 = vadd.f32 0.0, %v3157
  %v3159 = vpop.f32.mrb[0].mxu0
  %3160 = vmatprep.mubr.f32.mxu0 0.0
  %3161 = vmatmul.mubr.f32.gmra.mrb[0].mxu0 %v38
  %v3162 = vpop.f32.mrb[0].mxu0
  %v3163 = vadd.f32 0.0, %v3162
  %v3164 = vpop.f32.mrb[0].mxu0
  %3165 = vmatprep.mubr.f32.mxu0 0.0
  %3166 = vmatmul.mubr.f32.gmra.mrb[0].mxu0 %v39
  %v3167 = vpop.f32.mrb[0].mxu0
  %v3168 = vadd.f32 0.0, %v3167
  %v3169 = vpop.f32.mrb[0].mxu0
  %3170 = vmatprep.mubr.f32.mxu0 0.0
  %3171 = vmatmul.mubr.f32.gmra.mrb[0].mxu0 %v40
  %v3172 = vpop.f32.mrb[0].mxu0
  %v3173 = vadd.f32 0.0, %v3172
  %v3174 = vpop.f32.mrb[0].mxu0
  %3175 = vmatprep.mubr.f32.mxu0 0.0
  %3176 = vmatmul.mubr.f32.gmra.mrb[0].mxu0 %v41
  %v3177 = vpop.f32.mrb[0].mxu0
  %v3178 = vadd.f32 0.0, %v3177
  %v3179 = vpop.f32.mrb[0].mxu0
  %3180 = vdwg.mxu0
  %v3181 = vmul.f32 %v3103, 2.0
  %v3182 = vmul.f32 %v3108, 2.0
  %v3183 = vmul.f32 %v3113, 2.0
  %v3184 = vmul.f32 %v3118, 2.0
  %v3185 = vmul.f32 %v3123, 2.0
  %v3186 = vmul.f32 %v3128, 2.0
  %v3187 = vmul.f32 %v3133, 2.0
  %v3188 = vmul.f32 %v3138, 2.0
  %v3189 = vmul.f32 %v3143, 2.0
  %v3190 = vmul.f32 %v3148, 2.0
  %v3191 = vmul.f32 %v3153, 2.0
  %v3192 = vmul.f32 %v3158, 2.0
  %v3193 = vmul.f32 %v3163, 2.0
  %v3194 = vmul.f32 %v3168, 2.0
  %v3195 = vmul.f32 %v3173, 2.0
  %v3196 = vmul.f32 %v3178, 2.0
  %v3197 = vsub.f32 %v3181, %v2553
  %v3198 = vsub.f32 %v3182, %v2554
  %v3199 = vsub.f32 %v3183, %v2555
  %v3200 = vsub.f32 %v3184, %v2556
  %v3201 = vsub.f32 %v3185, %v2557
  %v3202 = vsub.f32 %v3186, %v2558
  %v3203 = vsub.f32 %v3187, %v2559
  %v3204 = vsub.f32 %v3188, %v2560
  %v3205 = vsub.f32 %v3189, %v2561
  %v3206 = vsub.f32 %v3190, %v2562
  %v3207 = vsub.f32 %v3191, %v2563
  %v3208 = vsub.f32 %v3192, %v2564
  %v3209 = vsub.f32 %v3193, %v2565
  %v3210 = vsub.f32 %v3194, %v2566
  %v3211 = vsub.f32 %v3195, %v2567
  %v3212 = vsub.f32 %v3196, %v2568
  %v3213 = vld [vmem:[%s5 + $0x100] sm:$0xff]
  %v3214 = vld [vmem:[%s5 + $0x108] sm:$0xff]
  %v3215 = vld [vmem:[%s5 + $0x110] sm:$0xff]
  %v3216 = vld [vmem:[%s5 + $0x118] sm:$0xff]
  %v3217 = vld [vmem:[%s5 + $0x120] sm:$0xff]
  %v3218 = vld [vmem:[%s5 + $0x128] sm:$0xff]
  %v3219 = vld [vmem:[%s5 + $0x130] sm:$0xff]
  %v3220 = vld [vmem:[%s5 + $0x138] sm:$0xff]
  %v3221 = vld [vmem:[%s5 + $0x140] sm:$0xff]
  %v3222 = vld [vmem:[%s5 + $0x148] sm:$0xff]
  %v3223 = vld [vmem:[%s5 + $0x150] sm:$0xff]
  %v3224 = vld [vmem:[%s5 + $0x158] sm:$0xff]
  %v3225 = vld [vmem:[%s5 + $0x160] sm:$0xff]
  %v3226 = vld [vmem:[%s5 + $0x168] sm:$0xff]
  %v3227 = vld [vmem:[%s5 + $0x170] sm:$0xff]
  %v3228 = vld [vmem:[%s5 + $0x178] sm:$0xff]
  %3229 = vmatprep.subr.mxu0 0.0
  %3230 = vmatpush1.msra.mxu0 %v3213
  %3231 = vmatprep.subr.mxu0 0.0
  %3232 = vmatpush1.msra.mxu0 %v3214
  %3233 = vmatprep.subr.mxu0 0.0
  %3234 = vmatpush1.msra.mxu0 %v3215
  %3235 = vmatprep.subr.mxu0 0.0
  %3236 = vmatpush1.msra.mxu0 %v3216
  %3237 = vmatprep.subr.mxu0 0.0
  %3238 = vmatpush1.msra.mxu0 %v3217
  %3239 = vmatprep.subr.mxu0 0.0
  %3240 = vmatpush1.msra.mxu0 %v3218
  %3241 = vmatprep.subr.mxu0 0.0
  %3242 = vmatpush1.msra.mxu0 %v3219
  %3243 = vmatprep.subr.mxu0 0.0
  %3244 = vmatpush1.msra.mxu0 %v3220
  %3245 = vmatprep.subr.mxu0 0.0
  %3246 = vmatpush1.msra.mxu0 %v3221
  %3247 = vmatprep.subr.mxu0 0.0
  %3248 = vmatpush1.msra.mxu0 %v3222
  %3249 = vmatprep.subr.mxu0 0.0
  %3250 = vmatpush1.msra.mxu0 %v3223
  %3251 = vmatprep.subr.mxu0 0.0
  %3252 = vmatpush1.msra.mxu0 %v3224
  %3253 = vmatprep.subr.mxu0 0.0
  %3254 = vmatpush1.msra.mxu0 %v3225
  %3255 = vmatprep.subr.mxu0 0.0
  %3256 = vmatpush1.msra.mxu0 %v3226
  %3257 = vmatprep.subr.mxu0 0.0
  %3258 = vmatpush1.msra.mxu0 %v3227
  %3259 = vmatprep.subr.mxu0 0.0
  %3260 = vmatpush1.msra.mxu0 %v3228
  %3261 = vmatprep.subr.mxu0 0.0
  %3262 = vmatpush1.msra.mxu0 0.0
  %3263 = vmatprep.subr.mxu0 0.0
  %3264 = vmatpush1.msra.mxu0 0.0
  %3265 = vmatprep.subr.mxu0 0.0
  %3266 = vmatpush1.msra.mxu0 0.0
  %3267 = vmatprep.subr.mxu0 0.0
  %3268 = vmatpush1.msra.mxu0 0.0
  %3269 = vmatprep.subr.mxu0 0.0
  %3270 = vmatpush1.msra.mxu0 0.0
  %3271 = vmatprep.subr.mxu0 0.0
  %3272 = vmatpush1.msra.mxu0 0.0
  %3273 = vmatprep.subr.mxu0 0.0
  %3274 = vmatpush1.msra.mxu0 0.0
  %3275 = vmatprep.subr.mxu0 0.0
  %3276 = vmatpush1.msra.mxu0 0.0
  %3277 = vmatprep.subr.mxu0 0.0
  %3278 = vmatpush1.msra.mxu0 0.0
  %3279 = vmatprep.subr.mxu0 0.0
  %3280 = vmatpush1.msra.mxu0 0.0
  %3281 = vmatprep.subr.mxu0 0.0
  %3282 = vmatpush1.msra.mxu0 0.0
  %3283 = vmatprep.subr.mxu0 0.0
  %3284 = vmatpush1.msra.mxu0 0.0
  %3285 = vmatprep.subr.mxu0 0.0
  %3286 = vmatpush1.msra.mxu0 0.0
  %3287 = vmatprep.subr.mxu0 0.0
  %3288 = vmatpush1.msra.mxu0 0.0
  %3289 = vmatprep.subr.mxu0 0.0
  %3290 = vmatpush1.msra.mxu0 0.0
  %3291 = vmatprep.subr.mxu0 0.0
  %3292 = vmatpush1.msra.mxu0 0.0
  %3293 = vmatprep.mubr.f32.mxu0 0.0
  %3294 = vmatmul.mubr.f32.gmra.mrb[0].mxu0 %v3197
  %v3295 = vpop.f32.mrb[0].mxu0
  %v3296 = vadd.f32 0.0, %v3295
  %v3297 = vpop.f32.mrb[0].mxu0
  %3298 = vmatprep.mubr.f32.mxu0 0.0
  %3299 = vmatmul.mubr.f32.gmra.mrb[0].mxu0 %v3198
  %v3300 = vpop.f32.mrb[0].mxu0
  %v3301 = vadd.f32 0.0, %v3300
  %v3302 = vpop.f32.mrb[0].mxu0
  %3303 = vmatprep.mubr.f32.mxu0 0.0
  %3304 = vmatmul.mubr.f32.gmra.mrb[0].mxu0 %v3199
  %v3305 = vpop.f32.mrb[0].mxu0
  %v3306 = vadd.f32 0.0, %v3305
  %v3307 = vpop.f32.mrb[0].mxu0
  %3308 = vmatprep.mubr.f32.mxu0 0.0
  %3309 = vmatmul.mubr.f32.gmra.mrb[0].mxu0 %v3200
  %v3310 = vpop.f32.mrb[0].mxu0
  %v3311 = vadd.f32 0.0, %v3310
  %v3312 = vpop.f32.mrb[0].mxu0
  %3313 = vmatprep.mubr.f32.mxu0 0.0
  %3314 = vmatmul.mubr.f32.gmra.mrb[0].mxu0 %v3201
  %v3315 = vpop.f32.mrb[0].mxu0
  %v3316 = vadd.f32 0.0, %v3315
  %v3317 = vpop.f32.mrb[0].mxu0
  %3318 = vmatprep.mubr.f32.mxu0 0.0
  %3319 = vmatmul.mubr.f32.gmra.mrb[0].mxu0 %v3202
  %v3320 = vpop.f32.mrb[0].mxu0
  %v3321 = vadd.f32 0.0, %v3320
  %v3322 = vpop.f32.mrb[0].mxu0
  %3323 = vmatprep.mubr.f32.mxu0 0.0
  %3324 = vmatmul.mubr.f32.gmra.mrb[0].mxu0 %v3203
  %v3325 = vpop.f32.mrb[0].mxu0
  %v3326 = vadd.f32 0.0, %v3325
  %v3327 = vpop.f32.mrb[0].mxu0
  %3328 = vmatprep.mubr.f32.mxu0 0.0
  %3329 = vmatmul.mubr.f32.gmra.mrb[0].mxu0 %v3204
  %v3330 = vpop.f32.mrb[0].mxu0
  %v3331 = vadd.f32 0.0, %v3330
  %v3332 = vpop.f32.mrb[0].mxu0
  %3333 = vmatprep.mubr.f32.mxu0 0.0
  %3334 = vmatmul.mubr.f32.gmra.mrb[0].mxu0 %v3205
  %v3335 = vpop.f32.mrb[0].mxu0
  %v3336 = vadd.f32 0.0, %v3335
  %v3337 = vpop.f32.mrb[0].mxu0
  %3338 = vmatprep.mubr.f32.mxu0 0.0
  %3339 = vmatmul.mubr.f32.gmra.mrb[0].mxu0 %v3206
  %v3340 = vpop.f32.mrb[0].mxu0
  %v3341 = vadd.f32 0.0, %v3340
  %v3342 = vpop.f32.mrb[0].mxu0
  %3343 = vmatprep.mubr.f32.mxu0 0.0
  %3344 = vmatmul.mubr.f32.gmra.mrb[0].mxu0 %v3207
  %v3345 = vpop.f32.mrb[0].mxu0
  %v3346 = vadd.f32 0.0, %v3345
  %v3347 = vpop.f32.mrb[0].mxu0
  %3348 = vmatprep.mubr.f32.mxu0 0.0
  %3349 = vmatmul.mubr.f32.gmra.mrb[0].mxu0 %v3208
  %v3350 = vpop.f32.mrb[0].mxu0
  %v3351 = vadd.f32 0.0, %v3350
  %v3352 = vpop.f32.mrb[0].mxu0
  %3353 = vmatprep.mubr.f32.mxu0 0.0
  %3354 = vmatmul.mubr.f32.gmra.mrb[0].mxu0 %v3209
  %v3355 = vpop.f32.mrb[0].mxu0
  %v3356 = vadd.f32 0.0, %v3355
  %v3357 = vpop.f32.mrb[0].mxu0
  %3358 = vmatprep.mubr.f32.mxu0 0.0
  %3359 = vmatmul.mubr.f32.gmra.mrb[0].mxu0 %v3210
  %v3360 = vpop.f32.mrb[0].mxu0
  %v3361 = vadd.f32 0.0, %v3360
  %v3362 = vpop.f32.mrb[0].mxu0
  %3363 = vmatprep.mubr.f32.mxu0 0.0
  %3364 = vmatmul.mubr.f32.gmra.mrb[0].mxu0 %v3211
  %v3365 = vpop.f32.mrb[0].mxu0
  %v3366 = vadd.f32 0.0, %v3365
  %v3367 = vpop.f32.mrb[0].mxu0
  %3368 = vmatprep.mubr.f32.mxu0 0.0
  %3369 = vmatmul.mubr.f32.gmra.mrb[0].mxu0 %v3212
  %v3370 = vpop.f32.mrb[0].mxu0
  %v3371 = vadd.f32 0.0, %v3370
  %v3372 = vpop.f32.mrb[0].mxu0
  %3373 = vdwg.mxu0
  %v3374 = vadd.f32 %v2958, %v3296
  %v3375 = vadd.f32 %v2963, %v3301
  %v3376 = vadd.f32 %v2968, %v3306
  %v3377 = vadd.f32 %v2973, %v3311
  %v3378 = vadd.f32 %v2978, %v3316
  %v3379 = vadd.f32 %v2983, %v3321
  %v3380 = vadd.f32 %v2988, %v3326
  %v3381 = vadd.f32 %v2993, %v3331
  %v3382 = vadd.f32 %v2998, %v3336
  %v3383 = vadd.f32 %v3003, %v3341
  %v3384 = vadd.f32 %v3008, %v3346
  %v3385 = vadd.f32 %v3013, %v3351
  %v3386 = vadd.f32 %v3018, %v3356
  %v3387 = vadd.f32 %v3023, %v3361
  %v3388 = vadd.f32 %v3028, %v3366
  %v3389 = vadd.f32 %v3033, %v3371
  %v3390 = vld [vmem:[%s6] sm:$0x1]
  %v3392 = vlaneseq
  %v3393 = vshrl.u32 %v3392, 7
  %v3394 = vsub.s32 0, %v3393
  %v3395 = vrot.slane %v3390, %v3394
  %v3397 = vadd.f32 %v3374, %v3395
  %v3398 = vadd.f32 %v3375, %v3395
  %v3399 = vadd.f32 %v3376, %v3395
  %v3400 = vadd.f32 %v3377, %v3395
  %v3401 = vadd.f32 %v3378, %v3395
  %v3402 = vadd.f32 %v3379, %v3395
  %v3403 = vadd.f32 %v3380, %v3395
  %v3404 = vadd.f32 %v3381, %v3395
  %v3405 = vadd.f32 %v3382, %v3395
  %v3406 = vadd.f32 %v3383, %v3395
  %v3407 = vadd.f32 %v3384, %v3395
  %v3408 = vadd.f32 %v3385, %v3395
  %v3409 = vadd.f32 %v3386, %v3395
  %v3410 = vadd.f32 %v3387, %v3395
  %v3411 = vadd.f32 %v3388, %v3395
  %v3412 = vadd.f32 %v3389, %v3395
  %3413 = vmax.xlane.f32.xlu0 %v3397
  %v3414 = vpop.xlane.xlu0 %3413
  %3415 = vmax.xlane.f32.xlu0 %v3398
  %v3416 = vpop.xlane.xlu0 %3415
  %3417 = vmax.xlane.f32.xlu0 %v3399
  %v3418 = vpop.xlane.xlu0 %3417
  %3419 = vmax.xlane.f32.xlu0 %v3400
  %v3420 = vpop.xlane.xlu0 %3419
  %3421 = vmax.xlane.f32.xlu0 %v3401
  %v3422 = vpop.xlane.xlu0 %3421
  %3423 = vmax.xlane.f32.xlu0 %v3402
  %v3424 = vpop.xlane.xlu0 %3423
  %3425 = vmax.xlane.f32.xlu0 %v3403
  %v3426 = vpop.xlane.xlu0 %3425
  %3427 = vmax.xlane.f32.xlu0 %v3404
  %v3428 = vpop.xlane.xlu0 %3427
  %3429 = vmax.xlane.f32.xlu0 %v3405
  %v3430 = vpop.xlane.xlu0 %3429
  %3431 = vmax.xlane.f32.xlu0 %v3406
  %v3432 = vpop.xlane.xlu0 %3431
  %3433 = vmax.xlane.f32.xlu0 %v3407
  %v3434 = vpop.xlane.xlu0 %3433
  %3435 = vmax.xlane.f32.xlu0 %v3408
  %v3436 = vpop.xlane.xlu0 %3435
  %3437 = vmax.xlane.f32.xlu0 %v3409
  %v3438 = vpop.xlane.xlu0 %3437
  %3439 = vmax.xlane.f32.xlu0 %v3410
  %v3440 = vpop.xlane.xlu0 %3439
  %3441 = vmax.xlane.f32.xlu0 %v3411
  %v3442 = vpop.xlane.xlu0 %3441
  %3443 = vmax.xlane.f32.xlu0 %v3412
  %v3444 = vpop.xlane.xlu0 %3443
  %v3445 = vsub.f32 %v3397, %v3414
  %v3446 = vsub.f32 %v3398, %v3416
  %v3447 = vsub.f32 %v3399, %v3418
  %v3448 = vsub.f32 %v3400, %v3420
  %v3449 = vsub.f32 %v3401, %v3422
  %v3450 = vsub.f32 %v3402, %v3424
  %v3451 = vsub.f32 %v3403, %v3426
  %v3452 = vsub.f32 %v3404, %v3428
  %v3453 = vsub.f32 %v3405, %v3430
  %v3454 = vsub.f32 %v3406, %v3432
  %v3455 = vsub.f32 %v3407, %v3434
  %v3456 = vsub.f32 %v3408, %v3436
  %v3457 = vsub.f32 %v3409, %v3438
  %v3458 = vsub.f32 %v3410, %v3440
  %v3459 = vsub.f32 %v3411, %v3442
  %v3460 = vsub.f32 %v3412, %v3444
  %v3461 = vmul.f32 %v3445, 1.442695
  %v3462 = vpow.pop %v3461
  %v3463 = vmul.f32 %v3446, 1.442695
  %v3464 = vpow.pop %v3463
  %v3465 = vmul.f32 %v3447, 1.442695
  %v3466 = vpow.pop %v3465
  %v3467 = vmul.f32 %v3448, 1.442695
  %v3468 = vpow.pop %v3467
  %v3469 = vmul.f32 %v3449, 1.442695
  %v3470 = vpow.pop %v3469
  %v3471 = vmul.f32 %v3450, 1.442695
  %v3472 = vpow.pop %v3471
  %v3473 = vmul.f32 %v3451, 1.442695
  %v3474 = vpow.pop %v3473
  %v3475 = vmul.f32 %v3452, 1.442695
  %v3476 = vpow.pop %v3475
  %v3477 = vmul.f32 %v3453, 1.442695
  %v3478 = vpow.pop %v3477
  %v3479 = vmul.f32 %v3454, 1.442695
  %v3480 = vpow.pop %v3479
  %v3481 = vmul.f32 %v3455, 1.442695
  %v3482 = vpow.pop %v3481
  %v3483 = vmul.f32 %v3456, 1.442695
  %v3484 = vpow.pop %v3483
  %v3485 = vmul.f32 %v3457, 1.442695
  %v3486 = vpow.pop %v3485
  %v3487 = vmul.f32 %v3458, 1.442695
  %v3488 = vpow.pop %v3487
  %v3489 = vmul.f32 %v3459, 1.442695
  %v3490 = vpow.pop %v3489
  %v3491 = vmul.f32 %v3460, 1.442695
  %v3492 = vpow.pop %v3491
  %3493 = vadd.xlane.f32.xlu0 %v3462
  %v3494 = vpop.xlane.xlu0 %3493
  %3495 = vadd.xlane.f32.xlu0 %v3464
  %v3496 = vpop.xlane.xlu0 %3495
  %3497 = vadd.xlane.f32.xlu0 %v3466
  %v3498 = vpop.xlane.xlu0 %3497
  %3499 = vadd.xlane.f32.xlu0 %v3468
  %v3500 = vpop.xlane.xlu0 %3499
  %3501 = vadd.xlane.f32.xlu0 %v3470
  %v3502 = vpop.xlane.xlu0 %3501
  %3503 = vadd.xlane.f32.xlu0 %v3472
  %v3504 = vpop.xlane.xlu0 %3503
  %3505 = vadd.xlane.f32.xlu0 %v3474
  %v3506 = vpop.xlane.xlu0 %3505
  %3507 = vadd.xlane.f32.xlu0 %v3476
  %v3508 = vpop.xlane.xlu0 %3507
  %3509 = vadd.xlane.f32.xlu0 %v3478
  %v3510 = vpop.xlane.xlu0 %3509
  %3511 = vadd.xlane.f32.xlu0 %v3480
  %v3512 = vpop.xlane.xlu0 %3511
  %3513 = vadd.xlane.f32.xlu0 %v3482
  %v3514 = vpop.xlane.xlu0 %3513
  %3515 = vadd.xlane.f32.xlu0 %v3484
  %v3516 = vpop.xlane.xlu0 %3515
  %3517 = vadd.xlane.f32.xlu0 %v3486
  %v3518 = vpop.xlane.xlu0 %3517
  %3519 = vadd.xlane.f32.xlu0 %v3488
  %v3520 = vpop.xlane.xlu0 %3519
  %3521 = vadd.xlane.f32.xlu0 %v3490
  %v3522 = vpop.xlane.xlu0 %3521
  %3523 = vadd.xlane.f32.xlu0 %v3492
  %v3524 = vpop.xlane.xlu0 %3523
  %v3525 = vlog2.pop %v3494
  %v3526 = vmul.f32 %v3525, 0.6931472
  %v3527 = vlog2.pop %v3496
  %v3528 = vmul.f32 %v3527, 0.6931472
  %v3529 = vlog2.pop %v3498
  %v3530 = vmul.f32 %v3529, 0.6931472
  %v3531 = vlog2.pop %v3500
  %v3532 = vmul.f32 %v3531, 0.6931472
  %v3533 = vlog2.pop %v3502
  %v3534 = vmul.f32 %v3533, 0.6931472
  %v3535 = vlog2.pop %v3504
  %v3536 = vmul.f32 %v3535, 0.6931472
  %v3537 = vlog2.pop %v3506
  %v3538 = vmul.f32 %v3537, 0.6931472
  %v3539 = vlog2.pop %v3508
  %v3540 = vmul.f32 %v3539, 0.6931472
  %v3541 = vlog2.pop %v3510
  %v3542 = vmul.f32 %v3541, 0.6931472
  %v3543 = vlog2.pop %v3512
  %v3544 = vmul.f32 %v3543, 0.6931472
  %v3545 = vlog2.pop %v3514
  %v3546 = vmul.f32 %v3545, 0.6931472
  %v3547 = vlog2.pop %v3516
  %v3548 = vmul.f32 %v3547, 0.6931472
  %v3549 = vlog2.pop %v3518
  %v3550 = vmul.f32 %v3549, 0.6931472
  %v3551 = vlog2.pop %v3520
  %v3552 = vmul.f32 %v3551, 0.6931472
  %v3553 = vlog2.pop %v3522
  %v3554 = vmul.f32 %v3553, 0.6931472
  %v3555 = vlog2.pop %v3524
  %v3556 = vmul.f32 %v3555, 0.6931472
  %v3557 = vsub.f32 %v3445, %v3526
  %v3558 = vsub.f32 %v3446, %v3528
  %v3559 = vsub.f32 %v3447, %v3530
  %v3560 = vsub.f32 %v3448, %v3532
  %v3561 = vsub.f32 %v3449, %v3534
  %v3562 = vsub.f32 %v3450, %v3536
  %v3563 = vsub.f32 %v3451, %v3538
  %v3564 = vsub.f32 %v3452, %v3540
  %v3565 = vsub.f32 %v3453, %v3542
  %v3566 = vsub.f32 %v3454, %v3544
  %v3567 = vsub.f32 %v3455, %v3546
  %v3568 = vsub.f32 %v3456, %v3548
  %v3569 = vsub.f32 %v3457, %v3550
  %v3570 = vsub.f32 %v3458, %v3552
  %v3571 = vsub.f32 %v3459, %v3554
  %v3572 = vsub.f32 %v3460, %v3556
  %3573 = vst [vmem:[%s7] sm:$0xff] %v3557
  %3574 = vst [vmem:[%s7 + $0x8] sm:$0xff] %v3558
  %3575 = vst [vmem:[%s7 + $0x10] sm:$0xff] %v3559
  %3576 = vst [vmem:[%s7 + $0x18] sm:$0xff] %v3560
  %3577 = vst [vmem:[%s7 + $0x20] sm:$0xff] %v3561
  %3578 = vst [vmem:[%s7 + $0x28] sm:$0xff] %v3562
  %3579 = vst [vmem:[%s7 + $0x30] sm:$0xff] %v3563
  %3580 = vst [vmem:[%s7 + $0x38] sm:$0xff] %v3564
  %3581 = vst [vmem:[%s7 + $0x40] sm:$0xff] %v3565
  %3582 = vst [vmem:[%s7 + $0x48] sm:$0xff] %v3566
  %3583 = vst [vmem:[%s7 + $0x50] sm:$0xff] %v3567
  %3584 = vst [vmem:[%s7 + $0x58] sm:$0xff] %v3568
  %3585 = vst [vmem:[%s7 + $0x60] sm:$0xff] %v3569
  %3586 = vst [vmem:[%s7 + $0x68] sm:$0xff] %v3570
  %3587 = vst [vmem:[%s7 + $0x70] sm:$0xff] %v3571
  %3588 = vst [vmem:[%s7 + $0x78] sm:$0xff] %v3572
  // Predicated region
  $region30: #{predictor_forward.1} parent=0 // pred_check
    _
  $region31: #{predictor_forward.1} parent=0 // pred_check_branch
    %3590 = sbr.rel (0) target = $region33
  $region32: #{predictor_forward.1} parent=0 // pred_region
    _
  $region33: #{predictor_forward.1} parent=0 // pred_fallthru
    _
  // Predicated region
  $region34: #{predictor_forward.1} parent=0 // pred_check
    _
  $region35: #{predictor_forward.1} parent=0 // pred_check_branch
    %3592 = sbr.rel (0) target = $region37
  $region36: #{predictor_forward.1} parent=0 // pred_region
    _
  $region37: #{predictor_forward.1} parent=0 // pred_fallthru
    _

</llo_original>
